<compile_context>
chip_gen: v5e
topology: v5e:2x2
jax: 0.10.0
libtpu: 0.0.40
codegen_flags: <defaults>
</compile_context>

<pallas_src>
import functools
import math

import jax
import jax.numpy as jnp
from jax import lax
from jax.experimental import pallas as pl
from jax.experimental.pallas import tpu as pltpu

# ----------------------------- configuration -------------------------------
NCLASS = 5        # number of action classes
T = 16            # frames
M = 8             # action tokens (queries)
D = 32            # hid_dim == f_dim == a_dim
NHEAD = 4         # a_num_heads
FFDIM = 64        # a_ffdim
F_LAYERS = 2      # MSTCN2 dilated layers
GRU_H = D // 2    # bidirectional GRU hidden size
SPAD = T          # segments padded to T (>= true segment count)

VSPEC = pl.BlockSpec(memory_space=pltpu.MemorySpace.VMEM)


# ------------------------- in-kernel pure helpers ---------------------------
def _linear(x, p, relu=False):
    y = jnp.dot(x, p['w'], preferred_element_type=jnp.float32) + p['b']
    return jnp.maximum(y, 0.0) if relu else y


def _softmax(x):
    m = jnp.max(x, axis=-1, keepdims=True)
    e = jnp.exp(x - m)
    return e / jnp.sum(e, axis=-1, keepdims=True)


def _layernorm(x, g, b, eps=1e-5):
    mu = jnp.mean(x, axis=-1, keepdims=True)
    var = jnp.mean((x - mu) ** 2, axis=-1, keepdims=True)
    return (x - mu) * lax.rsqrt(var + eps) * g + b


def _process_feature(feat, ncls):
    # feature[:, :-ncls] passthrough, softmax over last ncls channels — fused
    # with lane masks (no slicing, no concat).
    nc = feat.shape[-1]
    lane = lax.broadcasted_iota(jnp.int32, feat.shape, 1)
    cls = lane >= (nc - ncls)
    neg = jnp.full(feat.shape, -1e30, feat.dtype)
    m = jnp.max(jnp.where(cls, feat, neg), axis=-1, keepdims=True)
    e = jnp.exp(jnp.where(cls, feat - m, neg))
    prob = e / jnp.sum(e, axis=-1, keepdims=True)
    return jnp.where(cls, prob, feat)


# ------------------------------ fused kernel --------------------------------
def _fused_kernel(treedef, n_params, x_ref, a_ref, fpos_ref, apos_ref, *rest):
    param_refs = rest[:n_params]
    f_out_ref = rest[n_params]
    a_out_ref = rest[n_params + 1]
    gi_fwd_ref, gi_bwd_ref, valid_ref, fwd_ref, bwd_ref = rest[n_params + 2:]

    p = jax.tree_util.tree_unflatten(treedef, [r[...] for r in param_refs])

    f32 = jnp.float32
    x = x_ref[...]          # (T, D) frame features (last NCLASS = class probs)
    act = a_ref[...]        # (M, D) action tokens
    fpos = fpos_ref[...]    # (T, D)
    apos = apos_ref[...]    # (M, D)

    # ---- static index helpers built from iota (VPU only, no HBM traffic) ---
    ii = lax.broadcasted_iota(jnp.int32, (T, T), 0)
    jj = lax.broadcasted_iota(jnp.int32, (T, T), 1)
    eye = (ii == jj).astype(f32)
    tril = (jj <= ii).astype(f32)
    shift1 = (jj == ii - 1).astype(f32)

    def col2row(c):          # (N,1) -> (1,N) without a hardware transpose
        return jnp.sum(c * eye, axis=0, keepdims=True)

    # ---------------- temporal downsample (parse_label in-kernel) -----------
    lane_d = lax.broadcasted_iota(jnp.int32, (T, D), 1)
    cls_mask = lane_d >= (D - NCLASS)
    neg = jnp.full((T, D), -1e30, f32)
    cvals = jnp.where(cls_mask, x, neg)
    cmax = jnp.max(cvals, axis=-1, keepdims=True)
    rel_idx = (lane_d - (D - NCLASS)).astype(f32)
    pred_col = jnp.min(jnp.where(cvals == cmax, rel_idx, float(NCLASS)),
                       axis=-1, keepdims=True)                     # (T,1) argmax

    row_t = lax.broadcasted_iota(jnp.int32, (T, 1), 0)
    pred_row = col2row(pred_col)
    pred_prev = jnp.sum(shift1 * pred_row, axis=1, keepdims=True)  # pred[t-1]
    change = jnp.where((row_t > 0) & (pred_col != pred_prev), 1.0, 0.0)
    change_row = col2row(change)
    seg_id_col = jnp.sum(tril * change_row, axis=1, keepdims=True)  # (T,1)
    seg_id_row = col2row(seg_id_col)                                # (1,T)

    lane_s = lax.broadcasted_iota(jnp.int32, (T, SPAD), 1).astype(f32)
    onehot_fs = (seg_id_col == lane_s).astype(f32)                  # (T,SPAD)
    row_s = lax.broadcasted_iota(jnp.int32, (SPAD, T), 0).astype(f32)
    onehot_sf = (row_s == seg_id_row).astype(f32)                   # (SPAD,T)

    counts_col = jnp.sum(onehot_sf, axis=1, keepdims=True)          # (SPAD,1)
    counts_row = jnp.sum(onehot_fs, axis=0, keepdims=True)          # (1,SPAD)
    valid_col = (counts_col > 0.5).astype(f32)
    valid_row = counts_row > 0.5

    # frame -> segment mean pooling
    seg_x = (jnp.dot(onehot_sf, x, preferred_element_type=f32)
             / jnp.maximum(counts_col, 1.0))                        # (SPAD,D)

    # segment centres (segments are contiguous) -> positional encodings
    cum_col = jnp.sum(tril * counts_row, axis=1, keepdims=True)     # (SPAD,1)
    center_col = jnp.floor((2.0 * cum_col - counts_col - 1.0) * 0.5)
    col_t = lax.broadcasted_iota(jnp.int32, (SPAD, T), 1).astype(f32)
    gather = (center_col == col_t).astype(f32)                      # (SPAD,T)
    seg_pos = jnp.dot(gather, fpos, preferred_element_type=f32)     # (SPAD,D)

    # ---------------- seg_update: bidirectional GRU (in-kernel) -------------
    # TODO(synk): single bidirectional GRU layer (s_layers > 1 not modelled).
    valid_ref[...] = valid_col
    gi_fwd_ref[...] = jnp.dot(seg_x, p['gru']['fwd']['w_ih_t'],
                              preferred_element_type=f32) + p['gru']['fwd']['b_ih']
    gi_bwd_ref[...] = jnp.dot(seg_x, p['gru']['bwd']['w_ih_t'],
                              preferred_element_type=f32) + p['gru']['bwd']['b_ih']

    def run_gru(gi_ref, out_ref, w_hh_t, b_hh, reverse):
        def step(i, h):
            t = (SPAD - 1 - i) if reverse else i
            gi = gi_ref[pl.ds(t, 1), :]                             # (1,3H)
            v_t = valid_ref[pl.ds(t, 1), :]                         # (1,1)
            gh = jnp.dot(h, w_hh_t, preferred_element_type=f32) + b_hh
            r = jax.nn.sigmoid(gi[:, :GRU_H] + gh[:, :GRU_H])
            z = jax.nn.sigmoid(gi[:, GRU_H:2 * GRU_H] + gh[:, GRU_H:2 * GRU_H])
            n = jnp.tanh(gi[:, 2 * GRU_H:] + r * gh[:, 2 * GRU_H:])
            h_new = (1.0 - z) * n + z * h
            h_new = jnp.where(v_t > 0.5, h_new, h)                  # freeze padded segs
            out_ref[pl.ds(t, 1), :] = h_new
            return h_new
        lax.fori_loop(0, SPAD, step, jnp.zeros((1, GRU_H), f32))

    run_gru(gi_fwd_ref, fwd_ref, p['gru']['fwd']['w_hh_t'], p['gru']['fwd']['b_hh'], False)
    run_gru(gi_bwd_ref, bwd_ref, p['gru']['bwd']['w_hh_t'], p['gru']['bwd']['b_hh'], True)

    seg_h = jnp.concatenate([fwd_ref[...], bwd_ref[...]], axis=-1)  # (SPAD,D)
    seg_h = jnp.maximum(seg_h, 0.0)
    seg_h = _linear(seg_h, p['seg_combine'])
    seg_feat = _process_feature(seg_h, NCLASS)

    # ---------------- f2a: action tokens attend to valid segments -----------
    # TODO(synk): X2Y_map internals reconstructed as single-head cross-attn
    # with kq positional offsets + output projection.
    scale = 1.0 / math.sqrt(D)
    q = _linear(act + apos, p['f2a']['q'])
    k = _linear(seg_feat + seg_pos, p['f2a']['k'])
    v = _linear(seg_feat, p['f2a']['v'])
    logits = lax.dot_general(q, k, (((1,), (1,)), ((), ())),
                             preferred_element_type=f32) * scale    # (M,SPAD)
    logits = jnp.where(valid_row, logits, -1e30)
    a_feat = jnp.dot(_softmax(logits), v, preferred_element_type=f32)
    a_feat = _linear(a_feat, p['f2a']['o'])

    # ---------------- action branch: SADecoder (SALayer x1) -----------------
    dh = D // NHEAD
    hscale = 1.0 / math.sqrt(dh)
    lane1 = lax.broadcasted_iota(jnp.int32, (1, D), 1)
    for lp in p['abranch']['layers']:
        qk_in = a_feat + apos
        q = _linear(qk_in, lp['q'])
        k = _linear(qk_in, lp['k'])
        v = _linear(a_feat, lp['v'])
        attn_out = jnp.zeros((M, D), f32)
        for hd in range(NHEAD):            # heads via lane masks (no slicing)
            hm = ((lane1 >= hd * dh) & (lane1 < (hd + 1) * dh)).astype(f32)
            lg = lax.dot_general(q * hm, k * hm, (((1,), (1,)), ((), ())),
                                 preferred_element_type=f32) * hscale
            attn_out = attn_out + jnp.dot(_softmax(lg), v * hm,
                                          preferred_element_type=f32)
        attn_out = _linear(attn_out, lp['o'])
        a1 = _layernorm(a_feat + attn_out, lp['ln1_g'], lp['ln1_b'])
        ff = _linear(_linear(a1, lp['ff1'], relu=True), lp['ff2'])
        a_feat = _layernorm(a1 + ff, lp['ln2_g'], lp['ln2_b'])
    a_feat = _linear(a_feat, p['abranch']['out'])
    a_feat = _process_feature(a_feat, NCLASS + 1)

    # ---------------- a2f: segments attend to action tokens -----------------
    q = _linear(seg_feat + seg_pos, p['a2f']['q'])
    k = _linear(a_feat + apos, p['a2f']['k'])
    v = _linear(a_feat, p['a2f']['v'])
    logits = lax.dot_general(q, k, (((1,), (1,)), ((), ())),
                             preferred_element_type=f32) * scale    # (SPAD,M)
    seg_feat2 = jnp.dot(_softmax(logits), v, preferred_element_type=f32)
    seg_feat2 = _linear(seg_feat2, p['a2f']['o'])

    # ---------------- temporal upsample + sf_merge (Linear + ReLU) ----------
    s2f = jnp.dot(onehot_fs, seg_feat2, preferred_element_type=f32)  # (T,D)
    wm = p['sf_merge']['w']                                          # (2D,D)
    f = jnp.maximum(jnp.dot(s2f, wm[:D, :], preferred_element_type=f32)
                    + jnp.dot(x, wm[D:, :], preferred_element_type=f32)
                    + p['sf_merge']['b'], 0.0)

    # ---------------- frame branch: MSTCN2 dilated residual stack -----------
    for li, lp in enumerate(p['fbranch']['layers']):
        d = 2 ** li
        sm = (jj == ii - d).astype(f32)     # selects f[t-d], zero-padded edges
        sp = (jj == ii + d).astype(f32)     # selects f[t+d], zero-padded edges
        fm = jnp.dot(sm, f, preferred_element_type=f32)
        fp = jnp.dot(sp, f, preferred_element_type=f32)
        hcv = (jnp.dot(fm, lp['w0'], preferred_element_type=f32)
               + jnp.dot(f, lp['w1'], preferred_element_type=f32)
               + jnp.dot(fp, lp['w2'], preferred_element_type=f32) + lp['b'])
        hcv = jnp.maximum(hcv, 0.0)
        hcv = jnp.dot(hcv, lp['wp'], preferred_element_type=f32) + lp['bp']
        f = f + hcv
    f = _linear(f, p['fbranch']['out'])
    f_out = _process_feature(f, NCLASS)

    f_out_ref[...] = f_out
    a_out_ref[...] = a_feat


# ------------------------------- wrapper -------------------------------------
def update_block_tdu_forward(prepped_params, frame_feature, action_feature,
                             frame_pos, action_pos):
    assert frame_feature.shape == (T, 1, D)
    x = frame_feature[:, 0, :]
    act = action_feature[:, 0, :]
    fpos = frame_pos[:, 0, :]
    apos = action_pos[:, 0, :]

    flat, treedef = jax.tree_util.tree_flatten(prepped_params)
    n_params = len(flat)
    kernel = functools.partial(_fused_kernel, treedef, n_params)

    f_out, a_out = pl.pallas_call(
        kernel,
        out_shape=(jax.ShapeDtypeStruct((T, D), jnp.float32),
                   jax.ShapeDtypeStruct((M, D), jnp.float32)),
        in_specs=[VSPEC] * (4 + n_params),
        out_specs=(VSPEC, VSPEC),
        scratch_shapes=[
            pltpu.VMEM((SPAD, 3 * GRU_H), jnp.float32),   # fwd GRU input gates
            pltpu.VMEM((SPAD, 3 * GRU_H), jnp.float32),   # bwd GRU input gates
            pltpu.VMEM((SPAD, 1), jnp.float32),           # segment validity
            pltpu.VMEM((SPAD, GRU_H), jnp.float32),       # fwd GRU outputs
            pltpu.VMEM((SPAD, GRU_H), jnp.float32),       # bwd GRU outputs
        ],
    )(x, act, fpos, apos, *flat)

    return f_out[:, None, :], a_out[:, None, :]


# ------------------------------ parameters -----------------------------------
def _dense(key, din, dout, scale=0.1):
    kw, kb = jax.random.split(key)
    return {'w': scale * jax.random.normal(kw, (din, dout), jnp.float32),
            'b': scale * jax.random.normal(kb, (dout,), jnp.float32)}


def init_params(key):
    keys = iter(jax.random.split(key, 64))
    p = {}

    def gru_dir(k):
        k1, k2, k3, k4 = jax.random.split(k, 4)
        return {'w_ih': 0.1 * jax.random.normal(k1, (3 * GRU_H, D), jnp.float32),
                'w_hh': 0.1 * jax.random.normal(k2, (3 * GRU_H, GRU_H), jnp.float32),
                'b_ih': 0.1 * jax.random.normal(k3, (3 * GRU_H,), jnp.float32),
                'b_hh': 0.1 * jax.random.normal(k4, (3 * GRU_H,), jnp.float32)}

    p['gru'] = {'fwd': gru_dir(next(keys)), 'bwd': gru_dir(next(keys))}
    p['seg_combine'] = _dense(next(keys), D, D)

    def x2y(kk, y_outdim):
        ks = jax.random.split(kk, 4)
        return {'q': _dense(ks[0], D, D), 'k': _dense(ks[1], D, D),
                'v': _dense(ks[2], D, D), 'o': _dense(ks[3], D, y_outdim)}

    p['f2a'] = x2y(next(keys), D)
    p['a2f'] = x2y(next(keys), D)

    def sa_layer(kk):
        ks = jax.random.split(kk, 6)
        return {'q': _dense(ks[0], D, D), 'k': _dense(ks[1], D, D),
                'v': _dense(ks[2], D, D), 'o': _dense(ks[3], D, D),
                'ff1': _dense(ks[4], D, FFDIM), 'ff2': _dense(ks[5], FFDIM, D),
                'ln1_g': jnp.ones((D,), jnp.float32), 'ln1_b': jnp.zeros((D,), jnp.float32),
                'ln2_g': jnp.ones((D,), jnp.float32), 'ln2_b': jnp.zeros((D,), jnp.float32)}

    p['abranch'] = {'layers': [sa_layer(next(keys)) for _ in range(1)],
                    'out': _dense(next(keys), D, D)}
    p['sf_merge'] = _dense(next(keys), 2 * D, D)

    def mstcn_layer_params(kk):
        ks = jax.random.split(kk, 6)
        return {'w0': 0.1 * jax.random.normal(ks[0], (D, D), jnp.float32),
                'w1': 0.1 * jax.random.normal(ks[1], (D, D), jnp.float32),
                'w2': 0.1 * jax.random.normal(ks[2], (D, D), jnp.float32),
                'b': 0.1 * jax.random.normal(ks[3], (D,), jnp.float32),
                'wp': 0.1 * jax.random.normal(ks[4], (D, D), jnp.float32),
                'bp': 0.1 * jax.random.normal(ks[5], (D,), jnp.float32)}

    p['fbranch'] = {'layers': [mstcn_layer_params(next(keys)) for _ in range(F_LAYERS)],
                    'out': _dense(next(keys), D, D)}
    return p


def _prepare_params(params):
    """One-time prep: biases -> (1,N) rows, GRU weights pre-transposed."""
    def d2(q):
        return {'w': q['w'], 'b': q['b'].reshape(1, -1)}

    def gru2(g):
        return {'w_ih_t': g['w_ih'].T, 'w_hh_t': g['w_hh'].T,
                'b_ih': g['b_ih'].reshape(1, -1), 'b_hh': g['b_hh'].reshape(1, -1)}

    return {
        'gru': {'fwd': gru2(params['gru']['fwd']), 'bwd': gru2(params['gru']['bwd'])},
        'seg_combine': d2(params['seg_combine']),
        'f2a': {k: d2(v) for k, v in params['f2a'].items()},
        'a2f': {k: d2(v) for k, v in params['a2f'].items()},
        'abranch': {
            'layers': [
                {'q': d2(l['q']), 'k': d2(l['k']), 'v': d2(l['v']), 'o': d2(l['o']),
                 'ff1': d2(l['ff1']), 'ff2': d2(l['ff2']),
                 'ln1_g': l['ln1_g'].reshape(1, -1), 'ln1_b': l['ln1_b'].reshape(1, -1),
                 'ln2_g': l['ln2_g'].reshape(1, -1), 'ln2_b': l['ln2_b'].reshape(1, -1)}
                for l in params['abranch']['layers']],
            'out': d2(params['abranch']['out'])},
        'sf_merge': d2(params['sf_merge']),
        'fbranch': {
            'layers': [
                {'w0': l['w0'], 'w1': l['w1'], 'w2': l['w2'],
                 'b': l['b'].reshape(1, -1), 'wp': l['wp'], 'bp': l['bp'].reshape(1, -1)}
                for l in params['fbranch']['layers']],
            'out': d2(params['fbranch']['out'])},
    }


# --------------------------------- main ---------------------------------------
if __name__ == "__main__":
    key = jax.random.PRNGKey(0)
    k1, k2, k3, k4, k5, kp = jax.random.split(key, 6)

    frame_feature = 0.5 * jax.random.normal(k1, (T, 1, D), jnp.float32)
    # last NCLASS channels mimic class probabilities produced by a previous block
    frame_feature = frame_feature.at[:, :, -NCLASS:].set(
        jax.nn.softmax(jax.random.normal(k2, (T, 1, NCLASS), jnp.float32), axis=-1))
    action_feature = 0.5 * jax.random.normal(k3, (M, 1, D), jnp.float32)
    frame_pos = 0.1 * jax.random.normal(k4, (T, 1, D), jnp.float32)
    action_pos = 0.1 * jax.random.normal(k5, (M, 1, D), jnp.float32)

    params = init_params(kp)
    prepped = _prepare_params(params)          # done once, outside jit

    fwd = jax.jit(update_block_tdu_forward)
    f_out, a_out = fwd(prepped, frame_feature, action_feature, frame_pos, action_pos)
    jax.block_until_ready((f_out, a_out))

    assert f_out.shape == (T, 1, D) and a_out.shape == (M, 1, D)
    assert bool(jnp.all(jnp.isfinite(f_out))) and bool(jnp.all(jnp.isfinite(a_out)))
    print("KERNEL_OK")
</pallas_src>

<mosaic_0001>
module attributes {stable_mosaic.version = 11 : i64} {
  func.func @_fused_kernel(%arg0: memref<16x32xf32, #tpu.memory_space<vmem>>, %arg1: memref<8x32xf32, #tpu.memory_space<vmem>>, %arg2: memref<16x32xf32, #tpu.memory_space<vmem>>, %arg3: memref<8x32xf32, #tpu.memory_space<vmem>>, %arg4: memref<1x32xf32, #tpu.memory_space<vmem>>, %arg5: memref<32x32xf32, #tpu.memory_space<vmem>>, %arg6: memref<1x32xf32, #tpu.memory_space<vmem>>, %arg7: memref<32x32xf32, #tpu.memory_space<vmem>>, %arg8: memref<1x32xf32, #tpu.memory_space<vmem>>, %arg9: memref<32x32xf32, #tpu.memory_space<vmem>>, %arg10: memref<1x32xf32, #tpu.memory_space<vmem>>, %arg11: memref<32x32xf32, #tpu.memory_space<vmem>>, %arg12: memref<1x64xf32, #tpu.memory_space<vmem>>, %arg13: memref<32x64xf32, #tpu.memory_space<vmem>>, %arg14: memref<1x32xf32, #tpu.memory_space<vmem>>, %arg15: memref<64x32xf32, #tpu.memory_space<vmem>>, %arg16: memref<1x32xf32, #tpu.memory_space<vmem>>, %arg17: memref<32x32xf32, #tpu.memory_space<vmem>>, %arg18: memref<1x32xf32, #tpu.memory_space<vmem>>, %arg19: memref<1x32xf32, #tpu.memory_space<vmem>>, %arg20: memref<1x32xf32, #tpu.memory_space<vmem>>, %arg21: memref<1x32xf32, #tpu.memory_space<vmem>>, %arg22: memref<1x32xf32, #tpu.memory_space<vmem>>, %arg23: memref<32x32xf32, #tpu.memory_space<vmem>>, %arg24: memref<1x32xf32, #tpu.memory_space<vmem>>, %arg25: memref<32x32xf32, #tpu.memory_space<vmem>>, %arg26: memref<1x32xf32, #tpu.memory_space<vmem>>, %arg27: memref<32x32xf32, #tpu.memory_space<vmem>>, %arg28: memref<1x32xf32, #tpu.memory_space<vmem>>, %arg29: memref<32x32xf32, #tpu.memory_space<vmem>>, %arg30: memref<1x32xf32, #tpu.memory_space<vmem>>, %arg31: memref<32x32xf32, #tpu.memory_space<vmem>>, %arg32: memref<1x32xf32, #tpu.memory_space<vmem>>, %arg33: memref<32x32xf32, #tpu.memory_space<vmem>>, %arg34: memref<1x32xf32, #tpu.memory_space<vmem>>, %arg35: memref<32x32xf32, #tpu.memory_space<vmem>>, %arg36: memref<1x32xf32, #tpu.memory_space<vmem>>, %arg37: memref<32x32xf32, #tpu.memory_space<vmem>>, %arg38: memref<1x32xf32, #tpu.memory_space<vmem>>, %arg39: memref<1x32xf32, #tpu.memory_space<vmem>>, %arg40: memref<32x32xf32, #tpu.memory_space<vmem>>, %arg41: memref<32x32xf32, #tpu.memory_space<vmem>>, %arg42: memref<32x32xf32, #tpu.memory_space<vmem>>, %arg43: memref<32x32xf32, #tpu.memory_space<vmem>>, %arg44: memref<1x32xf32, #tpu.memory_space<vmem>>, %arg45: memref<1x32xf32, #tpu.memory_space<vmem>>, %arg46: memref<32x32xf32, #tpu.memory_space<vmem>>, %arg47: memref<32x32xf32, #tpu.memory_space<vmem>>, %arg48: memref<32x32xf32, #tpu.memory_space<vmem>>, %arg49: memref<32x32xf32, #tpu.memory_space<vmem>>, %arg50: memref<1x32xf32, #tpu.memory_space<vmem>>, %arg51: memref<32x32xf32, #tpu.memory_space<vmem>>, %arg52: memref<1x48xf32, #tpu.memory_space<vmem>>, %arg53: memref<1x48xf32, #tpu.memory_space<vmem>>, %arg54: memref<16x48xf32, #tpu.memory_space<vmem>>, %arg55: memref<32x48xf32, #tpu.memory_space<vmem>>, %arg56: memref<1x48xf32, #tpu.memory_space<vmem>>, %arg57: memref<1x48xf32, #tpu.memory_space<vmem>>, %arg58: memref<16x48xf32, #tpu.memory_space<vmem>>, %arg59: memref<32x48xf32, #tpu.memory_space<vmem>>, %arg60: memref<1x32xf32, #tpu.memory_space<vmem>>, %arg61: memref<32x32xf32, #tpu.memory_space<vmem>>, %arg62: memref<1x32xf32, #tpu.memory_space<vmem>>, %arg63: memref<64x32xf32, #tpu.memory_space<vmem>>, %arg64: memref<16x32xf32, #tpu.memory_space<vmem>>, %arg65: memref<8x32xf32, #tpu.memory_space<vmem>>, %arg66: memref<16x48xf32, #tpu.memory_space<vmem>>, %arg67: memref<16x48xf32, #tpu.memory_space<vmem>>, %arg68: memref<16x1xf32, #tpu.memory_space<vmem>>, %arg69: memref<16x16xf32, #tpu.memory_space<vmem>>, %arg70: memref<16x16xf32, #tpu.memory_space<vmem>>) attributes {dimension_semantics = [], scalar_prefetch = 0 : i64, scratch_operands = 5 : i64, tpu.core_type = #tpu.core_type<tc>} {
    %c0 = arith.constant 0 : index
    %c0_0 = arith.constant 0 : index
    %0 = vector.load %arg4[%c0, %c0_0] : memref<1x32xf32, #tpu.memory_space<vmem>>, vector<1x32xf32>
    %c0_1 = arith.constant 0 : index
    %c0_2 = arith.constant 0 : index
    %1 = vector.load %arg5[%c0_1, %c0_2] : memref<32x32xf32, #tpu.memory_space<vmem>>, vector<32x32xf32>
    %c0_3 = arith.constant 0 : index
    %c0_4 = arith.constant 0 : index
    %2 = vector.load %arg6[%c0_3, %c0_4] : memref<1x32xf32, #tpu.memory_space<vmem>>, vector<1x32xf32>
    %c0_5 = arith.constant 0 : index
    %c0_6 = arith.constant 0 : index
    %3 = vector.load %arg7[%c0_5, %c0_6] : memref<32x32xf32, #tpu.memory_space<vmem>>, vector<32x32xf32>
    %c0_7 = arith.constant 0 : index
    %c0_8 = arith.constant 0 : index
    %4 = vector.load %arg8[%c0_7, %c0_8] : memref<1x32xf32, #tpu.memory_space<vmem>>, vector<1x32xf32>
    %c0_9 = arith.constant 0 : index
    %c0_10 = arith.constant 0 : index
    %5 = vector.load %arg9[%c0_9, %c0_10] : memref<32x32xf32, #tpu.memory_space<vmem>>, vector<32x32xf32>
    %c0_11 = arith.constant 0 : index
    %c0_12 = arith.constant 0 : index
    %6 = vector.load %arg10[%c0_11, %c0_12] : memref<1x32xf32, #tpu.memory_space<vmem>>, vector<1x32xf32>
    %c0_13 = arith.constant 0 : index
    %c0_14 = arith.constant 0 : index
    %7 = vector.load %arg11[%c0_13, %c0_14] : memref<32x32xf32, #tpu.memory_space<vmem>>, vector<32x32xf32>
    %c0_15 = arith.constant 0 : index
    %c0_16 = arith.constant 0 : index
    %8 = vector.load %arg12[%c0_15, %c0_16] : memref<1x64xf32, #tpu.memory_space<vmem>>, vector<1x64xf32>
    %c0_17 = arith.constant 0 : index
    %c0_18 = arith.constant 0 : index
    %9 = vector.load %arg13[%c0_17, %c0_18] : memref<32x64xf32, #tpu.memory_space<vmem>>, vector<32x64xf32>
    %c0_19 = arith.constant 0 : index
    %c0_20 = arith.constant 0 : index
    %10 = vector.load %arg14[%c0_19, %c0_20] : memref<1x32xf32, #tpu.memory_space<vmem>>, vector<1x32xf32>
    %c0_21 = arith.constant 0 : index
    %c0_22 = arith.constant 0 : index
    %11 = vector.load %arg15[%c0_21, %c0_22] : memref<64x32xf32, #tpu.memory_space<vmem>>, vector<64x32xf32>
    %c0_23 = arith.constant 0 : index
    %c0_24 = arith.constant 0 : index
    %12 = vector.load %arg16[%c0_23, %c0_24] : memref<1x32xf32, #tpu.memory_space<vmem>>, vector<1x32xf32>
    %c0_25 = arith.constant 0 : index
    %c0_26 = arith.constant 0 : index
    %13 = vector.load %arg17[%c0_25, %c0_26] : memref<32x32xf32, #tpu.memory_space<vmem>>, vector<32x32xf32>
    %c0_27 = arith.constant 0 : index
    %c0_28 = arith.constant 0 : index
    %14 = vector.load %arg18[%c0_27, %c0_28] : memref<1x32xf32, #tpu.memory_space<vmem>>, vector<1x32xf32>
    %c0_29 = arith.constant 0 : index
    %c0_30 = arith.constant 0 : index
    %15 = vector.load %arg19[%c0_29, %c0_30] : memref<1x32xf32, #tpu.memory_space<vmem>>, vector<1x32xf32>
    %c0_31 = arith.constant 0 : index
    %c0_32 = arith.constant 0 : index
    %16 = vector.load %arg20[%c0_31, %c0_32] : memref<1x32xf32, #tpu.memory_space<vmem>>, vector<1x32xf32>
    %c0_33 = arith.constant 0 : index
    %c0_34 = arith.constant 0 : index
    %17 = vector.load %arg21[%c0_33, %c0_34] : memref<1x32xf32, #tpu.memory_space<vmem>>, vector<1x32xf32>
    %c0_35 = arith.constant 0 : index
    %c0_36 = arith.constant 0 : index
    %18 = vector.load %arg22[%c0_35, %c0_36] : memref<1x32xf32, #tpu.memory_space<vmem>>, vector<1x32xf32>
    %c0_37 = arith.constant 0 : index
    %c0_38 = arith.constant 0 : index
    %19 = vector.load %arg23[%c0_37, %c0_38] : memref<32x32xf32, #tpu.memory_space<vmem>>, vector<32x32xf32>
    %c0_39 = arith.constant 0 : index
    %c0_40 = arith.constant 0 : index
    %20 = vector.load %arg24[%c0_39, %c0_40] : memref<1x32xf32, #tpu.memory_space<vmem>>, vector<1x32xf32>
    %c0_41 = arith.constant 0 : index
    %c0_42 = arith.constant 0 : index
    %21 = vector.load %arg25[%c0_41, %c0_42] : memref<32x32xf32, #tpu.memory_space<vmem>>, vector<32x32xf32>
    %c0_43 = arith.constant 0 : index
    %c0_44 = arith.constant 0 : index
    %22 = vector.load %arg26[%c0_43, %c0_44] : memref<1x32xf32, #tpu.memory_space<vmem>>, vector<1x32xf32>
    %c0_45 = arith.constant 0 : index
    %c0_46 = arith.constant 0 : index
    %23 = vector.load %arg27[%c0_45, %c0_46] : memref<32x32xf32, #tpu.memory_space<vmem>>, vector<32x32xf32>
    %c0_47 = arith.constant 0 : index
    %c0_48 = arith.constant 0 : index
    %24 = vector.load %arg28[%c0_47, %c0_48] : memref<1x32xf32, #tpu.memory_space<vmem>>, vector<1x32xf32>
    %c0_49 = arith.constant 0 : index
    %c0_50 = arith.constant 0 : index
    %25 = vector.load %arg29[%c0_49, %c0_50] : memref<32x32xf32, #tpu.memory_space<vmem>>, vector<32x32xf32>
    %c0_51 = arith.constant 0 : index
    %c0_52 = arith.constant 0 : index
    %26 = vector.load %arg30[%c0_51, %c0_52] : memref<1x32xf32, #tpu.memory_space<vmem>>, vector<1x32xf32>
    %c0_53 = arith.constant 0 : index
    %c0_54 = arith.constant 0 : index
    %27 = vector.load %arg31[%c0_53, %c0_54] : memref<32x32xf32, #tpu.memory_space<vmem>>, vector<32x32xf32>
    %c0_55 = arith.constant 0 : index
    %c0_56 = arith.constant 0 : index
    %28 = vector.load %arg32[%c0_55, %c0_56] : memref<1x32xf32, #tpu.memory_space<vmem>>, vector<1x32xf32>
    %c0_57 = arith.constant 0 : index
    %c0_58 = arith.constant 0 : index
    %29 = vector.load %arg33[%c0_57, %c0_58] : memref<32x32xf32, #tpu.memory_space<vmem>>, vector<32x32xf32>
    %c0_59 = arith.constant 0 : index
    %c0_60 = arith.constant 0 : index
    %30 = vector.load %arg34[%c0_59, %c0_60] : memref<1x32xf32, #tpu.memory_space<vmem>>, vector<1x32xf32>
    %c0_61 = arith.constant 0 : index
    %c0_62 = arith.constant 0 : index
    %31 = vector.load %arg35[%c0_61, %c0_62] : memref<32x32xf32, #tpu.memory_space<vmem>>, vector<32x32xf32>
    %c0_63 = arith.constant 0 : index
    %c0_64 = arith.constant 0 : index
    %32 = vector.load %arg36[%c0_63, %c0_64] : memref<1x32xf32, #tpu.memory_space<vmem>>, vector<1x32xf32>
    %c0_65 = arith.constant 0 : index
    %c0_66 = arith.constant 0 : index
    %33 = vector.load %arg37[%c0_65, %c0_66] : memref<32x32xf32, #tpu.memory_space<vmem>>, vector<32x32xf32>
    %c0_67 = arith.constant 0 : index
    %c0_68 = arith.constant 0 : index
    %34 = vector.load %arg38[%c0_67, %c0_68] : memref<1x32xf32, #tpu.memory_space<vmem>>, vector<1x32xf32>
    %c0_69 = arith.constant 0 : index
    %c0_70 = arith.constant 0 : index
    %35 = vector.load %arg39[%c0_69, %c0_70] : memref<1x32xf32, #tpu.memory_space<vmem>>, vector<1x32xf32>
    %c0_71 = arith.constant 0 : index
    %c0_72 = arith.constant 0 : index
    %36 = vector.load %arg40[%c0_71, %c0_72] : memref<32x32xf32, #tpu.memory_space<vmem>>, vector<32x32xf32>
    %c0_73 = arith.constant 0 : index
    %c0_74 = arith.constant 0 : index
    %37 = vector.load %arg41[%c0_73, %c0_74] : memref<32x32xf32, #tpu.memory_space<vmem>>, vector<32x32xf32>
    %c0_75 = arith.constant 0 : index
    %c0_76 = arith.constant 0 : index
    %38 = vector.load %arg42[%c0_75, %c0_76] : memref<32x32xf32, #tpu.memory_space<vmem>>, vector<32x32xf32>
    %c0_77 = arith.constant 0 : index
    %c0_78 = arith.constant 0 : index
    %39 = vector.load %arg43[%c0_77, %c0_78] : memref<32x32xf32, #tpu.memory_space<vmem>>, vector<32x32xf32>
    %c0_79 = arith.constant 0 : index
    %c0_80 = arith.constant 0 : index
    %40 = vector.load %arg44[%c0_79, %c0_80] : memref<1x32xf32, #tpu.memory_space<vmem>>, vector<1x32xf32>
    %c0_81 = arith.constant 0 : index
    %c0_82 = arith.constant 0 : index
    %41 = vector.load %arg45[%c0_81, %c0_82] : memref<1x32xf32, #tpu.memory_space<vmem>>, vector<1x32xf32>
    %c0_83 = arith.constant 0 : index
    %c0_84 = arith.constant 0 : index
    %42 = vector.load %arg46[%c0_83, %c0_84] : memref<32x32xf32, #tpu.memory_space<vmem>>, vector<32x32xf32>
    %c0_85 = arith.constant 0 : index
    %c0_86 = arith.constant 0 : index
    %43 = vector.load %arg47[%c0_85, %c0_86] : memref<32x32xf32, #tpu.memory_space<vmem>>, vector<32x32xf32>
    %c0_87 = arith.constant 0 : index
    %c0_88 = arith.constant 0 : index
    %44 = vector.load %arg48[%c0_87, %c0_88] : memref<32x32xf32, #tpu.memory_space<vmem>>, vector<32x32xf32>
    %c0_89 = arith.constant 0 : index
    %c0_90 = arith.constant 0 : index
    %45 = vector.load %arg49[%c0_89, %c0_90] : memref<32x32xf32, #tpu.memory_space<vmem>>, vector<32x32xf32>
    %c0_91 = arith.constant 0 : index
    %c0_92 = arith.constant 0 : index
    %46 = vector.load %arg50[%c0_91, %c0_92] : memref<1x32xf32, #tpu.memory_space<vmem>>, vector<1x32xf32>
    %c0_93 = arith.constant 0 : index
    %c0_94 = arith.constant 0 : index
    %47 = vector.load %arg51[%c0_93, %c0_94] : memref<32x32xf32, #tpu.memory_space<vmem>>, vector<32x32xf32>
    %c0_95 = arith.constant 0 : index
    %c0_96 = arith.constant 0 : index
    %48 = vector.load %arg52[%c0_95, %c0_96] : memref<1x48xf32, #tpu.memory_space<vmem>>, vector<1x48xf32>
    %c0_97 = arith.constant 0 : index
    %c0_98 = arith.constant 0 : index
    %49 = vector.load %arg53[%c0_97, %c0_98] : memref<1x48xf32, #tpu.memory_space<vmem>>, vector<1x48xf32>
    %c0_99 = arith.constant 0 : index
    %c0_100 = arith.constant 0 : index
    %50 = vector.load %arg54[%c0_99, %c0_100] : memref<16x48xf32, #tpu.memory_space<vmem>>, vector<16x48xf32>
    %c0_101 = arith.constant 0 : index
    %c0_102 = arith.constant 0 : index
    %51 = vector.load %arg55[%c0_101, %c0_102] : memref<32x48xf32, #tpu.memory_space<vmem>>, vector<32x48xf32>
    %c0_103 = arith.constant 0 : index
    %c0_104 = arith.constant 0 : index
    %52 = vector.load %arg56[%c0_103, %c0_104] : memref<1x48xf32, #tpu.memory_space<vmem>>, vector<1x48xf32>
    %c0_105 = arith.constant 0 : index
    %c0_106 = arith.constant 0 : index
    %53 = vector.load %arg57[%c0_105, %c0_106] : memref<1x48xf32, #tpu.memory_space<vmem>>, vector<1x48xf32>
    %c0_107 = arith.constant 0 : index
    %c0_108 = arith.constant 0 : index
    %54 = vector.load %arg58[%c0_107, %c0_108] : memref<16x48xf32, #tpu.memory_space<vmem>>, vector<16x48xf32>
    %c0_109 = arith.constant 0 : index
    %c0_110 = arith.constant 0 : index
    %55 = vector.load %arg59[%c0_109, %c0_110] : memref<32x48xf32, #tpu.memory_space<vmem>>, vector<32x48xf32>
    %c0_111 = arith.constant 0 : index
    %c0_112 = arith.constant 0 : index
    %56 = vector.load %arg60[%c0_111, %c0_112] : memref<1x32xf32, #tpu.memory_space<vmem>>, vector<1x32xf32>
    %c0_113 = arith.constant 0 : index
    %c0_114 = arith.constant 0 : index
    %57 = vector.load %arg61[%c0_113, %c0_114] : memref<32x32xf32, #tpu.memory_space<vmem>>, vector<32x32xf32>
    %c0_115 = arith.constant 0 : index
    %c0_116 = arith.constant 0 : index
    %58 = vector.load %arg62[%c0_115, %c0_116] : memref<1x32xf32, #tpu.memory_space<vmem>>, vector<1x32xf32>
    %c0_117 = arith.constant 0 : index
    %c0_118 = arith.constant 0 : index
    %59 = vector.load %arg63[%c0_117, %c0_118] : memref<64x32xf32, #tpu.memory_space<vmem>>, vector<64x32xf32>
    %c0_119 = arith.constant 0 : index
    %c0_120 = arith.constant 0 : index
    %60 = vector.load %arg0[%c0_119, %c0_120] : memref<16x32xf32, #tpu.memory_space<vmem>>, vector<16x32xf32>
    %c0_121 = arith.constant 0 : index
    %c0_122 = arith.constant 0 : index
    %61 = vector.load %arg1[%c0_121, %c0_122] : memref<8x32xf32, #tpu.memory_space<vmem>>, vector<8x32xf32>
    %c0_123 = arith.constant 0 : index
    %c0_124 = arith.constant 0 : index
    %62 = vector.load %arg2[%c0_123, %c0_124] : memref<16x32xf32, #tpu.memory_space<vmem>>, vector<16x32xf32>
    %c0_125 = arith.constant 0 : index
    %c0_126 = arith.constant 0 : index
    %63 = vector.load %arg3[%c0_125, %c0_126] : memref<8x32xf32, #tpu.memory_space<vmem>>, vector<8x32xf32>
    %64 = tpu.iota {dimensions = array<i32: 0>} : vector<16x16xi32>
    %65 = tpu.iota {dimensions = array<i32: 1>} : vector<16x16xi32>
    %66 = arith.cmpi eq, %64, %65 : vector<16x16xi32>
    %67 = arith.extui %66 : vector<16x16xi1> to vector<16x16xi32>
    %68 = arith.sitofp %67 : vector<16x16xi32> to vector<16x16xf32>
    %69 = arith.cmpi sle, %65, %64 : vector<16x16xi32>
    %70 = arith.extui %69 : vector<16x16xi1> to vector<16x16xi32>
    %71 = arith.sitofp %70 : vector<16x16xi32> to vector<16x16xf32>
    %c1_i32 = arith.constant 1 : i32
    %72 = vector.broadcast %c1_i32 : i32 to vector<16x16xi32>
    %73 = arith.subi %64, %72 : vector<16x16xi32>
    %74 = arith.cmpi eq, %65, %73 : vector<16x16xi32>
    %75 = arith.extui %74 : vector<16x16xi1> to vector<16x16xi32>
    %76 = arith.sitofp %75 : vector<16x16xi32> to vector<16x16xf32>
    %77 = tpu.iota {dimensions = array<i32: 1>} : vector<16x32xi32>
    %c27_i32 = arith.constant 27 : i32
    %78 = vector.broadcast %c27_i32 : i32 to vector<16x32xi32>
    %79 = arith.cmpi sge, %77, %78 : vector<16x32xi32>
    %cst = arith.constant -1.000000e+30 : f32
    %80 = vector.broadcast %cst : f32 to vector<16x32xf32>
    %81 = arith.select %79, %60, %80 : vector<16x32xi1>, vector<16x32xf32>
    %cst_127 = arith.constant dense<0xFF800000> : vector<16xf32>
    %82 = vector.multi_reduction <maximumf>, %81, %cst_127 [1] : vector<16x32xf32> to vector<16xf32>
    %83 = vector.shape_cast %82 : vector<16xf32> to vector<16x1xf32>
    %c27_i32_128 = arith.constant 27 : i32
    %84 = vector.broadcast %c27_i32_128 : i32 to vector<16x32xi32>
    %85 = arith.subi %77, %84 : vector<16x32xi32>
    %86 = arith.sitofp %85 : vector<16x32xi32> to vector<16x32xf32>
    %87 = vector.broadcast %83 : vector<16x1xf32> to vector<16x32xf32>
    %88 = arith.cmpf oeq, %81, %87 : vector<16x32xf32>
    %cst_129 = arith.constant 5.000000e+00 : f32
    %89 = vector.broadcast %cst_129 : f32 to vector<16x32xf32>
    %90 = arith.select %88, %86, %89 : vector<16x32xi1>, vector<16x32xf32>
    %cst_130 = arith.constant dense<0x7F800000> : vector<16xf32>
    %91 = vector.multi_reduction <minimumf>, %90, %cst_130 [1] : vector<16x32xf32> to vector<16xf32>
    %92 = vector.shape_cast %91 : vector<16xf32> to vector<16x1xf32>
    %93 = tpu.iota {dimensions = array<i32: 0>} : vector<16x1xi32>
    %94 = vector.broadcast %92 : vector<16x1xf32> to vector<16x16xf32>
    %95 = arith.mulf %94, %68 : vector<16x16xf32>
    %cst_131 = arith.constant dense<0.000000e+00> : vector<16xf32>
    %96 = vector.multi_reduction <add>, %95, %cst_131 [0] : vector<16x16xf32> to vector<16xf32>
    %97 = vector.shape_cast %96 : vector<16xf32> to vector<1x16xf32>
    %98 = vector.broadcast %97 : vector<1x16xf32> to vector<16x16xf32>
    %99 = arith.mulf %76, %98 : vector<16x16xf32>
    %cst_132 = arith.constant dense<0.000000e+00> : vector<16xf32>
    %100 = vector.multi_reduction <add>, %99, %cst_132 [1] : vector<16x16xf32> to vector<16xf32>
    %101 = vector.shape_cast %100 : vector<16xf32> to vector<16x1xf32>
    %c0_i32 = arith.constant 0 : i32
    %102 = vector.broadcast %c0_i32 : i32 to vector<16x1xi32>
    %103 = arith.cmpi sgt, %93, %102 : vector<16x1xi32>
    %104 = arith.cmpf one, %92, %101 : vector<16x1xf32>
    %105 = arith.andi %103, %104 : vector<16x1xi1>
    %cst_133 = arith.constant 1.000000e+00 : f32
    %cst_134 = arith.constant 0.000000e+00 : f32
    %106 = vector.broadcast %cst_133 : f32 to vector<16x1xf32>
    %107 = vector.broadcast %cst_134 : f32 to vector<16x1xf32>
    %108 = arith.select %105, %106, %107 : vector<16x1xi1>, vector<16x1xf32>
    %109 = vector.broadcast %108 : vector<16x1xf32> to vector<16x16xf32>
    %110 = arith.mulf %109, %68 : vector<16x16xf32>
    %cst_135 = arith.constant dense<0.000000e+00> : vector<16xf32>
    %111 = vector.multi_reduction <add>, %110, %cst_135 [0] : vector<16x16xf32> to vector<16xf32>
    %112 = vector.shape_cast %111 : vector<16xf32> to vector<1x16xf32>
    %113 = vector.broadcast %112 : vector<1x16xf32> to vector<16x16xf32>
    %114 = arith.mulf %71, %113 : vector<16x16xf32>
    %cst_136 = arith.constant dense<0.000000e+00> : vector<16xf32>
    %115 = vector.multi_reduction <add>, %114, %cst_136 [1] : vector<16x16xf32> to vector<16xf32>
    %116 = vector.shape_cast %115 : vector<16xf32> to vector<16x1xf32>
    %117 = vector.broadcast %116 : vector<16x1xf32> to vector<16x16xf32>
    %118 = arith.mulf %117, %68 : vector<16x16xf32>
    %cst_137 = arith.constant dense<0.000000e+00> : vector<16xf32>
    %119 = vector.multi_reduction <add>, %118, %cst_137 [0] : vector<16x16xf32> to vector<16xf32>
    %120 = vector.shape_cast %119 : vector<16xf32> to vector<1x16xf32>
    %121 = tpu.iota {dimensions = array<i32: 1>} : vector<16x16xi32>
    %122 = arith.sitofp %121 : vector<16x16xi32> to vector<16x16xf32>
    %123 = vector.broadcast %116 : vector<16x1xf32> to vector<16x16xf32>
    %124 = arith.cmpf oeq, %123, %122 : vector<16x16xf32>
    %125 = arith.extui %124 : vector<16x16xi1> to vector<16x16xi32>
    %126 = arith.sitofp %125 : vector<16x16xi32> to vector<16x16xf32>
    %127 = tpu.iota {dimensions = array<i32: 0>} : vector<16x16xi32>
    %128 = arith.sitofp %127 : vector<16x16xi32> to vector<16x16xf32>
    %129 = vector.broadcast %120 : vector<1x16xf32> to vector<16x16xf32>
    %130 = arith.cmpf oeq, %128, %129 : vector<16x16xf32>
    %131 = arith.extui %130 : vector<16x16xi1> to vector<16x16xi32>
    %132 = arith.sitofp %131 : vector<16x16xi32> to vector<16x16xf32>
    %cst_138 = arith.constant dense<0.000000e+00> : vector<16xf32>
    %133 = vector.multi_reduction <add>, %132, %cst_138 [1] : vector<16x16xf32> to vector<16xf32>
    %134 = vector.shape_cast %133 : vector<16xf32> to vector<16x1xf32>
    %cst_139 = arith.constant dense<0.000000e+00> : vector<16xf32>
    %135 = vector.multi_reduction <add>, %126, %cst_139 [0] : vector<16x16xf32> to vector<16xf32>
    %136 = vector.shape_cast %135 : vector<16xf32> to vector<1x16xf32>
    %cst_140 = arith.constant 5.000000e-01 : f32
    %137 = vector.broadcast %cst_140 : f32 to vector<16x1xf32>
    %138 = arith.cmpf ogt, %134, %137 : vector<16x1xf32>
    %139 = arith.extui %138 : vector<16x1xi1> to vector<16x1xi32>
    %140 = arith.sitofp %139 : vector<16x1xi32> to vector<16x1xf32>
    %cst_141 = arith.constant 5.000000e-01 : f32
    %141 = vector.broadcast %cst_141 : f32 to vector<1x16xf32>
    %142 = arith.cmpf ogt, %136, %141 : vector<1x16xf32>
    %cst_142 = arith.constant dense<0.000000e+00> : vector<16x32xf32>
    %143 = tpu.matmul %132, %60, %cst_142 {dimension_numbers = #tpu.dot_dimension_numbers<[1], [0], [0], [1], [0, 0, 1, 1], [], []>} : vector<16x16xf32>, vector<16x32xf32>, vector<16x32xf32> -> vector<16x32xf32>
    %cst_143 = arith.constant 1.000000e+00 : f32
    %144 = vector.broadcast %cst_143 : f32 to vector<16x1xf32>
    %145 = arith.maximumf %134, %144 : vector<16x1xf32>
    %146 = vector.broadcast %145 : vector<16x1xf32> to vector<16x32xf32>
    %147 = arith.divf %143, %146 : vector<16x32xf32>
    %148 = vector.broadcast %136 : vector<1x16xf32> to vector<16x16xf32>
    %149 = arith.mulf %71, %148 : vector<16x16xf32>
    %cst_144 = arith.constant dense<0.000000e+00> : vector<16xf32>
    %150 = vector.multi_reduction <add>, %149, %cst_144 [1] : vector<16x16xf32> to vector<16xf32>
    %151 = vector.shape_cast %150 : vector<16xf32> to vector<16x1xf32>
    %cst_145 = arith.constant 2.000000e+00 : f32
    %152 = vector.broadcast %cst_145 : f32 to vector<16x1xf32>
    %153 = arith.mulf %152, %151 : vector<16x1xf32>
    %154 = arith.subf %153, %134 : vector<16x1xf32>
    %cst_146 = arith.constant 1.000000e+00 : f32
    %155 = vector.broadcast %cst_146 : f32 to vector<16x1xf32>
    %156 = arith.subf %154, %155 : vector<16x1xf32>
    %cst_147 = arith.constant 5.000000e-01 : f32
    %157 = vector.broadcast %cst_147 : f32 to vector<16x1xf32>
    %158 = arith.mulf %156, %157 : vector<16x1xf32>
    %159 = math.floor %158 : vector<16x1xf32>
    %160 = tpu.iota {dimensions = array<i32: 1>} : vector<16x16xi32>
    %161 = arith.sitofp %160 : vector<16x16xi32> to vector<16x16xf32>
    %162 = vector.broadcast %159 : vector<16x1xf32> to vector<16x16xf32>
    %163 = arith.cmpf oeq, %162, %161 : vector<16x16xf32>
    %164 = arith.extui %163 : vector<16x16xi1> to vector<16x16xi32>
    %165 = arith.sitofp %164 : vector<16x16xi32> to vector<16x16xf32>
    %cst_148 = arith.constant dense<0.000000e+00> : vector<16x32xf32>
    %166 = tpu.matmul %165, %62, %cst_148 {dimension_numbers = #tpu.dot_dimension_numbers<[1], [0], [0], [1], [0, 0, 1, 1], [], []>} : vector<16x16xf32>, vector<16x32xf32>, vector<16x32xf32> -> vector<16x32xf32>
    %c0_149 = arith.constant 0 : index
    %c0_150 = arith.constant 0 : index
    %167 = vector.load %arg68[%c0_149, %c0_150] : memref<16x1xf32, #tpu.memory_space<vmem>>, vector<16x1xf32>
    tpu.vector_store %arg68[%c0_149, %c0_150], %140 {strides = array<i32>} : memref<16x1xf32, #tpu.memory_space<vmem>>, vector<16x1xf32>,
    %cst_151 = arith.constant dense<0.000000e+00> : vector<16x48xf32>
    %168 = tpu.matmul %147, %55, %cst_151 {dimension_numbers = #tpu.dot_dimension_numbers<[1], [0], [0], [1], [0, 0, 1, 1], [], []>} : vector<16x32xf32>, vector<32x48xf32>, vector<16x48xf32> -> vector<16x48xf32>
    %169 = vector.broadcast %53 : vector<1x48xf32> to vector<16x48xf32>
    %170 = arith.addf %168, %169 : vector<16x48xf32>
    %c0_152 = arith.constant 0 : index
    %c0_153 = arith.constant 0 : index
    %171 = vector.load %arg66[%c0_152, %c0_153] : memref<16x48xf32, #tpu.memory_space<vmem>>, vector<16x48xf32>
    tpu.vector_store %arg66[%c0_152, %c0_153], %170 {strides = array<i32>} : memref<16x48xf32, #tpu.memory_space<vmem>>, vector<16x48xf32>,
    %cst_154 = arith.constant dense<0.000000e+00> : vector<16x48xf32>
    %172 = tpu.matmul %147, %51, %cst_154 {dimension_numbers = #tpu.dot_dimension_numbers<[1], [0], [0], [1], [0, 0, 1, 1], [], []>} : vector<16x32xf32>, vector<32x48xf32>, vector<16x48xf32> -> vector<16x48xf32>
    %173 = vector.broadcast %49 : vector<1x48xf32> to vector<16x48xf32>
    %174 = arith.addf %172, %173 : vector<16x48xf32>
    %c0_155 = arith.constant 0 : index
    %c0_156 = arith.constant 0 : index
    %175 = vector.load %arg67[%c0_155, %c0_156] : memref<16x48xf32, #tpu.memory_space<vmem>>, vector<16x48xf32>
    tpu.vector_store %arg67[%c0_155, %c0_156], %174 {strides = array<i32>} : memref<16x48xf32, #tpu.memory_space<vmem>>, vector<16x48xf32>,
    %cst_157 = arith.constant 0.000000e+00 : f32
    %176 = vector.broadcast %cst_157 : f32 to vector<1x16xf32>
    %c0_i32_158 = arith.constant 0 : i32
    %c16_i32 = arith.constant 16 : i32
    %177 = arith.addi %c0_i32_158, %c16_i32 : i32
    %c1_i32_159 = arith.constant 1 : i32
    %178 = scf.for %arg71 = %c0_i32_158 to %177 step %c1_i32_159 iter_args(%arg72 = %176) -> (vector<1x16xf32>)  : i32 {
      %541 = arith.index_cast %arg71 : i32 to index
      %c0_272 = arith.constant 0 : index
      %542 = vector.load %arg66[%541, %c0_272] : memref<16x48xf32, #tpu.memory_space<vmem>>, vector<1x48xf32>
      %543 = arith.index_cast %arg71 : i32 to index
      %c0_273 = arith.constant 0 : index
      %544 = vector.load %arg68[%543, %c0_273] : memref<16x1xf32, #tpu.memory_space<vmem>>, vector<1x1xf32>
      %cst_274 = arith.constant dense<0.000000e+00> : vector<1x48xf32>
      %545 = tpu.matmul %arg72, %54, %cst_274 {dimension_numbers = #tpu.dot_dimension_numbers<[1], [0], [0], [1], [0, 0, 1, 1], [], []>} : vector<1x16xf32>, vector<16x48xf32>, vector<1x48xf32> -> vector<1x48xf32>
      %546 = arith.addf %545, %52 : vector<1x48xf32>
      %547 = vector.extract_strided_slice %542 {offsets = [0, 0], sizes = [1, 16], strides = [1, 1]} : vector<1x48xf32> to vector<1x16xf32>
      %548 = vector.extract_strided_slice %546 {offsets = [0, 0], sizes = [1, 16], strides = [1, 1]} : vector<1x48xf32> to vector<1x16xf32>
      %549 = arith.addf %547, %548 : vector<1x16xf32>
      %550 = arith.negf %549 : vector<1x16xf32>
      %551 = math.exp %550 : vector<1x16xf32>
      %cst_275 = arith.constant 1.000000e+00 : f32
      %552 = vector.broadcast %cst_275 : f32 to vector<1x16xf32>
      %553 = arith.addf %552, %551 : vector<1x16xf32>
      %554 = arith.divf %552, %553 : vector<1x16xf32>
      %555 = vector.extract_strided_slice %542 {offsets = [0, 16], sizes = [1, 16], strides = [1, 1]} : vector<1x48xf32> to vector<1x16xf32>
      %556 = vector.extract_strided_slice %546 {offsets = [0, 16], sizes = [1, 16], strides = [1, 1]} : vector<1x48xf32> to vector<1x16xf32>
      %557 = arith.addf %555, %556 : vector<1x16xf32>
      %558 = arith.negf %557 : vector<1x16xf32>
      %559 = math.exp %558 : vector<1x16xf32>
      %cst_276 = arith.constant 1.000000e+00 : f32
      %560 = vector.broadcast %cst_276 : f32 to vector<1x16xf32>
      %561 = arith.addf %560, %559 : vector<1x16xf32>
      %562 = arith.divf %560, %561 : vector<1x16xf32>
      %563 = vector.extract_strided_slice %542 {offsets = [0, 32], sizes = [1, 16], strides = [1, 1]} : vector<1x48xf32> to vector<1x16xf32>
      %564 = vector.extract_strided_slice %546 {offsets = [0, 32], sizes = [1, 16], strides = [1, 1]} : vector<1x48xf32> to vector<1x16xf32>
      %565 = arith.mulf %554, %564 : vector<1x16xf32>
      %566 = arith.addf %563, %565 : vector<1x16xf32>
      %567 = math.tanh %566 : vector<1x16xf32>
      %cst_277 = arith.constant 1.000000e+00 : f32
      %568 = vector.broadcast %cst_277 : f32 to vector<1x16xf32>
      %569 = arith.subf %568, %562 : vector<1x16xf32>
      %570 = arith.mulf %569, %567 : vector<1x16xf32>
      %571 = arith.mulf %562, %arg72 : vector<1x16xf32>
      %572 = arith.addf %570, %571 : vector<1x16xf32>
      %cst_278 = arith.constant 5.000000e-01 : f32
      %573 = vector.broadcast %cst_278 : f32 to vector<1x1xf32>
      %574 = arith.cmpf ogt, %544, %573 : vector<1x1xf32>
      %575 = vector.shape_cast %574 : vector<1x1xi1> to vector<1x1xi1>
      %576 = vector.broadcast %575 : vector<1x1xi1> to vector<1x16xi1>
      %577 = arith.select %576, %572, %arg72 : vector<1x16xi1>, vector<1x16xf32>
      %578 = arith.index_cast %arg71 : i32 to index
      %c0_279 = arith.constant 0 : index
      %579 = vector.load %arg69[%578, %c0_279] : memref<16x16xf32, #tpu.memory_space<vmem>>, vector<1x16xf32>
      tpu.vector_store %arg69[%578, %c0_279], %577 {strides = array<i32>} : memref<16x16xf32, #tpu.memory_space<vmem>>, vector<1x16xf32>,
      scf.yield %577 : vector<1x16xf32>
    }
    %c16_i32_160 = arith.constant 16 : i32
    %cst_161 = arith.constant 0.000000e+00 : f32
    %179 = vector.broadcast %cst_161 : f32 to vector<1x16xf32>
    %c0_i32_162 = arith.constant 0 : i32
    %c16_i32_163 = arith.constant 16 : i32
    %180 = arith.addi %c0_i32_162, %c16_i32_163 : i32
    %c1_i32_164 = arith.constant 1 : i32
    %181 = scf.for %arg71 = %c0_i32_162 to %180 step %c1_i32_164 iter_args(%arg72 = %179) -> (vector<1x16xf32>)  : i32 {
      %c15_i32 = arith.constant 15 : i32
      %541 = arith.subi %c15_i32, %arg71 : i32
      %542 = arith.index_cast %541 : i32 to index
      %c0_272 = arith.constant 0 : index
      %543 = vector.load %arg67[%542, %c0_272] : memref<16x48xf32, #tpu.memory_space<vmem>>, vector<1x48xf32>
      %544 = arith.index_cast %541 : i32 to index
      %c0_273 = arith.constant 0 : index
      %545 = vector.load %arg68[%544, %c0_273] : memref<16x1xf32, #tpu.memory_space<vmem>>, vector<1x1xf32>
      %cst_274 = arith.constant dense<0.000000e+00> : vector<1x48xf32>
      %546 = tpu.matmul %arg72, %50, %cst_274 {dimension_numbers = #tpu.dot_dimension_numbers<[1], [0], [0], [1], [0, 0, 1, 1], [], []>} : vector<1x16xf32>, vector<16x48xf32>, vector<1x48xf32> -> vector<1x48xf32>
      %547 = arith.addf %546, %48 : vector<1x48xf32>
      %548 = vector.extract_strided_slice %543 {offsets = [0, 0], sizes = [1, 16], strides = [1, 1]} : vector<1x48xf32> to vector<1x16xf32>
      %549 = vector.extract_strided_slice %547 {offsets = [0, 0], sizes = [1, 16], strides = [1, 1]} : vector<1x48xf32> to vector<1x16xf32>
      %550 = arith.addf %548, %549 : vector<1x16xf32>
      %551 = arith.negf %550 : vector<1x16xf32>
      %552 = math.exp %551 : vector<1x16xf32>
      %cst_275 = arith.constant 1.000000e+00 : f32
      %553 = vector.broadcast %cst_275 : f32 to vector<1x16xf32>
      %554 = arith.addf %553, %552 : vector<1x16xf32>
      %555 = arith.divf %553, %554 : vector<1x16xf32>
      %556 = vector.extract_strided_slice %543 {offsets = [0, 16], sizes = [1, 16], strides = [1, 1]} : vector<1x48xf32> to vector<1x16xf32>
      %557 = vector.extract_strided_slice %547 {offsets = [0, 16], sizes = [1, 16], strides = [1, 1]} : vector<1x48xf32> to vector<1x16xf32>
      %558 = arith.addf %556, %557 : vector<1x16xf32>
      %559 = arith.negf %558 : vector<1x16xf32>
      %560 = math.exp %559 : vector<1x16xf32>
      %cst_276 = arith.constant 1.000000e+00 : f32
      %561 = vector.broadcast %cst_276 : f32 to vector<1x16xf32>
      %562 = arith.addf %561, %560 : vector<1x16xf32>
      %563 = arith.divf %561, %562 : vector<1x16xf32>
      %564 = vector.extract_strided_slice %543 {offsets = [0, 32], sizes = [1, 16], strides = [1, 1]} : vector<1x48xf32> to vector<1x16xf32>
      %565 = vector.extract_strided_slice %547 {offsets = [0, 32], sizes = [1, 16], strides = [1, 1]} : vector<1x48xf32> to vector<1x16xf32>
      %566 = arith.mulf %555, %565 : vector<1x16xf32>
      %567 = arith.addf %564, %566 : vector<1x16xf32>
      %568 = math.tanh %567 : vector<1x16xf32>
      %cst_277 = arith.constant 1.000000e+00 : f32
      %569 = vector.broadcast %cst_277 : f32 to vector<1x16xf32>
      %570 = arith.subf %569, %563 : vector<1x16xf32>
      %571 = arith.mulf %570, %568 : vector<1x16xf32>
      %572 = arith.mulf %563, %arg72 : vector<1x16xf32>
      %573 = arith.addf %571, %572 : vector<1x16xf32>
      %cst_278 = arith.constant 5.000000e-01 : f32
      %574 = vector.broadcast %cst_278 : f32 to vector<1x1xf32>
      %575 = arith.cmpf ogt, %545, %574 : vector<1x1xf32>
      %576 = vector.shape_cast %575 : vector<1x1xi1> to vector<1x1xi1>
      %577 = vector.broadcast %576 : vector<1x1xi1> to vector<1x16xi1>
      %578 = arith.select %577, %573, %arg72 : vector<1x16xi1>, vector<1x16xf32>
      %579 = arith.index_cast %541 : i32 to index
      %c0_279 = arith.constant 0 : index
      %580 = vector.load %arg70[%579, %c0_279] : memref<16x16xf32, #tpu.memory_space<vmem>>, vector<1x16xf32>
      tpu.vector_store %arg70[%579, %c0_279], %578 {strides = array<i32>} : memref<16x16xf32, #tpu.memory_space<vmem>>, vector<1x16xf32>,
      scf.yield %578 : vector<1x16xf32>
    }
    %c16_i32_165 = arith.constant 16 : i32
    %c0_166 = arith.constant 0 : index
    %c0_167 = arith.constant 0 : index
    %182 = vector.load %arg69[%c0_166, %c0_167] : memref<16x16xf32, #tpu.memory_space<vmem>>, vector<16x16xf32>
    %c0_168 = arith.constant 0 : index
    %c0_169 = arith.constant 0 : index
    %183 = vector.load %arg70[%c0_168, %c0_169] : memref<16x16xf32, #tpu.memory_space<vmem>>, vector<16x16xf32>
    %184 = tpu.concatenate %182, %183 in 1 : vector<16x16xf32>, vector<16x16xf32> -> vector<16x32xf32>
    %cst_170 = arith.constant 0.000000e+00 : f32
    %185 = vector.broadcast %cst_170 : f32 to vector<16x32xf32>
    %186 = arith.maximumf %184, %185 : vector<16x32xf32>
    %cst_171 = arith.constant dense<0.000000e+00> : vector<16x32xf32>
    %187 = tpu.matmul %186, %57, %cst_171 {dimension_numbers = #tpu.dot_dimension_numbers<[1], [0], [0], [1], [0, 0, 1, 1], [], []>} : vector<16x32xf32>, vector<32x32xf32>, vector<16x32xf32> -> vector<16x32xf32>
    %188 = vector.broadcast %56 : vector<1x32xf32> to vector<16x32xf32>
    %189 = arith.addf %187, %188 : vector<16x32xf32>
    %190 = tpu.iota {dimensions = array<i32: 1>} : vector<16x32xi32>
    %c27_i32_172 = arith.constant 27 : i32
    %191 = vector.broadcast %c27_i32_172 : i32 to vector<16x32xi32>
    %192 = arith.cmpi sge, %190, %191 : vector<16x32xi32>
    %cst_173 = arith.constant -1.000000e+30 : f32
    %193 = vector.broadcast %cst_173 : f32 to vector<16x32xf32>
    %194 = arith.select %192, %189, %193 : vector<16x32xi1>, vector<16x32xf32>
    %cst_174 = arith.constant dense<0xFF800000> : vector<16xf32>
    %195 = vector.multi_reduction <maximumf>, %194, %cst_174 [1] : vector<16x32xf32> to vector<16xf32>
    %196 = vector.shape_cast %195 : vector<16xf32> to vector<16x1xf32>
    %197 = vector.broadcast %196 : vector<16x1xf32> to vector<16x32xf32>
    %198 = arith.subf %189, %197 : vector<16x32xf32>
    %199 = arith.select %192, %198, %193 : vector<16x32xi1>, vector<16x32xf32>
    %200 = math.exp %199 : vector<16x32xf32>
    %cst_175 = arith.constant dense<0.000000e+00> : vector<16xf32>
    %201 = vector.multi_reduction <add>, %200, %cst_175 [1] : vector<16x32xf32> to vector<16xf32>
    %202 = vector.shape_cast %201 : vector<16xf32> to vector<16x1xf32>
    %203 = vector.broadcast %202 : vector<16x1xf32> to vector<16x32xf32>
    %204 = arith.divf %200, %203 : vector<16x32xf32>
    %205 = arith.select %192, %204, %189 : vector<16x32xi1>, vector<16x32xf32>
    %206 = arith.addf %61, %63 : vector<8x32xf32>
    %cst_176 = arith.constant dense<0.000000e+00> : vector<8x32xf32>
    %207 = tpu.matmul %206, %31, %cst_176 {dimension_numbers = #tpu.dot_dimension_numbers<[1], [0], [0], [1], [0, 0, 1, 1], [], []>} : vector<8x32xf32>, vector<32x32xf32>, vector<8x32xf32> -> vector<8x32xf32>
    %208 = vector.broadcast %30 : vector<1x32xf32> to vector<8x32xf32>
    %209 = arith.addf %207, %208 : vector<8x32xf32>
    %210 = arith.addf %205, %166 : vector<16x32xf32>
    %cst_177 = arith.constant dense<0.000000e+00> : vector<16x32xf32>
    %211 = tpu.matmul %210, %27, %cst_177 {dimension_numbers = #tpu.dot_dimension_numbers<[1], [0], [0], [1], [0, 0, 1, 1], [], []>} : vector<16x32xf32>, vector<32x32xf32>, vector<16x32xf32> -> vector<16x32xf32>
    %212 = vector.broadcast %26 : vector<1x32xf32> to vector<16x32xf32>
    %213 = arith.addf %211, %212 : vector<16x32xf32>
    %cst_178 = arith.constant dense<0.000000e+00> : vector<16x32xf32>
    %214 = tpu.matmul %205, %33, %cst_178 {dimension_numbers = #tpu.dot_dimension_numbers<[1], [0], [0], [1], [0, 0, 1, 1], [], []>} : vector<16x32xf32>, vector<32x32xf32>, vector<16x32xf32> -> vector<16x32xf32>
    %215 = vector.broadcast %32 : vector<1x32xf32> to vector<16x32xf32>
    %216 = arith.addf %214, %215 : vector<16x32xf32>
    %cst_179 = arith.constant dense<0.000000e+00> : vector<8x16xf32>
    %217 = tpu.matmul %209, %213, %cst_179 {dimension_numbers = #tpu.dot_dimension_numbers<[1], [1], [0], [0], [0, 0, 1, 0], [], []>} : vector<8x32xf32>, vector<16x32xf32>, vector<8x16xf32> -> vector<8x16xf32>
    %cst_180 = arith.constant 0.176776692 : f32
    %218 = vector.broadcast %cst_180 : f32 to vector<8x16xf32>
    %219 = arith.mulf %217, %218 : vector<8x16xf32>
    %cst_181 = arith.constant -1.000000e+30 : f32
    %220 = vector.shape_cast %142 : vector<1x16xi1> to vector<1x16xi1>
    %221 = vector.broadcast %220 : vector<1x16xi1> to vector<8x16xi1>
    %222 = vector.broadcast %cst_181 : f32 to vector<8x16xf32>
    %223 = arith.select %221, %219, %222 : vector<8x16xi1>, vector<8x16xf32>
    %cst_182 = arith.constant dense<0xFF800000> : vector<8xf32>
    %224 = vector.multi_reduction <maximumf>, %223, %cst_182 [1] : vector<8x16xf32> to vector<8xf32>
    %225 = vector.shape_cast %224 : vector<8xf32> to vector<8x1xf32>
    %226 = vector.broadcast %225 : vector<8x1xf32> to vector<8x16xf32>
    %227 = arith.subf %223, %226 : vector<8x16xf32>
    %228 = math.exp %227 : vector<8x16xf32>
    %cst_183 = arith.constant dense<0.000000e+00> : vector<8xf32>
    %229 = vector.multi_reduction <add>, %228, %cst_183 [1] : vector<8x16xf32> to vector<8xf32>
    %230 = vector.shape_cast %229 : vector<8xf32> to vector<8x1xf32>
    %231 = vector.broadcast %230 : vector<8x1xf32> to vector<8x16xf32>
    %232 = arith.divf %228, %231 : vector<8x16xf32>
    %cst_184 = arith.constant dense<0.000000e+00> : vector<8x32xf32>
    %233 = tpu.matmul %232, %216, %cst_184 {dimension_numbers = #tpu.dot_dimension_numbers<[1], [0], [0], [1], [0, 0, 1, 1], [], []>} : vector<8x16xf32>, vector<16x32xf32>, vector<8x32xf32> -> vector<8x32xf32>
    %cst_185 = arith.constant dense<0.000000e+00> : vector<8x32xf32>
    %234 = tpu.matmul %233, %29, %cst_185 {dimension_numbers = #tpu.dot_dimension_numbers<[1], [0], [0], [1], [0, 0, 1, 1], [], []>} : vector<8x32xf32>, vector<32x32xf32>, vector<8x32xf32> -> vector<8x32xf32>
    %235 = vector.broadcast %28 : vector<1x32xf32> to vector<8x32xf32>
    %236 = arith.addf %234, %235 : vector<8x32xf32>
    %237 = tpu.iota {dimensions = array<i32: 1>} : vector<1x32xi32>
    %238 = arith.addf %236, %63 : vector<8x32xf32>
    %cst_186 = arith.constant dense<0.000000e+00> : vector<8x32xf32>
    %239 = tpu.matmul %238, %21, %cst_186 {dimension_numbers = #tpu.dot_dimension_numbers<[1], [0], [0], [1], [0, 0, 1, 1], [], []>} : vector<8x32xf32>, vector<32x32xf32>, vector<8x32xf32> -> vector<8x32xf32>
    %240 = vector.broadcast %20 : vector<1x32xf32> to vector<8x32xf32>
    %241 = arith.addf %239, %240 : vector<8x32xf32>
    %cst_187 = arith.constant dense<0.000000e+00> : vector<8x32xf32>
    %242 = tpu.matmul %238, %13, %cst_187 {dimension_numbers = #tpu.dot_dimension_numbers<[1], [0], [0], [1], [0, 0, 1, 1], [], []>} : vector<8x32xf32>, vector<32x32xf32>, vector<8x32xf32> -> vector<8x32xf32>
    %243 = vector.broadcast %12 : vector<1x32xf32> to vector<8x32xf32>
    %244 = arith.addf %242, %243 : vector<8x32xf32>
    %cst_188 = arith.constant dense<0.000000e+00> : vector<8x32xf32>
    %245 = tpu.matmul %236, %23, %cst_188 {dimension_numbers = #tpu.dot_dimension_numbers<[1], [0], [0], [1], [0, 0, 1, 1], [], []>} : vector<8x32xf32>, vector<32x32xf32>, vector<8x32xf32> -> vector<8x32xf32>
    %246 = vector.broadcast %22 : vector<1x32xf32> to vector<8x32xf32>
    %247 = arith.addf %245, %246 : vector<8x32xf32>
    %cst_189 = arith.constant 0.000000e+00 : f32
    %248 = vector.broadcast %cst_189 : f32 to vector<8x32xf32>
    %c0_i32_190 = arith.constant 0 : i32
    %249 = vector.broadcast %c0_i32_190 : i32 to vector<1x32xi32>
    %250 = arith.cmpi sge, %237, %249 : vector<1x32xi32>
    %c8_i32 = arith.constant 8 : i32
    %251 = vector.broadcast %c8_i32 : i32 to vector<1x32xi32>
    %252 = arith.cmpi slt, %237, %251 : vector<1x32xi32>
    %253 = arith.andi %250, %252 : vector<1x32xi1>
    %254 = arith.extui %253 : vector<1x32xi1> to vector<1x32xi32>
    %255 = arith.sitofp %254 : vector<1x32xi32> to vector<1x32xf32>
    %256 = vector.broadcast %255 : vector<1x32xf32> to vector<8x32xf32>
    %257 = arith.mulf %241, %256 : vector<8x32xf32>
    %258 = vector.broadcast %255 : vector<1x32xf32> to vector<8x32xf32>
    %259 = arith.mulf %244, %258 : vector<8x32xf32>
    %cst_191 = arith.constant dense<0.000000e+00> : vector<8x8xf32>
    %260 = tpu.matmul %257, %259, %cst_191 {dimension_numbers = #tpu.dot_dimension_numbers<[1], [1], [0], [0], [0, 0, 1, 0], [], []>} : vector<8x32xf32>, vector<8x32xf32>, vector<8x8xf32> -> vector<8x8xf32>
    %cst_192 = arith.constant 0.353553385 : f32
    %261 = vector.broadcast %cst_192 : f32 to vector<8x8xf32>
    %262 = arith.mulf %260, %261 : vector<8x8xf32>
    %cst_193 = arith.constant dense<0xFF800000> : vector<8xf32>
    %263 = vector.multi_reduction <maximumf>, %262, %cst_193 [1] : vector<8x8xf32> to vector<8xf32>
    %264 = vector.shape_cast %263 : vector<8xf32> to vector<8x1xf32>
    %265 = vector.broadcast %264 : vector<8x1xf32> to vector<8x8xf32>
    %266 = arith.subf %262, %265 : vector<8x8xf32>
    %267 = math.exp %266 : vector<8x8xf32>
    %cst_194 = arith.constant dense<0.000000e+00> : vector<8xf32>
    %268 = vector.multi_reduction <add>, %267, %cst_194 [1] : vector<8x8xf32> to vector<8xf32>
    %269 = vector.shape_cast %268 : vector<8xf32> to vector<8x1xf32>
    %270 = vector.broadcast %269 : vector<8x1xf32> to vector<8x8xf32>
    %271 = arith.divf %267, %270 : vector<8x8xf32>
    %272 = vector.broadcast %255 : vector<1x32xf32> to vector<8x32xf32>
    %273 = arith.mulf %247, %272 : vector<8x32xf32>
    %cst_195 = arith.constant dense<0.000000e+00> : vector<8x32xf32>
    %274 = tpu.matmul %271, %273, %cst_195 {dimension_numbers = #tpu.dot_dimension_numbers<[1], [0], [0], [1], [0, 0, 1, 1], [], []>} : vector<8x8xf32>, vector<8x32xf32>, vector<8x32xf32> -> vector<8x32xf32>
    %275 = arith.addf %248, %274 : vector<8x32xf32>
    %c8_i32_196 = arith.constant 8 : i32
    %276 = vector.broadcast %c8_i32_196 : i32 to vector<1x32xi32>
    %277 = arith.cmpi sge, %237, %276 : vector<1x32xi32>
    %c16_i32_197 = arith.constant 16 : i32
    %278 = vector.broadcast %c16_i32_197 : i32 to vector<1x32xi32>
    %279 = arith.cmpi slt, %237, %278 : vector<1x32xi32>
    %280 = arith.andi %277, %279 : vector<1x32xi1>
    %281 = arith.extui %280 : vector<1x32xi1> to vector<1x32xi32>
    %282 = arith.sitofp %281 : vector<1x32xi32> to vector<1x32xf32>
    %283 = vector.broadcast %282 : vector<1x32xf32> to vector<8x32xf32>
    %284 = arith.mulf %241, %283 : vector<8x32xf32>
    %285 = vector.broadcast %282 : vector<1x32xf32> to vector<8x32xf32>
    %286 = arith.mulf %244, %285 : vector<8x32xf32>
    %cst_198 = arith.constant dense<0.000000e+00> : vector<8x8xf32>
    %287 = tpu.matmul %284, %286, %cst_198 {dimension_numbers = #tpu.dot_dimension_numbers<[1], [1], [0], [0], [0, 0, 1, 0], [], []>} : vector<8x32xf32>, vector<8x32xf32>, vector<8x8xf32> -> vector<8x8xf32>
    %cst_199 = arith.constant 0.353553385 : f32
    %288 = vector.broadcast %cst_199 : f32 to vector<8x8xf32>
    %289 = arith.mulf %287, %288 : vector<8x8xf32>
    %cst_200 = arith.constant dense<0xFF800000> : vector<8xf32>
    %290 = vector.multi_reduction <maximumf>, %289, %cst_200 [1] : vector<8x8xf32> to vector<8xf32>
    %291 = vector.shape_cast %290 : vector<8xf32> to vector<8x1xf32>
    %292 = vector.broadcast %291 : vector<8x1xf32> to vector<8x8xf32>
    %293 = arith.subf %289, %292 : vector<8x8xf32>
    %294 = math.exp %293 : vector<8x8xf32>
    %cst_201 = arith.constant dense<0.000000e+00> : vector<8xf32>
    %295 = vector.multi_reduction <add>, %294, %cst_201 [1] : vector<8x8xf32> to vector<8xf32>
    %296 = vector.shape_cast %295 : vector<8xf32> to vector<8x1xf32>
    %297 = vector.broadcast %296 : vector<8x1xf32> to vector<8x8xf32>
    %298 = arith.divf %294, %297 : vector<8x8xf32>
    %299 = vector.broadcast %282 : vector<1x32xf32> to vector<8x32xf32>
    %300 = arith.mulf %247, %299 : vector<8x32xf32>
    %cst_202 = arith.constant dense<0.000000e+00> : vector<8x32xf32>
    %301 = tpu.matmul %298, %300, %cst_202 {dimension_numbers = #tpu.dot_dimension_numbers<[1], [0], [0], [1], [0, 0, 1, 1], [], []>} : vector<8x8xf32>, vector<8x32xf32>, vector<8x32xf32> -> vector<8x32xf32>
    %302 = arith.addf %275, %301 : vector<8x32xf32>
    %c16_i32_203 = arith.constant 16 : i32
    %303 = vector.broadcast %c16_i32_203 : i32 to vector<1x32xi32>
    %304 = arith.cmpi sge, %237, %303 : vector<1x32xi32>
    %c24_i32 = arith.constant 24 : i32
    %305 = vector.broadcast %c24_i32 : i32 to vector<1x32xi32>
    %306 = arith.cmpi slt, %237, %305 : vector<1x32xi32>
    %307 = arith.andi %304, %306 : vector<1x32xi1>
    %308 = arith.extui %307 : vector<1x32xi1> to vector<1x32xi32>
    %309 = arith.sitofp %308 : vector<1x32xi32> to vector<1x32xf32>
    %310 = vector.broadcast %309 : vector<1x32xf32> to vector<8x32xf32>
    %311 = arith.mulf %241, %310 : vector<8x32xf32>
    %312 = vector.broadcast %309 : vector<1x32xf32> to vector<8x32xf32>
    %313 = arith.mulf %244, %312 : vector<8x32xf32>
    %cst_204 = arith.constant dense<0.000000e+00> : vector<8x8xf32>
    %314 = tpu.matmul %311, %313, %cst_204 {dimension_numbers = #tpu.dot_dimension_numbers<[1], [1], [0], [0], [0, 0, 1, 0], [], []>} : vector<8x32xf32>, vector<8x32xf32>, vector<8x8xf32> -> vector<8x8xf32>
    %cst_205 = arith.constant 0.353553385 : f32
    %315 = vector.broadcast %cst_205 : f32 to vector<8x8xf32>
    %316 = arith.mulf %314, %315 : vector<8x8xf32>
    %cst_206 = arith.constant dense<0xFF800000> : vector<8xf32>
    %317 = vector.multi_reduction <maximumf>, %316, %cst_206 [1] : vector<8x8xf32> to vector<8xf32>
    %318 = vector.shape_cast %317 : vector<8xf32> to vector<8x1xf32>
    %319 = vector.broadcast %318 : vector<8x1xf32> to vector<8x8xf32>
    %320 = arith.subf %316, %319 : vector<8x8xf32>
    %321 = math.exp %320 : vector<8x8xf32>
    %cst_207 = arith.constant dense<0.000000e+00> : vector<8xf32>
    %322 = vector.multi_reduction <add>, %321, %cst_207 [1] : vector<8x8xf32> to vector<8xf32>
    %323 = vector.shape_cast %322 : vector<8xf32> to vector<8x1xf32>
    %324 = vector.broadcast %323 : vector<8x1xf32> to vector<8x8xf32>
    %325 = arith.divf %321, %324 : vector<8x8xf32>
    %326 = vector.broadcast %309 : vector<1x32xf32> to vector<8x32xf32>
    %327 = arith.mulf %247, %326 : vector<8x32xf32>
    %cst_208 = arith.constant dense<0.000000e+00> : vector<8x32xf32>
    %328 = tpu.matmul %325, %327, %cst_208 {dimension_numbers = #tpu.dot_dimension_numbers<[1], [0], [0], [1], [0, 0, 1, 1], [], []>} : vector<8x8xf32>, vector<8x32xf32>, vector<8x32xf32> -> vector<8x32xf32>
    %329 = arith.addf %302, %328 : vector<8x32xf32>
    %c24_i32_209 = arith.constant 24 : i32
    %330 = vector.broadcast %c24_i32_209 : i32 to vector<1x32xi32>
    %331 = arith.cmpi sge, %237, %330 : vector<1x32xi32>
    %c32_i32 = arith.constant 32 : i32
    %332 = vector.broadcast %c32_i32 : i32 to vector<1x32xi32>
    %333 = arith.cmpi slt, %237, %332 : vector<1x32xi32>
    %334 = arith.andi %331, %333 : vector<1x32xi1>
    %335 = arith.extui %334 : vector<1x32xi1> to vector<1x32xi32>
    %336 = arith.sitofp %335 : vector<1x32xi32> to vector<1x32xf32>
    %337 = vector.broadcast %336 : vector<1x32xf32> to vector<8x32xf32>
    %338 = arith.mulf %241, %337 : vector<8x32xf32>
    %339 = vector.broadcast %336 : vector<1x32xf32> to vector<8x32xf32>
    %340 = arith.mulf %244, %339 : vector<8x32xf32>
    %cst_210 = arith.constant dense<0.000000e+00> : vector<8x8xf32>
    %341 = tpu.matmul %338, %340, %cst_210 {dimension_numbers = #tpu.dot_dimension_numbers<[1], [1], [0], [0], [0, 0, 1, 0], [], []>} : vector<8x32xf32>, vector<8x32xf32>, vector<8x8xf32> -> vector<8x8xf32>
    %cst_211 = arith.constant 0.353553385 : f32
    %342 = vector.broadcast %cst_211 : f32 to vector<8x8xf32>
    %343 = arith.mulf %341, %342 : vector<8x8xf32>
    %cst_212 = arith.constant dense<0xFF800000> : vector<8xf32>
    %344 = vector.multi_reduction <maximumf>, %343, %cst_212 [1] : vector<8x8xf32> to vector<8xf32>
    %345 = vector.shape_cast %344 : vector<8xf32> to vector<8x1xf32>
    %346 = vector.broadcast %345 : vector<8x1xf32> to vector<8x8xf32>
    %347 = arith.subf %343, %346 : vector<8x8xf32>
    %348 = math.exp %347 : vector<8x8xf32>
    %cst_213 = arith.constant dense<0.000000e+00> : vector<8xf32>
    %349 = vector.multi_reduction <add>, %348, %cst_213 [1] : vector<8x8xf32> to vector<8xf32>
    %350 = vector.shape_cast %349 : vector<8xf32> to vector<8x1xf32>
    %351 = vector.broadcast %350 : vector<8x1xf32> to vector<8x8xf32>
    %352 = arith.divf %348, %351 : vector<8x8xf32>
    %353 = vector.broadcast %336 : vector<1x32xf32> to vector<8x32xf32>
    %354 = arith.mulf %247, %353 : vector<8x32xf32>
    %cst_214 = arith.constant dense<0.000000e+00> : vector<8x32xf32>
    %355 = tpu.matmul %352, %354, %cst_214 {dimension_numbers = #tpu.dot_dimension_numbers<[1], [0], [0], [1], [0, 0, 1, 1], [], []>} : vector<8x8xf32>, vector<8x32xf32>, vector<8x32xf32> -> vector<8x32xf32>
    %356 = arith.addf %329, %355 : vector<8x32xf32>
    %cst_215 = arith.constant dense<0.000000e+00> : vector<8x32xf32>
    %357 = tpu.matmul %356, %19, %cst_215 {dimension_numbers = #tpu.dot_dimension_numbers<[1], [0], [0], [1], [0, 0, 1, 1], [], []>} : vector<8x32xf32>, vector<32x32xf32>, vector<8x32xf32> -> vector<8x32xf32>
    %358 = vector.broadcast %18 : vector<1x32xf32> to vector<8x32xf32>
    %359 = arith.addf %357, %358 : vector<8x32xf32>
    %360 = arith.addf %236, %359 : vector<8x32xf32>
    %cst_216 = arith.constant dense<0.000000e+00> : vector<8xf32>
    %361 = vector.multi_reduction <add>, %360, %cst_216 [1] : vector<8x32xf32> to vector<8xf32>
    %362 = vector.shape_cast %361 : vector<8xf32> to vector<8x1xf32>
    %cst_217 = arith.constant 3.200000e+01 : f32
    %363 = vector.broadcast %cst_217 : f32 to vector<8x1xf32>
    %364 = arith.divf %362, %363 : vector<8x1xf32>
    %365 = vector.broadcast %364 : vector<8x1xf32> to vector<8x32xf32>
    %366 = arith.subf %360, %365 : vector<8x32xf32>
    %367 = arith.mulf %366, %366 : vector<8x32xf32>
    %cst_218 = arith.constant dense<0.000000e+00> : vector<8xf32>
    %368 = vector.multi_reduction <add>, %367, %cst_218 [1] : vector<8x32xf32> to vector<8xf32>
    %369 = vector.shape_cast %368 : vector<8xf32> to vector<8x1xf32>
    %cst_219 = arith.constant 3.200000e+01 : f32
    %370 = vector.broadcast %cst_219 : f32 to vector<8x1xf32>
    %371 = arith.divf %369, %370 : vector<8x1xf32>
    %372 = vector.broadcast %364 : vector<8x1xf32> to vector<8x32xf32>
    %373 = arith.subf %360, %372 : vector<8x32xf32>
    %cst_220 = arith.constant 9.99999974E-6 : f32
    %374 = vector.broadcast %cst_220 : f32 to vector<8x1xf32>
    %375 = arith.addf %371, %374 : vector<8x1xf32>
    %376 = math.rsqrt %375 : vector<8x1xf32>
    %377 = vector.broadcast %376 : vector<8x1xf32> to vector<8x32xf32>
    %378 = arith.mulf %373, %377 : vector<8x32xf32>
    %379 = vector.broadcast %15 : vector<1x32xf32> to vector<8x32xf32>
    %380 = arith.mulf %378, %379 : vector<8x32xf32>
    %381 = vector.broadcast %14 : vector<1x32xf32> to vector<8x32xf32>
    %382 = arith.addf %380, %381 : vector<8x32xf32>
    %cst_221 = arith.constant dense<0.000000e+00> : vector<8x64xf32>
    %383 = tpu.matmul %382, %9, %cst_221 {dimension_numbers = #tpu.dot_dimension_numbers<[1], [0], [0], [1], [0, 0, 1, 1], [], []>} : vector<8x32xf32>, vector<32x64xf32>, vector<8x64xf32> -> vector<8x64xf32>
    %384 = vector.broadcast %8 : vector<1x64xf32> to vector<8x64xf32>
    %385 = arith.addf %383, %384 : vector<8x64xf32>
    %cst_222 = arith.constant 0.000000e+00 : f32
    %386 = vector.broadcast %cst_222 : f32 to vector<8x64xf32>
    %387 = arith.maximumf %385, %386 : vector<8x64xf32>
    %cst_223 = arith.constant dense<0.000000e+00> : vector<8x32xf32>
    %388 = tpu.matmul %387, %11, %cst_223 {dimension_numbers = #tpu.dot_dimension_numbers<[1], [0], [0], [1], [0, 0, 1, 1], [], []>} : vector<8x64xf32>, vector<64x32xf32>, vector<8x32xf32> -> vector<8x32xf32>
    %389 = vector.broadcast %10 : vector<1x32xf32> to vector<8x32xf32>
    %390 = arith.addf %388, %389 : vector<8x32xf32>
    %391 = arith.addf %382, %390 : vector<8x32xf32>
    %cst_224 = arith.constant dense<0.000000e+00> : vector<8xf32>
    %392 = vector.multi_reduction <add>, %391, %cst_224 [1] : vector<8x32xf32> to vector<8xf32>
    %393 = vector.shape_cast %392 : vector<8xf32> to vector<8x1xf32>
    %cst_225 = arith.constant 3.200000e+01 : f32
    %394 = vector.broadcast %cst_225 : f32 to vector<8x1xf32>
    %395 = arith.divf %393, %394 : vector<8x1xf32>
    %396 = vector.broadcast %395 : vector<8x1xf32> to vector<8x32xf32>
    %397 = arith.subf %391, %396 : vector<8x32xf32>
    %398 = arith.mulf %397, %397 : vector<8x32xf32>
    %cst_226 = arith.constant dense<0.000000e+00> : vector<8xf32>
    %399 = vector.multi_reduction <add>, %398, %cst_226 [1] : vector<8x32xf32> to vector<8xf32>
    %400 = vector.shape_cast %399 : vector<8xf32> to vector<8x1xf32>
    %cst_227 = arith.constant 3.200000e+01 : f32
    %401 = vector.broadcast %cst_227 : f32 to vector<8x1xf32>
    %402 = arith.divf %400, %401 : vector<8x1xf32>
    %403 = vector.broadcast %395 : vector<8x1xf32> to vector<8x32xf32>
    %404 = arith.subf %391, %403 : vector<8x32xf32>
    %cst_228 = arith.constant 9.99999974E-6 : f32
    %405 = vector.broadcast %cst_228 : f32 to vector<8x1xf32>
    %406 = arith.addf %402, %405 : vector<8x1xf32>
    %407 = math.rsqrt %406 : vector<8x1xf32>
    %408 = vector.broadcast %407 : vector<8x1xf32> to vector<8x32xf32>
    %409 = arith.mulf %404, %408 : vector<8x32xf32>
    %410 = vector.broadcast %17 : vector<1x32xf32> to vector<8x32xf32>
    %411 = arith.mulf %409, %410 : vector<8x32xf32>
    %412 = vector.broadcast %16 : vector<1x32xf32> to vector<8x32xf32>
    %413 = arith.addf %411, %412 : vector<8x32xf32>
    %cst_229 = arith.constant dense<0.000000e+00> : vector<8x32xf32>
    %414 = tpu.matmul %413, %25, %cst_229 {dimension_numbers = #tpu.dot_dimension_numbers<[1], [0], [0], [1], [0, 0, 1, 1], [], []>} : vector<8x32xf32>, vector<32x32xf32>, vector<8x32xf32> -> vector<8x32xf32>
    %415 = vector.broadcast %24 : vector<1x32xf32> to vector<8x32xf32>
    %416 = arith.addf %414, %415 : vector<8x32xf32>
    %417 = tpu.iota {dimensions = array<i32: 1>} : vector<8x32xi32>
    %c26_i32 = arith.constant 26 : i32
    %418 = vector.broadcast %c26_i32 : i32 to vector<8x32xi32>
    %419 = arith.cmpi sge, %417, %418 : vector<8x32xi32>
    %cst_230 = arith.constant -1.000000e+30 : f32
    %420 = vector.broadcast %cst_230 : f32 to vector<8x32xf32>
    %421 = arith.select %419, %416, %420 : vector<8x32xi1>, vector<8x32xf32>
    %cst_231 = arith.constant dense<0xFF800000> : vector<8xf32>
    %422 = vector.multi_reduction <maximumf>, %421, %cst_231 [1] : vector<8x32xf32> to vector<8xf32>
    %423 = vector.shape_cast %422 : vector<8xf32> to vector<8x1xf32>
    %424 = vector.broadcast %423 : vector<8x1xf32> to vector<8x32xf32>
    %425 = arith.subf %416, %424 : vector<8x32xf32>
    %426 = arith.select %419, %425, %420 : vector<8x32xi1>, vector<8x32xf32>
    %427 = math.exp %426 : vector<8x32xf32>
    %cst_232 = arith.constant dense<0.000000e+00> : vector<8xf32>
    %428 = vector.multi_reduction <add>, %427, %cst_232 [1] : vector<8x32xf32> to vector<8xf32>
    %429 = vector.shape_cast %428 : vector<8xf32> to vector<8x1xf32>
    %430 = vector.broadcast %429 : vector<8x1xf32> to vector<8x32xf32>
    %431 = arith.divf %427, %430 : vector<8x32xf32>
    %432 = arith.select %419, %431, %416 : vector<8x32xi1>, vector<8x32xf32>
    %433 = arith.addf %205, %166 : vector<16x32xf32>
    %cst_233 = arith.constant dense<0.000000e+00> : vector<16x32xf32>
    %434 = tpu.matmul %433, %5, %cst_233 {dimension_numbers = #tpu.dot_dimension_numbers<[1], [0], [0], [1], [0, 0, 1, 1], [], []>} : vector<16x32xf32>, vector<32x32xf32>, vector<16x32xf32> -> vector<16x32xf32>
    %435 = vector.broadcast %4 : vector<1x32xf32> to vector<16x32xf32>
    %436 = arith.addf %434, %435 : vector<16x32xf32>
    %437 = arith.addf %432, %63 : vector<8x32xf32>
    %cst_234 = arith.constant dense<0.000000e+00> : vector<8x32xf32>
    %438 = tpu.matmul %437, %1, %cst_234 {dimension_numbers = #tpu.dot_dimension_numbers<[1], [0], [0], [1], [0, 0, 1, 1], [], []>} : vector<8x32xf32>, vector<32x32xf32>, vector<8x32xf32> -> vector<8x32xf32>
    %439 = vector.broadcast %0 : vector<1x32xf32> to vector<8x32xf32>
    %440 = arith.addf %438, %439 : vector<8x32xf32>
    %cst_235 = arith.constant dense<0.000000e+00> : vector<8x32xf32>
    %441 = tpu.matmul %432, %7, %cst_235 {dimension_numbers = #tpu.dot_dimension_numbers<[1], [0], [0], [1], [0, 0, 1, 1], [], []>} : vector<8x32xf32>, vector<32x32xf32>, vector<8x32xf32> -> vector<8x32xf32>
    %442 = vector.broadcast %6 : vector<1x32xf32> to vector<8x32xf32>
    %443 = arith.addf %441, %442 : vector<8x32xf32>
    %cst_236 = arith.constant dense<0.000000e+00> : vector<16x8xf32>
    %444 = tpu.matmul %436, %440, %cst_236 {dimension_numbers = #tpu.dot_dimension_numbers<[1], [1], [0], [0], [0, 0, 1, 0], [], []>} : vector<16x32xf32>, vector<8x32xf32>, vector<16x8xf32> -> vector<16x8xf32>
    %cst_237 = arith.constant 0.176776692 : f32
    %445 = vector.broadcast %cst_237 : f32 to vector<16x8xf32>
    %446 = arith.mulf %444, %445 : vector<16x8xf32>
    %cst_238 = arith.constant dense<0xFF800000> : vector<16xf32>
    %447 = vector.multi_reduction <maximumf>, %446, %cst_238 [1] : vector<16x8xf32> to vector<16xf32>
    %448 = vector.shape_cast %447 : vector<16xf32> to vector<16x1xf32>
    %449 = vector.broadcast %448 : vector<16x1xf32> to vector<16x8xf32>
    %450 = arith.subf %446, %449 : vector<16x8xf32>
    %451 = math.exp %450 : vector<16x8xf32>
    %cst_239 = arith.constant dense<0.000000e+00> : vector<16xf32>
    %452 = vector.multi_reduction <add>, %451, %cst_239 [1] : vector<16x8xf32> to vector<16xf32>
    %453 = vector.shape_cast %452 : vector<16xf32> to vector<16x1xf32>
    %454 = vector.broadcast %453 : vector<16x1xf32> to vector<16x8xf32>
    %455 = arith.divf %451, %454 : vector<16x8xf32>
    %cst_240 = arith.constant dense<0.000000e+00> : vector<16x32xf32>
    %456 = tpu.matmul %455, %443, %cst_240 {dimension_numbers = #tpu.dot_dimension_numbers<[1], [0], [0], [1], [0, 0, 1, 1], [], []>} : vector<16x8xf32>, vector<8x32xf32>, vector<16x32xf32> -> vector<16x32xf32>
    %cst_241 = arith.constant dense<0.000000e+00> : vector<16x32xf32>
    %457 = tpu.matmul %456, %3, %cst_241 {dimension_numbers = #tpu.dot_dimension_numbers<[1], [0], [0], [1], [0, 0, 1, 1], [], []>} : vector<16x32xf32>, vector<32x32xf32>, vector<16x32xf32> -> vector<16x32xf32>
    %458 = vector.broadcast %2 : vector<1x32xf32> to vector<16x32xf32>
    %459 = arith.addf %457, %458 : vector<16x32xf32>
    %cst_242 = arith.constant dense<0.000000e+00> : vector<16x32xf32>
    %460 = tpu.matmul %126, %459, %cst_242 {dimension_numbers = #tpu.dot_dimension_numbers<[1], [0], [0], [1], [0, 0, 1, 1], [], []>} : vector<16x16xf32>, vector<16x32xf32>, vector<16x32xf32> -> vector<16x32xf32>
    %461 = vector.extract_strided_slice %59 {offsets = [0, 0], sizes = [32, 32], strides = [1, 1]} : vector<64x32xf32> to vector<32x32xf32>
    %cst_243 = arith.constant dense<0.000000e+00> : vector<16x32xf32>
    %462 = tpu.matmul %460, %461, %cst_243 {dimension_numbers = #tpu.dot_dimension_numbers<[1], [0], [0], [1], [0, 0, 1, 1], [], []>} : vector<16x32xf32>, vector<32x32xf32>, vector<16x32xf32> -> vector<16x32xf32>
    %463 = vector.extract_strided_slice %59 {offsets = [32, 0], sizes = [32, 32], strides = [1, 1]} : vector<64x32xf32> to vector<32x32xf32>
    %cst_244 = arith.constant dense<0.000000e+00> : vector<16x32xf32>
    %464 = tpu.matmul %60, %463, %cst_244 {dimension_numbers = #tpu.dot_dimension_numbers<[1], [0], [0], [1], [0, 0, 1, 1], [], []>} : vector<16x32xf32>, vector<32x32xf32>, vector<16x32xf32> -> vector<16x32xf32>
    %465 = arith.addf %462, %464 : vector<16x32xf32>
    %466 = vector.broadcast %58 : vector<1x32xf32> to vector<16x32xf32>
    %467 = arith.addf %465, %466 : vector<16x32xf32>
    %cst_245 = arith.constant 0.000000e+00 : f32
    %468 = vector.broadcast %cst_245 : f32 to vector<16x32xf32>
    %469 = arith.maximumf %467, %468 : vector<16x32xf32>
    %c1_i32_246 = arith.constant 1 : i32
    %470 = vector.broadcast %c1_i32_246 : i32 to vector<16x16xi32>
    %471 = arith.subi %64, %470 : vector<16x16xi32>
    %472 = arith.cmpi eq, %65, %471 : vector<16x16xi32>
    %473 = arith.extui %472 : vector<16x16xi1> to vector<16x16xi32>
    %474 = arith.sitofp %473 : vector<16x16xi32> to vector<16x16xf32>
    %c1_i32_247 = arith.constant 1 : i32
    %475 = vector.broadcast %c1_i32_247 : i32 to vector<16x16xi32>
    %476 = arith.addi %64, %475 : vector<16x16xi32>
    %477 = arith.cmpi eq, %65, %476 : vector<16x16xi32>
    %478 = arith.extui %477 : vector<16x16xi1> to vector<16x16xi32>
    %479 = arith.sitofp %478 : vector<16x16xi32> to vector<16x16xf32>
    %cst_248 = arith.constant dense<0.000000e+00> : vector<16x32xf32>
    %480 = tpu.matmul %474, %469, %cst_248 {dimension_numbers = #tpu.dot_dimension_numbers<[1], [0], [0], [1], [0, 0, 1, 1], [], []>} : vector<16x16xf32>, vector<16x32xf32>, vector<16x32xf32> -> vector<16x32xf32>
    %cst_249 = arith.constant dense<0.000000e+00> : vector<16x32xf32>
    %481 = tpu.matmul %479, %469, %cst_249 {dimension_numbers = #tpu.dot_dimension_numbers<[1], [0], [0], [1], [0, 0, 1, 1], [], []>} : vector<16x16xf32>, vector<16x32xf32>, vector<16x32xf32> -> vector<16x32xf32>
    %cst_250 = arith.constant dense<0.000000e+00> : vector<16x32xf32>
    %482 = tpu.matmul %480, %36, %cst_250 {dimension_numbers = #tpu.dot_dimension_numbers<[1], [0], [0], [1], [0, 0, 1, 1], [], []>} : vector<16x32xf32>, vector<32x32xf32>, vector<16x32xf32> -> vector<16x32xf32>
    %cst_251 = arith.constant dense<0.000000e+00> : vector<16x32xf32>
    %483 = tpu.matmul %469, %37, %cst_251 {dimension_numbers = #tpu.dot_dimension_numbers<[1], [0], [0], [1], [0, 0, 1, 1], [], []>} : vector<16x32xf32>, vector<32x32xf32>, vector<16x32xf32> -> vector<16x32xf32>
    %484 = arith.addf %482, %483 : vector<16x32xf32>
    %cst_252 = arith.constant dense<0.000000e+00> : vector<16x32xf32>
    %485 = tpu.matmul %481, %38, %cst_252 {dimension_numbers = #tpu.dot_dimension_numbers<[1], [0], [0], [1], [0, 0, 1, 1], [], []>} : vector<16x32xf32>, vector<32x32xf32>, vector<16x32xf32> -> vector<16x32xf32>
    %486 = arith.addf %484, %485 : vector<16x32xf32>
    %487 = vector.broadcast %34 : vector<1x32xf32> to vector<16x32xf32>
    %488 = arith.addf %486, %487 : vector<16x32xf32>
    %cst_253 = arith.constant 0.000000e+00 : f32
    %489 = vector.broadcast %cst_253 : f32 to vector<16x32xf32>
    %490 = arith.maximumf %488, %489 : vector<16x32xf32>
    %cst_254 = arith.constant dense<0.000000e+00> : vector<16x32xf32>
    %491 = tpu.matmul %490, %39, %cst_254 {dimension_numbers = #tpu.dot_dimension_numbers<[1], [0], [0], [1], [0, 0, 1, 1], [], []>} : vector<16x32xf32>, vector<32x32xf32>, vector<16x32xf32> -> vector<16x32xf32>
    %492 = vector.broadcast %35 : vector<1x32xf32> to vector<16x32xf32>
    %493 = arith.addf %491, %492 : vector<16x32xf32>
    %494 = arith.addf %469, %493 : vector<16x32xf32>
    %c2_i32 = arith.constant 2 : i32
    %495 = vector.broadcast %c2_i32 : i32 to vector<16x16xi32>
    %496 = arith.subi %64, %495 : vector<16x16xi32>
    %497 = arith.cmpi eq, %65, %496 : vector<16x16xi32>
    %498 = arith.extui %497 : vector<16x16xi1> to vector<16x16xi32>
    %499 = arith.sitofp %498 : vector<16x16xi32> to vector<16x16xf32>
    %c2_i32_255 = arith.constant 2 : i32
    %500 = vector.broadcast %c2_i32_255 : i32 to vector<16x16xi32>
    %501 = arith.addi %64, %500 : vector<16x16xi32>
    %502 = arith.cmpi eq, %65, %501 : vector<16x16xi32>
    %503 = arith.extui %502 : vector<16x16xi1> to vector<16x16xi32>
    %504 = arith.sitofp %503 : vector<16x16xi32> to vector<16x16xf32>
    %cst_256 = arith.constant dense<0.000000e+00> : vector<16x32xf32>
    %505 = tpu.matmul %499, %494, %cst_256 {dimension_numbers = #tpu.dot_dimension_numbers<[1], [0], [0], [1], [0, 0, 1, 1], [], []>} : vector<16x16xf32>, vector<16x32xf32>, vector<16x32xf32> -> vector<16x32xf32>
    %cst_257 = arith.constant dense<0.000000e+00> : vector<16x32xf32>
    %506 = tpu.matmul %504, %494, %cst_257 {dimension_numbers = #tpu.dot_dimension_numbers<[1], [0], [0], [1], [0, 0, 1, 1], [], []>} : vector<16x16xf32>, vector<16x32xf32>, vector<16x32xf32> -> vector<16x32xf32>
    %cst_258 = arith.constant dense<0.000000e+00> : vector<16x32xf32>
    %507 = tpu.matmul %505, %42, %cst_258 {dimension_numbers = #tpu.dot_dimension_numbers<[1], [0], [0], [1], [0, 0, 1, 1], [], []>} : vector<16x32xf32>, vector<32x32xf32>, vector<16x32xf32> -> vector<16x32xf32>
    %cst_259 = arith.constant dense<0.000000e+00> : vector<16x32xf32>
    %508 = tpu.matmul %494, %43, %cst_259 {dimension_numbers = #tpu.dot_dimension_numbers<[1], [0], [0], [1], [0, 0, 1, 1], [], []>} : vector<16x32xf32>, vector<32x32xf32>, vector<16x32xf32> -> vector<16x32xf32>
    %509 = arith.addf %507, %508 : vector<16x32xf32>
    %cst_260 = arith.constant dense<0.000000e+00> : vector<16x32xf32>
    %510 = tpu.matmul %506, %44, %cst_260 {dimension_numbers = #tpu.dot_dimension_numbers<[1], [0], [0], [1], [0, 0, 1, 1], [], []>} : vector<16x32xf32>, vector<32x32xf32>, vector<16x32xf32> -> vector<16x32xf32>
    %511 = arith.addf %509, %510 : vector<16x32xf32>
    %512 = vector.broadcast %40 : vector<1x32xf32> to vector<16x32xf32>
    %513 = arith.addf %511, %512 : vector<16x32xf32>
    %cst_261 = arith.constant 0.000000e+00 : f32
    %514 = vector.broadcast %cst_261 : f32 to vector<16x32xf32>
    %515 = arith.maximumf %513, %514 : vector<16x32xf32>
    %cst_262 = arith.constant dense<0.000000e+00> : vector<16x32xf32>
    %516 = tpu.matmul %515, %45, %cst_262 {dimension_numbers = #tpu.dot_dimension_numbers<[1], [0], [0], [1], [0, 0, 1, 1], [], []>} : vector<16x32xf32>, vector<32x32xf32>, vector<16x32xf32> -> vector<16x32xf32>
    %517 = vector.broadcast %41 : vector<1x32xf32> to vector<16x32xf32>
    %518 = arith.addf %516, %517 : vector<16x32xf32>
    %519 = arith.addf %494, %518 : vector<16x32xf32>
    %cst_263 = arith.constant dense<0.000000e+00> : vector<16x32xf32>
    %520 = tpu.matmul %519, %47, %cst_263 {dimension_numbers = #tpu.dot_dimension_numbers<[1], [0], [0], [1], [0, 0, 1, 1], [], []>} : vector<16x32xf32>, vector<32x32xf32>, vector<16x32xf32> -> vector<16x32xf32>
    %521 = vector.broadcast %46 : vector<1x32xf32> to vector<16x32xf32>
    %522 = arith.addf %520, %521 : vector<16x32xf32>
    %523 = tpu.iota {dimensions = array<i32: 1>} : vector<16x32xi32>
    %c27_i32_264 = arith.constant 27 : i32
    %524 = vector.broadcast %c27_i32_264 : i32 to vector<16x32xi32>
    %525 = arith.cmpi sge, %523, %524 : vector<16x32xi32>
    %cst_265 = arith.constant -1.000000e+30 : f32
    %526 = vector.broadcast %cst_265 : f32 to vector<16x32xf32>
    %527 = arith.select %525, %522, %526 : vector<16x32xi1>, vector<16x32xf32>
    %cst_266 = arith.constant dense<0xFF800000> : vector<16xf32>
    %528 = vector.multi_reduction <maximumf>, %527, %cst_266 [1] : vector<16x32xf32> to vector<16xf32>
    %529 = vector.shape_cast %528 : vector<16xf32> to vector<16x1xf32>
    %530 = vector.broadcast %529 : vector<16x1xf32> to vector<16x32xf32>
    %531 = arith.subf %522, %530 : vector<16x32xf32>
    %532 = arith.select %525, %531, %526 : vector<16x32xi1>, vector<16x32xf32>
    %533 = math.exp %532 : vector<16x32xf32>
    %cst_267 = arith.constant dense<0.000000e+00> : vector<16xf32>
    %534 = vector.multi_reduction <add>, %533, %cst_267 [1] : vector<16x32xf32> to vector<16xf32>
    %535 = vector.shape_cast %534 : vector<16xf32> to vector<16x1xf32>
    %536 = vector.broadcast %535 : vector<16x1xf32> to vector<16x32xf32>
    %537 = arith.divf %533, %536 : vector<16x32xf32>
    %538 = arith.select %525, %537, %522 : vector<16x32xi1>, vector<16x32xf32>
    %c0_268 = arith.constant 0 : index
    %c0_269 = arith.constant 0 : index
    %539 = vector.load %arg64[%c0_268, %c0_269] : memref<16x32xf32, #tpu.memory_space<vmem>>, vector<16x32xf32>
    tpu.vector_store %arg64[%c0_268, %c0_269], %538 {strides = array<i32>} : memref<16x32xf32, #tpu.memory_space<vmem>>, vector<16x32xf32>,
    %c0_270 = arith.constant 0 : index
    %c0_271 = arith.constant 0 : index
    %540 = vector.load %arg65[%c0_270, %c0_271] : memref<8x32xf32, #tpu.memory_space<vmem>>, vector<8x32xf32>
    tpu.vector_store %arg65[%c0_270, %c0_271], %432 {strides = array<i32>} : memref<8x32xf32, #tpu.memory_space<vmem>>, vector<8x32xf32>,
    return
  }
}

</mosaic_0001>

<llo_original>
// kernel: update_block_tdu_forward.1
$region0: #{update_block_tdu_forward.1}
  #allocation0 [shape = 'u32[]', space=smem, size = 0x4, offset = 0x4, fixed_abs, tag = 'smem constant byte address 0x4 - core index']
  #allocation1 [shape = 'u32[72,128]{1,0:T(1,128)}', space=vmem, size = 0x9000, scoped, tag = 'internal scratch']
  #allocation2 [shape = 'f32[16,48]{1,0:T(8,128)}', space=vmem, size = 0x2000, scoped, tag = 'scratch operand']
  #allocation3 [shape = 'f32[16,48]{1,0:T(8,128)}', space=vmem, size = 0x2000, scoped, tag = 'scratch operand']
  #allocation4 [shape = 'f32[16,1]{1,0:T(8,128)}', space=vmem, size = 0x2000, scoped, tag = 'scratch operand']
  #allocation5 [shape = 'f32[16,16]{1,0:T(8,128)}', space=vmem, size = 0x2000, scoped, tag = 'scratch operand']
  #allocation6 [shape = 'f32[16,16]{1,0:T(8,128)}', space=vmem, size = 0x2000, scoped, tag = 'scratch operand']
  %s0 = inlined_call_operand.smem [shape: u32[66], index: -1, kind: input, shape index: {}]
  %s1 = sld [smem:[%s0]]
  %s2 = scalar_lea.smem %s0, 1
  %s3 = sld [smem:[%s2]]
  %s4 = scalar_lea.smem %s0, 2
  %s5 = sld [smem:[%s4]]
  %s6 = scalar_lea.smem %s0, 3
  %s7 = sld [smem:[%s6]]
  %s8 = scalar_lea.smem %s0, 4
  %s9 = sld [smem:[%s8]]
  %s10 = scalar_lea.smem %s0, 5
  %s11 = sld [smem:[%s10]]
  %s12 = scalar_lea.smem %s0, 6
  %s13 = sld [smem:[%s12]]
  %s14 = scalar_lea.smem %s0, 7
  %s15 = sld [smem:[%s14]]
  %s16 = scalar_lea.smem %s0, 8
  %s17 = sld [smem:[%s16]]
  %s18 = scalar_lea.smem %s0, 9
  %s19 = sld [smem:[%s18]]
  %s20 = scalar_lea.smem %s0, 10
  %s21 = sld [smem:[%s20]]
  %s22 = scalar_lea.smem %s0, 11
  %s23 = sld [smem:[%s22]]
  %s24 = scalar_lea.smem %s0, 12
  %s25 = sld [smem:[%s24]]
  %s26 = scalar_lea.smem %s0, 13
  %s27 = sld [smem:[%s26]]
  %s28 = scalar_lea.smem %s0, 14
  %s29 = sld [smem:[%s28]]
  %s30 = scalar_lea.smem %s0, 15
  %s31 = sld [smem:[%s30]]
  %s32 = scalar_lea.smem %s0, 16
  %s33 = sld [smem:[%s32]]
  %s34 = scalar_lea.smem %s0, 17
  %s35 = sld [smem:[%s34]]
  %s36 = scalar_lea.smem %s0, 18
  %s37 = sld [smem:[%s36]]
  %s38 = scalar_lea.smem %s0, 19
  %s39 = sld [smem:[%s38]]
  %s40 = scalar_lea.smem %s0, 20
  %s41 = sld [smem:[%s40]]
  %s42 = scalar_lea.smem %s0, 21
  %s43 = sld [smem:[%s42]]
  %s44 = scalar_lea.smem %s0, 22
  %s45 = sld [smem:[%s44]]
  %s46 = scalar_lea.smem %s0, 23
  %s47 = sld [smem:[%s46]]
  %s48 = scalar_lea.smem %s0, 24
  %s49 = sld [smem:[%s48]]
  %s50 = scalar_lea.smem %s0, 25
  %s51 = sld [smem:[%s50]]
  %s52 = scalar_lea.smem %s0, 26
  %s53 = sld [smem:[%s52]]
  %s54 = scalar_lea.smem %s0, 27
  %s55 = sld [smem:[%s54]]
  %s56 = scalar_lea.smem %s0, 28
  %s57 = sld [smem:[%s56]]
  %s58 = scalar_lea.smem %s0, 29
  %s59 = sld [smem:[%s58]]
  %s60 = scalar_lea.smem %s0, 30
  %s61 = sld [smem:[%s60]]
  %s62 = scalar_lea.smem %s0, 31
  %s63 = sld [smem:[%s62]]
  %s64 = scalar_lea.smem %s0, 32
  %s65 = sld [smem:[%s64]]
  %s66 = scalar_lea.smem %s0, 33
  %s67 = sld [smem:[%s66]]
  %s68 = scalar_lea.smem %s0, 34
  %s69 = sld [smem:[%s68]]
  %s70 = scalar_lea.smem %s0, 35
  %s71 = sld [smem:[%s70]]
  %s72 = scalar_lea.smem %s0, 36
  %s73 = sld [smem:[%s72]]
  %s74 = scalar_lea.smem %s0, 37
  %s75 = sld [smem:[%s74]]
  %s76 = scalar_lea.smem %s0, 38
  %s77 = sld [smem:[%s76]]
  %s78 = scalar_lea.smem %s0, 39
  %s79 = sld [smem:[%s78]]
  %s80 = scalar_lea.smem %s0, 40
  %s81 = sld [smem:[%s80]]
  %s82 = scalar_lea.smem %s0, 41
  %s83 = sld [smem:[%s82]]
  %s84 = scalar_lea.smem %s0, 42
  %s85 = sld [smem:[%s84]]
  %s86 = scalar_lea.smem %s0, 43
  %s87 = sld [smem:[%s86]]
  %s88 = scalar_lea.smem %s0, 44
  %s89 = sld [smem:[%s88]]
  %s90 = scalar_lea.smem %s0, 45
  %s91 = sld [smem:[%s90]]
  %s92 = scalar_lea.smem %s0, 46
  %s93 = sld [smem:[%s92]]
  %s94 = scalar_lea.smem %s0, 47
  %s95 = sld [smem:[%s94]]
  %s96 = scalar_lea.smem %s0, 48
  %s97 = sld [smem:[%s96]]
  %s98 = scalar_lea.smem %s0, 49
  %s99 = sld [smem:[%s98]]
  %s100 = scalar_lea.smem %s0, 50
  %s101 = sld [smem:[%s100]]
  %s102 = scalar_lea.smem %s0, 51
  %s103 = sld [smem:[%s102]]
  %s104 = scalar_lea.smem %s0, 52
  %s105 = sld [smem:[%s104]]
  %s106 = scalar_lea.smem %s0, 53
  %s107 = sld [smem:[%s106]]
  %s108 = scalar_lea.smem %s0, 54
  %s109 = sld [smem:[%s108]]
  %s110 = scalar_lea.smem %s0, 55
  %s111 = sld [smem:[%s110]]
  %s112 = scalar_lea.smem %s0, 56
  %s113 = sld [smem:[%s112]]
  %s114 = scalar_lea.smem %s0, 57
  %s115 = sld [smem:[%s114]]
  %s116 = scalar_lea.smem %s0, 58
  %s117 = sld [smem:[%s116]]
  %s118 = scalar_lea.smem %s0, 59
  %s119 = sld [smem:[%s118]]
  %s120 = scalar_lea.smem %s0, 60
  %s121 = sld [smem:[%s120]]
  %s122 = scalar_lea.smem %s0, 61
  %s123 = sld [smem:[%s122]]
  %s124 = scalar_lea.smem %s0, 62
  %s125 = sld [smem:[%s124]]
  %s126 = scalar_lea.smem %s0, 63
  %s127 = sld [smem:[%s126]]
  %s128 = scalar_lea.smem %s0, 64
  %s129 = sld [smem:[%s128]]
  %s130 = scalar_lea.smem %s0, 65
  %s131 = sld [smem:[%s130]]
  %132 = xla_tuple %s129, %s131
  %s133 = sld [smem:[#allocation0]]
  $region500: #{update_block_tdu_forward.1} parent=0
    _
  %s135 = ssub.s32 1, %s133
  %s136 = scalar_select 0, %s135, %s133
  $region1: #{update_block_tdu_forward.1} parent=0
    #allocation7 [shape = 'u8[8192]{0}', space=vmem, size = 0x2000, scoped, tag = 'input window, operand 2, single buffered']
    #allocation8 [shape = 's32[1]{0}', space=sflag, size = 0x4, scoped, tag = 'scoped memory for update_block_tdu_forward.1']
    #allocation9 [shape = 's32[1]{0}', space=sflag, size = 0x4, scoped, tag = 'scoped memory for update_block_tdu_forward.1']
    #allocation10 [shape = 'u8[4096]{0}', space=vmem, size = 0x1000, scoped, tag = 'input window, operand 3, single buffered']
    #allocation11 [shape = 's32[1]{0}', space=sflag, size = 0x4, scoped, tag = 'scoped memory for update_block_tdu_forward.1']
    #allocation12 [shape = 'u8[512]{0}', space=vmem, size = 0x400, scoped, tag = 'input window, operand 4, single buffered']
    #allocation13 [shape = 'u8[512]{0}', space=vmem, size = 0x400, scoped, tag = 'input window, operand 6, single buffered']
    #allocation14 [shape = 's32[1]{0}', space=sflag, size = 0x4, scoped, tag = 'scoped memory for update_block_tdu_forward.1']
    #allocation15 [shape = 'u8[512]{0}', space=vmem, size = 0x400, scoped, tag = 'input window, operand 8, single buffered']
    #allocation16 [shape = 'u8[512]{0}', space=vmem, size = 0x400, scoped, tag = 'input window, operand 10, single buffered']
    #allocation17 [shape = 's32[1]{0}', space=sflag, size = 0x4, scoped, tag = 'scoped memory for update_block_tdu_forward.1']
    #allocation18 [shape = 'u8[512]{0}', space=vmem, size = 0x400, scoped, tag = 'input window, operand 12, single buffered']
    #allocation19 [shape = 'u8[512]{0}', space=vmem, size = 0x400, scoped, tag = 'input window, operand 14, single buffered']
    #allocation20 [shape = 's32[1]{0}', space=sflag, size = 0x4, scoped, tag = 'scoped memory for update_block_tdu_forward.1']
    #allocation21 [shape = 'u8[512]{0}', space=vmem, size = 0x400, scoped, tag = 'input window, operand 16, single buffered']
    #allocation22 [shape = 'u8[16384]{0}', space=vmem, size = 0x4000, scoped, tag = 'input window, operand 17, single buffered']
    #allocation23 [shape = 's32[1]{0}', space=sflag, size = 0x4, scoped, tag = 'scoped memory for update_block_tdu_forward.1']
    #allocation24 [shape = 'u8[512]{0}', space=vmem, size = 0x400, scoped, tag = 'input window, operand 18, single buffered']
    #allocation25 [shape = 'u8[512]{0}', space=vmem, size = 0x400, scoped, tag = 'input window, operand 19, single buffered']
    #allocation26 [shape = 's32[1]{0}', space=sflag, size = 0x4, scoped, tag = 'scoped memory for update_block_tdu_forward.1']
    #allocation27 [shape = 'u8[512]{0}', space=vmem, size = 0x400, scoped, tag = 'input window, operand 20, single buffered']
    #allocation28 [shape = 'u8[512]{0}', space=vmem, size = 0x400, scoped, tag = 'input window, operand 21, single buffered']
    #allocation29 [shape = 's32[1]{0}', space=sflag, size = 0x4, scoped, tag = 'scoped memory for update_block_tdu_forward.1']
    #allocation30 [shape = 'u8[512]{0}', space=vmem, size = 0x400, scoped, tag = 'input window, operand 22, single buffered']
    #allocation31 [shape = 'u8[16384]{0}', space=vmem, size = 0x4000, scoped, tag = 'input window, operand 23, single buffered']
    #allocation32 [shape = 's32[1]{0}', space=sflag, size = 0x4, scoped, tag = 'scoped memory for update_block_tdu_forward.1']
    #allocation33 [shape = 'u8[512]{0}', space=vmem, size = 0x400, scoped, tag = 'input window, operand 24, single buffered']
    #allocation34 [shape = 'u8[16384]{0}', space=vmem, size = 0x4000, scoped, tag = 'input window, operand 25, single buffered']
    #allocation35 [shape = 's32[1]{0}', space=sflag, size = 0x4, scoped, tag = 'scoped memory for update_block_tdu_forward.1']
    #allocation36 [shape = 'u8[512]{0}', space=vmem, size = 0x400, scoped, tag = 'input window, operand 26, single buffered']
    #allocation37 [shape = 'u8[16384]{0}', space=vmem, size = 0x4000, scoped, tag = 'input window, operand 27, single buffered']
    #allocation38 [shape = 's32[1]{0}', space=sflag, size = 0x4, scoped, tag = 'scoped memory for update_block_tdu_forward.1']
    #allocation39 [shape = 'u8[512]{0}', space=vmem, size = 0x400, scoped, tag = 'input window, operand 28, single buffered']
    #allocation40 [shape = 'u8[16384]{0}', space=vmem, size = 0x4000, scoped, tag = 'input window, operand 29, single buffered']
    #allocation41 [shape = 's32[1]{0}', space=sflag, size = 0x4, scoped, tag = 'scoped memory for update_block_tdu_forward.1']
    #allocation42 [shape = 'u8[512]{0}', space=vmem, size = 0x400, scoped, tag = 'input window, operand 30, single buffered']
    #allocation43 [shape = 'u8[16384]{0}', space=vmem, size = 0x4000, scoped, tag = 'input window, operand 31, single buffered']
    #allocation44 [shape = 's32[1]{0}', space=sflag, size = 0x4, scoped, tag = 'scoped memory for update_block_tdu_forward.1']
    #allocation45 [shape = 'u8[512]{0}', space=vmem, size = 0x400, scoped, tag = 'input window, operand 32, single buffered']
    #allocation46 [shape = 'u8[16384]{0}', space=vmem, size = 0x4000, scoped, tag = 'input window, operand 33, single buffered']
    #allocation47 [shape = 's32[1]{0}', space=sflag, size = 0x4, scoped, tag = 'scoped memory for update_block_tdu_forward.1']
    #allocation48 [shape = 'u8[512]{0}', space=vmem, size = 0x400, scoped, tag = 'input window, operand 34, single buffered']
    #allocation49 [shape = 'u8[16384]{0}', space=vmem, size = 0x4000, scoped, tag = 'input window, operand 35, single buffered']
    #allocation50 [shape = 's32[1]{0}', space=sflag, size = 0x4, scoped, tag = 'scoped memory for update_block_tdu_forward.1']
    #allocation51 [shape = 'u8[512]{0}', space=vmem, size = 0x400, scoped, tag = 'input window, operand 36, single buffered']
    #allocation52 [shape = 'u8[512]{0}', space=vmem, size = 0x400, scoped, tag = 'input window, operand 38, single buffered']
    #allocation53 [shape = 's32[1]{0}', space=sflag, size = 0x4, scoped, tag = 'scoped memory for update_block_tdu_forward.1']
    #allocation54 [shape = 'u8[512]{0}', space=vmem, size = 0x400, scoped, tag = 'input window, operand 39, single buffered']
    #allocation55 [shape = 'u8[16384]{0}', space=vmem, size = 0x4000, scoped, tag = 'input window, operand 40, single buffered']
    #allocation56 [shape = 's32[1]{0}', space=sflag, size = 0x4, scoped, tag = 'scoped memory for update_block_tdu_forward.1']
    #allocation57 [shape = 'u8[16384]{0}', space=vmem, size = 0x4000, scoped, tag = 'input window, operand 41, single buffered']
    #allocation58 [shape = 'u8[16384]{0}', space=vmem, size = 0x4000, scoped, tag = 'input window, operand 42, single buffered']
    #allocation59 [shape = 's32[1]{0}', space=sflag, size = 0x4, scoped, tag = 'scoped memory for update_block_tdu_forward.1']
    #allocation60 [shape = 'u8[16384]{0}', space=vmem, size = 0x4000, scoped, tag = 'input window, operand 43, single buffered']
    #allocation61 [shape = 'u8[512]{0}', space=vmem, size = 0x400, scoped, tag = 'input window, operand 44, single buffered']
    #allocation62 [shape = 's32[1]{0}', space=sflag, size = 0x4, scoped, tag = 'scoped memory for update_block_tdu_forward.1']
    #allocation63 [shape = 'u8[512]{0}', space=vmem, size = 0x400, scoped, tag = 'input window, operand 45, single buffered']
    #allocation64 [shape = 'u8[16384]{0}', space=vmem, size = 0x4000, scoped, tag = 'input window, operand 46, single buffered']
    #allocation65 [shape = 's32[1]{0}', space=sflag, size = 0x4, scoped, tag = 'scoped memory for update_block_tdu_forward.1']
    #allocation66 [shape = 'u8[16384]{0}', space=vmem, size = 0x4000, scoped, tag = 'input window, operand 47, single buffered']
    #allocation67 [shape = 'u8[16384]{0}', space=vmem, size = 0x4000, scoped, tag = 'input window, operand 48, single buffered']
    #allocation68 [shape = 's32[1]{0}', space=sflag, size = 0x4, scoped, tag = 'scoped memory for update_block_tdu_forward.1']
    #allocation69 [shape = 'u8[16384]{0}', space=vmem, size = 0x4000, scoped, tag = 'input window, operand 49, single buffered']
    #allocation70 [shape = 'u8[512]{0}', space=vmem, size = 0x400, scoped, tag = 'input window, operand 50, single buffered']
    #allocation71 [shape = 's32[1]{0}', space=sflag, size = 0x4, scoped, tag = 'scoped memory for update_block_tdu_forward.1']
    #allocation72 [shape = 'u8[16384]{0}', space=vmem, size = 0x4000, scoped, tag = 'input window, operand 51, single buffered']
    #allocation73 [shape = 'u8[512]{0}', space=vmem, size = 0x400, scoped, tag = 'input window, operand 52, single buffered']
    #allocation74 [shape = 's32[1]{0}', space=sflag, size = 0x4, scoped, tag = 'scoped memory for update_block_tdu_forward.1']
    #allocation75 [shape = 'u8[512]{0}', space=vmem, size = 0x400, scoped, tag = 'input window, operand 53, single buffered']
    #allocation76 [shape = 'u8[8192]{0}', space=vmem, size = 0x2000, scoped, tag = 'input window, operand 54, single buffered']
    #allocation77 [shape = 's32[1]{0}', space=sflag, size = 0x4, scoped, tag = 'scoped memory for update_block_tdu_forward.1']
    #allocation78 [shape = 'u8[16384]{0}', space=vmem, size = 0x4000, scoped, tag = 'input window, operand 55, single buffered']
    #allocation79 [shape = 'u8[512]{0}', space=vmem, size = 0x400, scoped, tag = 'input window, operand 57, single buffered']
    #allocation80 [shape = 's32[1]{0}', space=sflag, size = 0x4, scoped, tag = 'scoped memory for update_block_tdu_forward.1']
    #allocation81 [shape = 'u8[8192]{0}', space=vmem, size = 0x2000, scoped, tag = 'input window, operand 58, single buffered']
    #allocation82 [shape = 'u8[16384]{0}', space=vmem, size = 0x4000, scoped, tag = 'input window, operand 59, single buffered']
    #allocation83 [shape = 's32[1]{0}', space=sflag, size = 0x4, scoped, tag = 'scoped memory for update_block_tdu_forward.1']
    #allocation84 [shape = 'u8[512]{0}', space=vmem, size = 0x400, scoped, tag = 'input window, operand 60, single buffered']
    #allocation85 [shape = 'u8[16384]{0}', space=vmem, size = 0x4000, scoped, tag = 'input window, operand 61, single buffered']
    #allocation86 [shape = 's32[1]{0}', space=sflag, size = 0x4, scoped, tag = 'scoped memory for update_block_tdu_forward.1']
    #allocation87 [shape = 'u8[512]{0}', space=vmem, size = 0x400, scoped, tag = 'input window, operand 62, single buffered']
    #allocation88 [shape = 'u8[8192]{0}', space=vmem, size = 0x2000, scoped, tag = 'output window, operand 0, single buffered']
    #allocation89 [shape = 'u8[4096]{0}', space=vmem, size = 0x1000, scoped, tag = 'output window, operand 1, single buffered']
    #allocation90 [shape = 's32[1]{0}', space=sflag, size = 0x4, scoped, tag = 'scoped memory for update_block_tdu_forward.1']
    %137 = vsyncpa [#allocation8], 0
    %138 = vsyncpa [#allocation11], 0
    %139 = vsyncpa [#allocation14], 0
    %140 = vsyncpa [#allocation17], 0
    %141 = vsyncpa [#allocation20], 0
    %142 = vsyncpa [#allocation23], 0
    %143 = vsyncpa [#allocation26], 0
    %144 = vsyncpa [#allocation29], 0
    %145 = vsyncpa [#allocation32], 0
    %146 = vsyncpa [#allocation35], 0
    %147 = vsyncpa [#allocation38], 0
    %148 = vsyncpa [#allocation41], 0
    %149 = vsyncpa [#allocation44], 0
    %150 = vsyncpa [#allocation47], 0
    %151 = vsyncpa [#allocation50], 0
    %152 = vsyncpa [#allocation53], 0
    %153 = vsyncpa [#allocation56], 0
    %154 = vsyncpa [#allocation59], 0
    %155 = vsyncpa [#allocation62], 0
    %156 = vsyncpa [#allocation65], 0
    %157 = vsyncpa [#allocation68], 0
    %158 = vsyncpa [#allocation71], 0
    %159 = vsyncpa [#allocation74], 0
    %160 = vsyncpa [#allocation77], 0
    %161 = vsyncpa [#allocation80], 0
    %162 = vsyncpa [#allocation83], 0
    %163 = vsyncpa [#allocation86], 0
    %164 = vsyncpa [#allocation9], 0
    %165 = vsyncpa [#allocation90], 0
    // Predicated region
    $region2: #{update_block_tdu_forward.1} parent=1 // pred_check
      _
    $region3: #{update_block_tdu_forward.1} parent=1 // pred_check_branch
      %167 = sbr.rel (0) target = $region5
    $region4: #{update_block_tdu_forward.1} parent=1 // pred_region
      _
    $region5: #{update_block_tdu_forward.1} parent=1 // pred_fallthru
      _
    // Predicated region
    $region6: #{update_block_tdu_forward.1} parent=1 // pred_check
      _
    $region7: #{update_block_tdu_forward.1} parent=1 // pred_check_branch
      %169 = sbr.rel (0) target = $region9
    $region8: #{update_block_tdu_forward.1} parent=1 // pred_region
      _
    $region9: #{update_block_tdu_forward.1} parent=1 // pred_fallthru
      _
    // Predicated region
    $region10: #{update_block_tdu_forward.1} parent=1 // pred_check
      _
    $region11: #{update_block_tdu_forward.1} parent=1 // pred_check_branch
      %171 = sbr.rel (0) target = $region13
    $region12: #{update_block_tdu_forward.1} parent=1 // pred_region
      %173 = vsyncadd [#allocation8], 0
      %s174 = sshll.u32 %s5, 4
      %s175 = int_to_ptr.hbm [resolvable:$true] %s174
      %s176 = sshll.u32 [#allocation7], 4
      %s177 = int_to_ptr.vmem [resolvable:$true] %s176
      %182 = dma.hbm_to_vmem [thread:$0]  %s175, 256, %s177, [#allocation8], 128, 128, 8
    $region13: #{update_block_tdu_forward.1} parent=1 // pred_fallthru
      _
    // Predicated region
    $region14: #{update_block_tdu_forward.1} parent=1 // pred_check
      _
    $region15: #{update_block_tdu_forward.1} parent=1 // pred_check_branch
      %184 = sbr.rel (0) target = $region17
    $region16: #{update_block_tdu_forward.1} parent=1 // pred_region
      %186 = vsyncadd [#allocation11], 0
      %s188 = sshll.u32 %s7, 4
      %s189 = int_to_ptr.hbm [resolvable:$true] %s188
      %s190 = sshll.u32 [#allocation10], 4
      %s191 = int_to_ptr.vmem [resolvable:$true] %s190
      %193 = dma.hbm_to_vmem [thread:$0]  %s189, 128, %s191, [#allocation11]
    $region17: #{update_block_tdu_forward.1} parent=1 // pred_fallthru
      _
    // Predicated region
    $region18: #{update_block_tdu_forward.1} parent=1 // pred_check
      _
    $region19: #{update_block_tdu_forward.1} parent=1 // pred_check_branch
      %195 = sbr.rel (0) target = $region21
    $region20: #{update_block_tdu_forward.1} parent=1 // pred_region
      %197 = vsyncadd [#allocation11], 0
      %s199 = sshll.u32 %s9, 4
      %s200 = int_to_ptr.hbm [resolvable:$true] %s199
      %s201 = sshll.u32 [#allocation12], 4
      %s202 = int_to_ptr.vmem [resolvable:$true] %s201
      %204 = dma.hbm_to_vmem [thread:$0]  %s200, 16, %s202, [#allocation11]
    $region21: #{update_block_tdu_forward.1} parent=1 // pred_fallthru
      _
    // Predicated region
    $region22: #{update_block_tdu_forward.1} parent=1 // pred_check
      _
    $region23: #{update_block_tdu_forward.1} parent=1 // pred_check_branch
      %206 = sbr.rel (0) target = $region25
    $region24: #{update_block_tdu_forward.1} parent=1 // pred_region
      _
    $region25: #{update_block_tdu_forward.1} parent=1 // pred_fallthru
      _
    // Predicated region
    $region26: #{update_block_tdu_forward.1} parent=1 // pred_check
      _
    $region27: #{update_block_tdu_forward.1} parent=1 // pred_check_branch
      %208 = sbr.rel (0) target = $region29
    $region28: #{update_block_tdu_forward.1} parent=1 // pred_region
      %210 = vsyncadd [#allocation14], 0
      %s212 = sshll.u32 %s13, 4
      %s213 = int_to_ptr.hbm [resolvable:$true] %s212
      %s214 = sshll.u32 [#allocation13], 4
      %s215 = int_to_ptr.vmem [resolvable:$true] %s214
      %217 = dma.hbm_to_vmem [thread:$0]  %s213, 16, %s215, [#allocation14]
    $region29: #{update_block_tdu_forward.1} parent=1 // pred_fallthru
      _
    // Predicated region
    $region30: #{update_block_tdu_forward.1} parent=1 // pred_check
      _
    $region31: #{update_block_tdu_forward.1} parent=1 // pred_check_branch
      %219 = sbr.rel (0) target = $region33
    $region32: #{update_block_tdu_forward.1} parent=1 // pred_region
      _
    $region33: #{update_block_tdu_forward.1} parent=1 // pred_fallthru
      _
    // Predicated region
    $region34: #{update_block_tdu_forward.1} parent=1 // pred_check
      _
    $region35: #{update_block_tdu_forward.1} parent=1 // pred_check_branch
      %221 = sbr.rel (0) target = $region37
    $region36: #{update_block_tdu_forward.1} parent=1 // pred_region
      %223 = vsyncadd [#allocation14], 0
      %s225 = sshll.u32 %s17, 4
      %s226 = int_to_ptr.hbm [resolvable:$true] %s225
      %s227 = sshll.u32 [#allocation15], 4
      %s228 = int_to_ptr.vmem [resolvable:$true] %s227
      %230 = dma.hbm_to_vmem [thread:$0]  %s226, 16, %s228, [#allocation14]
    $region37: #{update_block_tdu_forward.1} parent=1 // pred_fallthru
      _
    // Predicated region
    $region38: #{update_block_tdu_forward.1} parent=1 // pred_check
      _
    $region39: #{update_block_tdu_forward.1} parent=1 // pred_check_branch
      %232 = sbr.rel (0) target = $region41
    $region40: #{update_block_tdu_forward.1} parent=1 // pred_region
      _
    $region41: #{update_block_tdu_forward.1} parent=1 // pred_fallthru
      _
    // Predicated region
    $region42: #{update_block_tdu_forward.1} parent=1 // pred_check
      _
    $region43: #{update_block_tdu_forward.1} parent=1 // pred_check_branch
      %234 = sbr.rel (0) target = $region45
    $region44: #{update_block_tdu_forward.1} parent=1 // pred_region
      %236 = vsyncadd [#allocation17], 0
      %s238 = sshll.u32 %s21, 4
      %s239 = int_to_ptr.hbm [resolvable:$true] %s238
      %s240 = sshll.u32 [#allocation16], 4
      %s241 = int_to_ptr.vmem [resolvable:$true] %s240
      %243 = dma.hbm_to_vmem [thread:$0]  %s239, 16, %s241, [#allocation17]
    $region45: #{update_block_tdu_forward.1} parent=1 // pred_fallthru
      _
    // Predicated region
    $region46: #{update_block_tdu_forward.1} parent=1 // pred_check
      _
    $region47: #{update_block_tdu_forward.1} parent=1 // pred_check_branch
      %245 = sbr.rel (0) target = $region49
    $region48: #{update_block_tdu_forward.1} parent=1 // pred_region
      _
    $region49: #{update_block_tdu_forward.1} parent=1 // pred_fallthru
      _
    // Predicated region
    $region50: #{update_block_tdu_forward.1} parent=1 // pred_check
      _
    $region51: #{update_block_tdu_forward.1} parent=1 // pred_check_branch
      %247 = sbr.rel (0) target = $region53
    $region52: #{update_block_tdu_forward.1} parent=1 // pred_region
      %249 = vsyncadd [#allocation17], 0
      %s251 = sshll.u32 %s25, 4
      %s252 = int_to_ptr.hbm [resolvable:$true] %s251
      %s253 = sshll.u32 [#allocation18], 4
      %s254 = int_to_ptr.vmem [resolvable:$true] %s253
      %256 = dma.hbm_to_vmem [thread:$0]  %s252, 16, %s254, [#allocation17]
    $region53: #{update_block_tdu_forward.1} parent=1 // pred_fallthru
      _
    // Predicated region
    $region54: #{update_block_tdu_forward.1} parent=1 // pred_check
      _
    $region55: #{update_block_tdu_forward.1} parent=1 // pred_check_branch
      %258 = sbr.rel (0) target = $region57
    $region56: #{update_block_tdu_forward.1} parent=1 // pred_region
      _
    $region57: #{update_block_tdu_forward.1} parent=1 // pred_fallthru
      _
    // Predicated region
    $region58: #{update_block_tdu_forward.1} parent=1 // pred_check
      _
    $region59: #{update_block_tdu_forward.1} parent=1 // pred_check_branch
      %260 = sbr.rel (0) target = $region61
    $region60: #{update_block_tdu_forward.1} parent=1 // pred_region
      %262 = vsyncadd [#allocation20], 0
      %s264 = sshll.u32 %s29, 4
      %s265 = int_to_ptr.hbm [resolvable:$true] %s264
      %s266 = sshll.u32 [#allocation19], 4
      %s267 = int_to_ptr.vmem [resolvable:$true] %s266
      %269 = dma.hbm_to_vmem [thread:$0]  %s265, 16, %s267, [#allocation20]
    $region61: #{update_block_tdu_forward.1} parent=1 // pred_fallthru
      _
    // Predicated region
    $region62: #{update_block_tdu_forward.1} parent=1 // pred_check
      _
    $region63: #{update_block_tdu_forward.1} parent=1 // pred_check_branch
      %271 = sbr.rel (0) target = $region65
    $region64: #{update_block_tdu_forward.1} parent=1 // pred_region
      _
    $region65: #{update_block_tdu_forward.1} parent=1 // pred_fallthru
      _
    // Predicated region
    $region66: #{update_block_tdu_forward.1} parent=1 // pred_check
      _
    $region67: #{update_block_tdu_forward.1} parent=1 // pred_check_branch
      %273 = sbr.rel (0) target = $region69
    $region68: #{update_block_tdu_forward.1} parent=1 // pred_region
      %275 = vsyncadd [#allocation20], 0
      %s277 = sshll.u32 %s33, 4
      %s278 = int_to_ptr.hbm [resolvable:$true] %s277
      %s279 = sshll.u32 [#allocation21], 4
      %s280 = int_to_ptr.vmem [resolvable:$true] %s279
      %282 = dma.hbm_to_vmem [thread:$0]  %s278, 16, %s280, [#allocation20]
    $region69: #{update_block_tdu_forward.1} parent=1 // pred_fallthru
      _
    // Predicated region
    $region70: #{update_block_tdu_forward.1} parent=1 // pred_check
      _
    $region71: #{update_block_tdu_forward.1} parent=1 // pred_check_branch
      %284 = sbr.rel (0) target = $region73
    $region72: #{update_block_tdu_forward.1} parent=1 // pred_region
      %286 = vsyncadd [#allocation23], 0
      %s287 = sshll.u32 %s35, 4
      %s288 = int_to_ptr.hbm [resolvable:$true] %s287
      %s289 = sshll.u32 [#allocation22], 4
      %s290 = int_to_ptr.vmem [resolvable:$true] %s289
      %295 = dma.hbm_to_vmem [thread:$0]  %s288, 512, %s290, [#allocation23], 128, 128, 8
    $region73: #{update_block_tdu_forward.1} parent=1 // pred_fallthru
      _
    // Predicated region
    $region74: #{update_block_tdu_forward.1} parent=1 // pred_check
      _
    $region75: #{update_block_tdu_forward.1} parent=1 // pred_check_branch
      %297 = sbr.rel (0) target = $region77
    $region76: #{update_block_tdu_forward.1} parent=1 // pred_region
      %299 = vsyncadd [#allocation23], 0
      %s301 = sshll.u32 %s37, 4
      %s302 = int_to_ptr.hbm [resolvable:$true] %s301
      %s303 = sshll.u32 [#allocation24], 4
      %s304 = int_to_ptr.vmem [resolvable:$true] %s303
      %306 = dma.hbm_to_vmem [thread:$0]  %s302, 16, %s304, [#allocation23]
    $region77: #{update_block_tdu_forward.1} parent=1 // pred_fallthru
      _
    // Predicated region
    $region78: #{update_block_tdu_forward.1} parent=1 // pred_check
      _
    $region79: #{update_block_tdu_forward.1} parent=1 // pred_check_branch
      %308 = sbr.rel (0) target = $region81
    $region80: #{update_block_tdu_forward.1} parent=1 // pred_region
      %310 = vsyncadd [#allocation26], 0
      %s312 = sshll.u32 %s39, 4
      %s313 = int_to_ptr.hbm [resolvable:$true] %s312
      %s314 = sshll.u32 [#allocation25], 4
      %s315 = int_to_ptr.vmem [resolvable:$true] %s314
      %317 = dma.hbm_to_vmem [thread:$0]  %s313, 16, %s315, [#allocation26]
    $region81: #{update_block_tdu_forward.1} parent=1 // pred_fallthru
      _
    // Predicated region
    $region82: #{update_block_tdu_forward.1} parent=1 // pred_check
      _
    $region83: #{update_block_tdu_forward.1} parent=1 // pred_check_branch
      %319 = sbr.rel (0) target = $region85
    $region84: #{update_block_tdu_forward.1} parent=1 // pred_region
      %321 = vsyncadd [#allocation26], 0
      %s323 = sshll.u32 %s41, 4
      %s324 = int_to_ptr.hbm [resolvable:$true] %s323
      %s325 = sshll.u32 [#allocation27], 4
      %s326 = int_to_ptr.vmem [resolvable:$true] %s325
      %328 = dma.hbm_to_vmem [thread:$0]  %s324, 16, %s326, [#allocation26]
    $region85: #{update_block_tdu_forward.1} parent=1 // pred_fallthru
      _
    // Predicated region
    $region86: #{update_block_tdu_forward.1} parent=1 // pred_check
      _
    $region87: #{update_block_tdu_forward.1} parent=1 // pred_check_branch
      %330 = sbr.rel (0) target = $region89
    $region88: #{update_block_tdu_forward.1} parent=1 // pred_region
      %332 = vsyncadd [#allocation29], 0
      %s334 = sshll.u32 %s43, 4
      %s335 = int_to_ptr.hbm [resolvable:$true] %s334
      %s336 = sshll.u32 [#allocation28], 4
      %s337 = int_to_ptr.vmem [resolvable:$true] %s336
      %339 = dma.hbm_to_vmem [thread:$0]  %s335, 16, %s337, [#allocation29]
    $region89: #{update_block_tdu_forward.1} parent=1 // pred_fallthru
      _
    // Predicated region
    $region90: #{update_block_tdu_forward.1} parent=1 // pred_check
      _
    $region91: #{update_block_tdu_forward.1} parent=1 // pred_check_branch
      %341 = sbr.rel (0) target = $region93
    $region92: #{update_block_tdu_forward.1} parent=1 // pred_region
      %343 = vsyncadd [#allocation29], 0
      %s345 = sshll.u32 %s45, 4
      %s346 = int_to_ptr.hbm [resolvable:$true] %s345
      %s347 = sshll.u32 [#allocation30], 4
      %s348 = int_to_ptr.vmem [resolvable:$true] %s347
      %350 = dma.hbm_to_vmem [thread:$0]  %s346, 16, %s348, [#allocation29]
    $region93: #{update_block_tdu_forward.1} parent=1 // pred_fallthru
      _
    // Predicated region
    $region94: #{update_block_tdu_forward.1} parent=1 // pred_check
      _
    $region95: #{update_block_tdu_forward.1} parent=1 // pred_check_branch
      %352 = sbr.rel (0) target = $region97
    $region96: #{update_block_tdu_forward.1} parent=1 // pred_region
      %354 = vsyncadd [#allocation32], 0
      %s355 = sshll.u32 %s47, 4
      %s356 = int_to_ptr.hbm [resolvable:$true] %s355
      %s357 = sshll.u32 [#allocation31], 4
      %s358 = int_to_ptr.vmem [resolvable:$true] %s357
      %363 = dma.hbm_to_vmem [thread:$0]  %s356, 512, %s358, [#allocation32], 128, 128, 8
    $region97: #{update_block_tdu_forward.1} parent=1 // pred_fallthru
      _
    // Predicated region
    $region98: #{update_block_tdu_forward.1} parent=1 // pred_check
      _
    $region99: #{update_block_tdu_forward.1} parent=1 // pred_check_branch
      %365 = sbr.rel (0) target = $region101
    $region100: #{update_block_tdu_forward.1} parent=1 // pred_region
      %367 = vsyncadd [#allocation32], 0
      %s369 = sshll.u32 %s49, 4
      %s370 = int_to_ptr.hbm [resolvable:$true] %s369
      %s371 = sshll.u32 [#allocation33], 4
      %s372 = int_to_ptr.vmem [resolvable:$true] %s371
      %374 = dma.hbm_to_vmem [thread:$0]  %s370, 16, %s372, [#allocation32]
    $region101: #{update_block_tdu_forward.1} parent=1 // pred_fallthru
      _
    // Predicated region
    $region102: #{update_block_tdu_forward.1} parent=1 // pred_check
      _
    $region103: #{update_block_tdu_forward.1} parent=1 // pred_check_branch
      %376 = sbr.rel (0) target = $region105
    $region104: #{update_block_tdu_forward.1} parent=1 // pred_region
      %378 = vsyncadd [#allocation35], 0
      %s379 = sshll.u32 %s51, 4
      %s380 = int_to_ptr.hbm [resolvable:$true] %s379
      %s381 = sshll.u32 [#allocation34], 4
      %s382 = int_to_ptr.vmem [resolvable:$true] %s381
      %387 = dma.hbm_to_vmem [thread:$0]  %s380, 512, %s382, [#allocation35], 128, 128, 8
    $region105: #{update_block_tdu_forward.1} parent=1 // pred_fallthru
      _
    // Predicated region
    $region106: #{update_block_tdu_forward.1} parent=1 // pred_check
      _
    $region107: #{update_block_tdu_forward.1} parent=1 // pred_check_branch
      %389 = sbr.rel (0) target = $region109
    $region108: #{update_block_tdu_forward.1} parent=1 // pred_region
      %391 = vsyncadd [#allocation35], 0
      %s393 = sshll.u32 %s53, 4
      %s394 = int_to_ptr.hbm [resolvable:$true] %s393
      %s395 = sshll.u32 [#allocation36], 4
      %s396 = int_to_ptr.vmem [resolvable:$true] %s395
      %398 = dma.hbm_to_vmem [thread:$0]  %s394, 16, %s396, [#allocation35]
    $region109: #{update_block_tdu_forward.1} parent=1 // pred_fallthru
      _
    // Predicated region
    $region110: #{update_block_tdu_forward.1} parent=1 // pred_check
      _
    $region111: #{update_block_tdu_forward.1} parent=1 // pred_check_branch
      %400 = sbr.rel (0) target = $region113
    $region112: #{update_block_tdu_forward.1} parent=1 // pred_region
      %402 = vsyncadd [#allocation38], 0
      %s403 = sshll.u32 %s55, 4
      %s404 = int_to_ptr.hbm [resolvable:$true] %s403
      %s405 = sshll.u32 [#allocation37], 4
      %s406 = int_to_ptr.vmem [resolvable:$true] %s405
      %411 = dma.hbm_to_vmem [thread:$0]  %s404, 512, %s406, [#allocation38], 128, 128, 8
    $region113: #{update_block_tdu_forward.1} parent=1 // pred_fallthru
      _
    // Predicated region
    $region114: #{update_block_tdu_forward.1} parent=1 // pred_check
      _
    $region115: #{update_block_tdu_forward.1} parent=1 // pred_check_branch
      %413 = sbr.rel (0) target = $region117
    $region116: #{update_block_tdu_forward.1} parent=1 // pred_region
      %415 = vsyncadd [#allocation38], 0
      %s417 = sshll.u32 %s57, 4
      %s418 = int_to_ptr.hbm [resolvable:$true] %s417
      %s419 = sshll.u32 [#allocation39], 4
      %s420 = int_to_ptr.vmem [resolvable:$true] %s419
      %422 = dma.hbm_to_vmem [thread:$0]  %s418, 16, %s420, [#allocation38]
    $region117: #{update_block_tdu_forward.1} parent=1 // pred_fallthru
      _
    // Predicated region
    $region118: #{update_block_tdu_forward.1} parent=1 // pred_check
      _
    $region119: #{update_block_tdu_forward.1} parent=1 // pred_check_branch
      %424 = sbr.rel (0) target = $region121
    $region120: #{update_block_tdu_forward.1} parent=1 // pred_region
      %426 = vsyncadd [#allocation41], 0
      %s427 = sshll.u32 %s59, 4
      %s428 = int_to_ptr.hbm [resolvable:$true] %s427
      %s429 = sshll.u32 [#allocation40], 4
      %s430 = int_to_ptr.vmem [resolvable:$true] %s429
      %435 = dma.hbm_to_vmem [thread:$0]  %s428, 512, %s430, [#allocation41], 128, 128, 8
    $region121: #{update_block_tdu_forward.1} parent=1 // pred_fallthru
      _
    // Predicated region
    $region122: #{update_block_tdu_forward.1} parent=1 // pred_check
      _
    $region123: #{update_block_tdu_forward.1} parent=1 // pred_check_branch
      %437 = sbr.rel (0) target = $region125
    $region124: #{update_block_tdu_forward.1} parent=1 // pred_region
      %439 = vsyncadd [#allocation41], 0
      %s441 = sshll.u32 %s61, 4
      %s442 = int_to_ptr.hbm [resolvable:$true] %s441
      %s443 = sshll.u32 [#allocation42], 4
      %s444 = int_to_ptr.vmem [resolvable:$true] %s443
      %446 = dma.hbm_to_vmem [thread:$0]  %s442, 16, %s444, [#allocation41]
    $region125: #{update_block_tdu_forward.1} parent=1 // pred_fallthru
      _
    // Predicated region
    $region126: #{update_block_tdu_forward.1} parent=1 // pred_check
      _
    $region127: #{update_block_tdu_forward.1} parent=1 // pred_check_branch
      %448 = sbr.rel (0) target = $region129
    $region128: #{update_block_tdu_forward.1} parent=1 // pred_region
      %450 = vsyncadd [#allocation44], 0
      %s451 = sshll.u32 %s63, 4
      %s452 = int_to_ptr.hbm [resolvable:$true] %s451
      %s453 = sshll.u32 [#allocation43], 4
      %s454 = int_to_ptr.vmem [resolvable:$true] %s453
      %459 = dma.hbm_to_vmem [thread:$0]  %s452, 512, %s454, [#allocation44], 128, 128, 8
    $region129: #{update_block_tdu_forward.1} parent=1 // pred_fallthru
      _
    // Predicated region
    $region130: #{update_block_tdu_forward.1} parent=1 // pred_check
      _
    $region131: #{update_block_tdu_forward.1} parent=1 // pred_check_branch
      %461 = sbr.rel (0) target = $region133
    $region132: #{update_block_tdu_forward.1} parent=1 // pred_region
      %463 = vsyncadd [#allocation44], 0
      %s465 = sshll.u32 %s65, 4
      %s466 = int_to_ptr.hbm [resolvable:$true] %s465
      %s467 = sshll.u32 [#allocation45], 4
      %s468 = int_to_ptr.vmem [resolvable:$true] %s467
      %470 = dma.hbm_to_vmem [thread:$0]  %s466, 16, %s468, [#allocation44]
    $region133: #{update_block_tdu_forward.1} parent=1 // pred_fallthru
      _
    // Predicated region
    $region134: #{update_block_tdu_forward.1} parent=1 // pred_check
      _
    $region135: #{update_block_tdu_forward.1} parent=1 // pred_check_branch
      %472 = sbr.rel (0) target = $region137
    $region136: #{update_block_tdu_forward.1} parent=1 // pred_region
      %474 = vsyncadd [#allocation47], 0
      %s475 = sshll.u32 %s67, 4
      %s476 = int_to_ptr.hbm [resolvable:$true] %s475
      %s477 = sshll.u32 [#allocation46], 4
      %s478 = int_to_ptr.vmem [resolvable:$true] %s477
      %483 = dma.hbm_to_vmem [thread:$0]  %s476, 512, %s478, [#allocation47], 128, 128, 8
    $region137: #{update_block_tdu_forward.1} parent=1 // pred_fallthru
      _
    // Predicated region
    $region138: #{update_block_tdu_forward.1} parent=1 // pred_check
      _
    $region139: #{update_block_tdu_forward.1} parent=1 // pred_check_branch
      %485 = sbr.rel (0) target = $region141
    $region140: #{update_block_tdu_forward.1} parent=1 // pred_region
      %487 = vsyncadd [#allocation47], 0
      %s489 = sshll.u32 %s69, 4
      %s490 = int_to_ptr.hbm [resolvable:$true] %s489
      %s491 = sshll.u32 [#allocation48], 4
      %s492 = int_to_ptr.vmem [resolvable:$true] %s491
      %494 = dma.hbm_to_vmem [thread:$0]  %s490, 16, %s492, [#allocation47]
    $region141: #{update_block_tdu_forward.1} parent=1 // pred_fallthru
      _
    // Predicated region
    $region142: #{update_block_tdu_forward.1} parent=1 // pred_check
      _
    $region143: #{update_block_tdu_forward.1} parent=1 // pred_check_branch
      %496 = sbr.rel (0) target = $region145
    $region144: #{update_block_tdu_forward.1} parent=1 // pred_region
      %498 = vsyncadd [#allocation50], 0
      %s499 = sshll.u32 %s71, 4
      %s500 = int_to_ptr.hbm [resolvable:$true] %s499
      %s501 = sshll.u32 [#allocation49], 4
      %s502 = int_to_ptr.vmem [resolvable:$true] %s501
      %507 = dma.hbm_to_vmem [thread:$0]  %s500, 512, %s502, [#allocation50], 128, 128, 8
    $region145: #{update_block_tdu_forward.1} parent=1 // pred_fallthru
      _
    // Predicated region
    $region146: #{update_block_tdu_forward.1} parent=1 // pred_check
      _
    $region147: #{update_block_tdu_forward.1} parent=1 // pred_check_branch
      %509 = sbr.rel (0) target = $region149
    $region148: #{update_block_tdu_forward.1} parent=1 // pred_region
      %511 = vsyncadd [#allocation50], 0
      %s513 = sshll.u32 %s73, 4
      %s514 = int_to_ptr.hbm [resolvable:$true] %s513
      %s515 = sshll.u32 [#allocation51], 4
      %s516 = int_to_ptr.vmem [resolvable:$true] %s515
      %518 = dma.hbm_to_vmem [thread:$0]  %s514, 16, %s516, [#allocation50]
    $region149: #{update_block_tdu_forward.1} parent=1 // pred_fallthru
      _
    // Predicated region
    $region150: #{update_block_tdu_forward.1} parent=1 // pred_check
      _
    $region151: #{update_block_tdu_forward.1} parent=1 // pred_check_branch
      %520 = sbr.rel (0) target = $region153
    $region152: #{update_block_tdu_forward.1} parent=1 // pred_region
      _
    $region153: #{update_block_tdu_forward.1} parent=1 // pred_fallthru
      _
    // Predicated region
    $region154: #{update_block_tdu_forward.1} parent=1 // pred_check
      _
    $region155: #{update_block_tdu_forward.1} parent=1 // pred_check_branch
      %522 = sbr.rel (0) target = $region157
    $region156: #{update_block_tdu_forward.1} parent=1 // pred_region
      %524 = vsyncadd [#allocation53], 0
      %s526 = sshll.u32 %s77, 4
      %s527 = int_to_ptr.hbm [resolvable:$true] %s526
      %s528 = sshll.u32 [#allocation52], 4
      %s529 = int_to_ptr.vmem [resolvable:$true] %s528
      %531 = dma.hbm_to_vmem [thread:$0]  %s527, 16, %s529, [#allocation53]
    $region157: #{update_block_tdu_forward.1} parent=1 // pred_fallthru
      _
    // Predicated region
    $region158: #{update_block_tdu_forward.1} parent=1 // pred_check
      _
    $region159: #{update_block_tdu_forward.1} parent=1 // pred_check_branch
      %533 = sbr.rel (0) target = $region161
    $region160: #{update_block_tdu_forward.1} parent=1 // pred_region
      %535 = vsyncadd [#allocation53], 0
      %s537 = sshll.u32 %s79, 4
      %s538 = int_to_ptr.hbm [resolvable:$true] %s537
      %s539 = sshll.u32 [#allocation54], 4
      %s540 = int_to_ptr.vmem [resolvable:$true] %s539
      %542 = dma.hbm_to_vmem [thread:$0]  %s538, 16, %s540, [#allocation53]
    $region161: #{update_block_tdu_forward.1} parent=1 // pred_fallthru
      _
    // Predicated region
    $region162: #{update_block_tdu_forward.1} parent=1 // pred_check
      _
    $region163: #{update_block_tdu_forward.1} parent=1 // pred_check_branch
      %544 = sbr.rel (0) target = $region165
    $region164: #{update_block_tdu_forward.1} parent=1 // pred_region
      %546 = vsyncadd [#allocation56], 0
      %s547 = sshll.u32 %s81, 4
      %s548 = int_to_ptr.hbm [resolvable:$true] %s547
      %s549 = sshll.u32 [#allocation55], 4
      %s550 = int_to_ptr.vmem [resolvable:$true] %s549
      %555 = dma.hbm_to_vmem [thread:$0]  %s548, 512, %s550, [#allocation56], 128, 128, 8
    $region165: #{update_block_tdu_forward.1} parent=1 // pred_fallthru
      _
    // Predicated region
    $region166: #{update_block_tdu_forward.1} parent=1 // pred_check
      _
    $region167: #{update_block_tdu_forward.1} parent=1 // pred_check_branch
      %557 = sbr.rel (0) target = $region169
    $region168: #{update_block_tdu_forward.1} parent=1 // pred_region
      %559 = vsyncadd [#allocation56], 0
      %s560 = sshll.u32 %s83, 4
      %s561 = int_to_ptr.hbm [resolvable:$true] %s560
      %s562 = sshll.u32 [#allocation57], 4
      %s563 = int_to_ptr.vmem [resolvable:$true] %s562
      %568 = dma.hbm_to_vmem [thread:$0]  %s561, 512, %s563, [#allocation56], 128, 128, 8
    $region169: #{update_block_tdu_forward.1} parent=1 // pred_fallthru
      _
    // Predicated region
    $region170: #{update_block_tdu_forward.1} parent=1 // pred_check
      _
    $region171: #{update_block_tdu_forward.1} parent=1 // pred_check_branch
      %570 = sbr.rel (0) target = $region173
    $region172: #{update_block_tdu_forward.1} parent=1 // pred_region
      %572 = vsyncadd [#allocation59], 0
      %s573 = sshll.u32 %s85, 4
      %s574 = int_to_ptr.hbm [resolvable:$true] %s573
      %s575 = sshll.u32 [#allocation58], 4
      %s576 = int_to_ptr.vmem [resolvable:$true] %s575
      %581 = dma.hbm_to_vmem [thread:$0]  %s574, 512, %s576, [#allocation59], 128, 128, 8
    $region173: #{update_block_tdu_forward.1} parent=1 // pred_fallthru
      _
    // Predicated region
    $region174: #{update_block_tdu_forward.1} parent=1 // pred_check
      _
    $region175: #{update_block_tdu_forward.1} parent=1 // pred_check_branch
      %583 = sbr.rel (0) target = $region177
    $region176: #{update_block_tdu_forward.1} parent=1 // pred_region
      %585 = vsyncadd [#allocation59], 0
      %s586 = sshll.u32 %s87, 4
      %s587 = int_to_ptr.hbm [resolvable:$true] %s586
      %s588 = sshll.u32 [#allocation60], 4
      %s589 = int_to_ptr.vmem [resolvable:$true] %s588
      %594 = dma.hbm_to_vmem [thread:$0]  %s587, 512, %s589, [#allocation59], 128, 128, 8
    $region177: #{update_block_tdu_forward.1} parent=1 // pred_fallthru
      _
    // Predicated region
    $region178: #{update_block_tdu_forward.1} parent=1 // pred_check
      _
    $region179: #{update_block_tdu_forward.1} parent=1 // pred_check_branch
      %596 = sbr.rel (0) target = $region181
    $region180: #{update_block_tdu_forward.1} parent=1 // pred_region
      %598 = vsyncadd [#allocation62], 0
      %s600 = sshll.u32 %s89, 4
      %s601 = int_to_ptr.hbm [resolvable:$true] %s600
      %s602 = sshll.u32 [#allocation61], 4
      %s603 = int_to_ptr.vmem [resolvable:$true] %s602
      %605 = dma.hbm_to_vmem [thread:$0]  %s601, 16, %s603, [#allocation62]
    $region181: #{update_block_tdu_forward.1} parent=1 // pred_fallthru
      _
    // Predicated region
    $region182: #{update_block_tdu_forward.1} parent=1 // pred_check
      _
    $region183: #{update_block_tdu_forward.1} parent=1 // pred_check_branch
      %607 = sbr.rel (0) target = $region185
    $region184: #{update_block_tdu_forward.1} parent=1 // pred_region
      %609 = vsyncadd [#allocation62], 0
      %s611 = sshll.u32 %s91, 4
      %s612 = int_to_ptr.hbm [resolvable:$true] %s611
      %s613 = sshll.u32 [#allocation63], 4
      %s614 = int_to_ptr.vmem [resolvable:$true] %s613
      %616 = dma.hbm_to_vmem [thread:$0]  %s612, 16, %s614, [#allocation62]
    $region185: #{update_block_tdu_forward.1} parent=1 // pred_fallthru
      _
    // Predicated region
    $region186: #{update_block_tdu_forward.1} parent=1 // pred_check
      _
    $region187: #{update_block_tdu_forward.1} parent=1 // pred_check_branch
      %618 = sbr.rel (0) target = $region189
    $region188: #{update_block_tdu_forward.1} parent=1 // pred_region
      %620 = vsyncadd [#allocation65], 0
      %s621 = sshll.u32 %s93, 4
      %s622 = int_to_ptr.hbm [resolvable:$true] %s621
      %s623 = sshll.u32 [#allocation64], 4
      %s624 = int_to_ptr.vmem [resolvable:$true] %s623
      %629 = dma.hbm_to_vmem [thread:$0]  %s622, 512, %s624, [#allocation65], 128, 128, 8
    $region189: #{update_block_tdu_forward.1} parent=1 // pred_fallthru
      _
    // Predicated region
    $region190: #{update_block_tdu_forward.1} parent=1 // pred_check
      _
    $region191: #{update_block_tdu_forward.1} parent=1 // pred_check_branch
      %631 = sbr.rel (0) target = $region193
    $region192: #{update_block_tdu_forward.1} parent=1 // pred_region
      %633 = vsyncadd [#allocation65], 0
      %s634 = sshll.u32 %s95, 4
      %s635 = int_to_ptr.hbm [resolvable:$true] %s634
      %s636 = sshll.u32 [#allocation66], 4
      %s637 = int_to_ptr.vmem [resolvable:$true] %s636
      %642 = dma.hbm_to_vmem [thread:$0]  %s635, 512, %s637, [#allocation65], 128, 128, 8
    $region193: #{update_block_tdu_forward.1} parent=1 // pred_fallthru
      _
    // Predicated region
    $region194: #{update_block_tdu_forward.1} parent=1 // pred_check
      _
    $region195: #{update_block_tdu_forward.1} parent=1 // pred_check_branch
      %644 = sbr.rel (0) target = $region197
    $region196: #{update_block_tdu_forward.1} parent=1 // pred_region
      %646 = vsyncadd [#allocation68], 0
      %s647 = sshll.u32 %s97, 4
      %s648 = int_to_ptr.hbm [resolvable:$true] %s647
      %s649 = sshll.u32 [#allocation67], 4
      %s650 = int_to_ptr.vmem [resolvable:$true] %s649
      %655 = dma.hbm_to_vmem [thread:$0]  %s648, 512, %s650, [#allocation68], 128, 128, 8
    $region197: #{update_block_tdu_forward.1} parent=1 // pred_fallthru
      _
    // Predicated region
    $region198: #{update_block_tdu_forward.1} parent=1 // pred_check
      _
    $region199: #{update_block_tdu_forward.1} parent=1 // pred_check_branch
      %657 = sbr.rel (0) target = $region201
    $region200: #{update_block_tdu_forward.1} parent=1 // pred_region
      %659 = vsyncadd [#allocation68], 0
      %s660 = sshll.u32 %s99, 4
      %s661 = int_to_ptr.hbm [resolvable:$true] %s660
      %s662 = sshll.u32 [#allocation69], 4
      %s663 = int_to_ptr.vmem [resolvable:$true] %s662
      %668 = dma.hbm_to_vmem [thread:$0]  %s661, 512, %s663, [#allocation68], 128, 128, 8
    $region201: #{update_block_tdu_forward.1} parent=1 // pred_fallthru
      _
    // Predicated region
    $region202: #{update_block_tdu_forward.1} parent=1 // pred_check
      _
    $region203: #{update_block_tdu_forward.1} parent=1 // pred_check_branch
      %670 = sbr.rel (0) target = $region205
    $region204: #{update_block_tdu_forward.1} parent=1 // pred_region
      %672 = vsyncadd [#allocation71], 0
      %s674 = sshll.u32 %s101, 4
      %s675 = int_to_ptr.hbm [resolvable:$true] %s674
      %s676 = sshll.u32 [#allocation70], 4
      %s677 = int_to_ptr.vmem [resolvable:$true] %s676
      %679 = dma.hbm_to_vmem [thread:$0]  %s675, 16, %s677, [#allocation71]
    $region205: #{update_block_tdu_forward.1} parent=1 // pred_fallthru
      _
    // Predicated region
    $region206: #{update_block_tdu_forward.1} parent=1 // pred_check
      _
    $region207: #{update_block_tdu_forward.1} parent=1 // pred_check_branch
      %681 = sbr.rel (0) target = $region209
    $region208: #{update_block_tdu_forward.1} parent=1 // pred_region
      %683 = vsyncadd [#allocation71], 0
      %s684 = sshll.u32 %s103, 4
      %s685 = int_to_ptr.hbm [resolvable:$true] %s684
      %s686 = sshll.u32 [#allocation72], 4
      %s687 = int_to_ptr.vmem [resolvable:$true] %s686
      %692 = dma.hbm_to_vmem [thread:$0]  %s685, 512, %s687, [#allocation71], 128, 128, 8
    $region209: #{update_block_tdu_forward.1} parent=1 // pred_fallthru
      _
    // Predicated region
    $region210: #{update_block_tdu_forward.1} parent=1 // pred_check
      _
    $region211: #{update_block_tdu_forward.1} parent=1 // pred_check_branch
      %694 = sbr.rel (0) target = $region213
    $region212: #{update_block_tdu_forward.1} parent=1 // pred_region
      %696 = vsyncadd [#allocation74], 0
      %s698 = sshll.u32 %s105, 4
      %s699 = int_to_ptr.hbm [resolvable:$true] %s698
      %s700 = sshll.u32 [#allocation73], 4
      %s701 = int_to_ptr.vmem [resolvable:$true] %s700
      %703 = dma.hbm_to_vmem [thread:$0]  %s699, 16, %s701, [#allocation74]
    $region213: #{update_block_tdu_forward.1} parent=1 // pred_fallthru
      _
    // Predicated region
    $region214: #{update_block_tdu_forward.1} parent=1 // pred_check
      _
    $region215: #{update_block_tdu_forward.1} parent=1 // pred_check_branch
      %705 = sbr.rel (0) target = $region217
    $region216: #{update_block_tdu_forward.1} parent=1 // pred_region
      %707 = vsyncadd [#allocation74], 0
      %s709 = sshll.u32 %s107, 4
      %s710 = int_to_ptr.hbm [resolvable:$true] %s709
      %s711 = sshll.u32 [#allocation75], 4
      %s712 = int_to_ptr.vmem [resolvable:$true] %s711
      %714 = dma.hbm_to_vmem [thread:$0]  %s710, 16, %s712, [#allocation74]
    $region217: #{update_block_tdu_forward.1} parent=1 // pred_fallthru
      _
    // Predicated region
    $region218: #{update_block_tdu_forward.1} parent=1 // pred_check
      _
    $region219: #{update_block_tdu_forward.1} parent=1 // pred_check_branch
      %716 = sbr.rel (0) target = $region221
    $region220: #{update_block_tdu_forward.1} parent=1 // pred_region
      %718 = vsyncadd [#allocation77], 0
      %s719 = sshll.u32 %s109, 4
      %s720 = int_to_ptr.hbm [resolvable:$true] %s719
      %s721 = sshll.u32 [#allocation76], 4
      %s722 = int_to_ptr.vmem [resolvable:$true] %s721
      %727 = dma.hbm_to_vmem [thread:$0]  %s720, 256, %s722, [#allocation77], 128, 128, 8
    $region221: #{update_block_tdu_forward.1} parent=1 // pred_fallthru
      _
    // Predicated region
    $region222: #{update_block_tdu_forward.1} parent=1 // pred_check
      _
    $region223: #{update_block_tdu_forward.1} parent=1 // pred_check_branch
      %729 = sbr.rel (0) target = $region225
    $region224: #{update_block_tdu_forward.1} parent=1 // pred_region
      %731 = vsyncadd [#allocation77], 0
      %s732 = sshll.u32 %s111, 4
      %s733 = int_to_ptr.hbm [resolvable:$true] %s732
      %s734 = sshll.u32 [#allocation78], 4
      %s735 = int_to_ptr.vmem [resolvable:$true] %s734
      %740 = dma.hbm_to_vmem [thread:$0]  %s733, 512, %s735, [#allocation77], 128, 128, 8
    $region225: #{update_block_tdu_forward.1} parent=1 // pred_fallthru
      _
    // Predicated region
    $region226: #{update_block_tdu_forward.1} parent=1 // pred_check
      _
    $region227: #{update_block_tdu_forward.1} parent=1 // pred_check_branch
      %742 = sbr.rel (0) target = $region229
    $region228: #{update_block_tdu_forward.1} parent=1 // pred_region
      _
    $region229: #{update_block_tdu_forward.1} parent=1 // pred_fallthru
      _
    // Predicated region
    $region230: #{update_block_tdu_forward.1} parent=1 // pred_check
      _
    $region231: #{update_block_tdu_forward.1} parent=1 // pred_check_branch
      %744 = sbr.rel (0) target = $region233
    $region232: #{update_block_tdu_forward.1} parent=1 // pred_region
      %746 = vsyncadd [#allocation80], 0
      %s748 = sshll.u32 %s115, 4
      %s749 = int_to_ptr.hbm [resolvable:$true] %s748
      %s750 = sshll.u32 [#allocation79], 4
      %s751 = int_to_ptr.vmem [resolvable:$true] %s750
      %753 = dma.hbm_to_vmem [thread:$0]  %s749, 16, %s751, [#allocation80]
    $region233: #{update_block_tdu_forward.1} parent=1 // pred_fallthru
      _
    // Predicated region
    $region234: #{update_block_tdu_forward.1} parent=1 // pred_check
      _
    $region235: #{update_block_tdu_forward.1} parent=1 // pred_check_branch
      %755 = sbr.rel (0) target = $region237
    $region236: #{update_block_tdu_forward.1} parent=1 // pred_region
      %757 = vsyncadd [#allocation80], 0
      %s758 = sshll.u32 %s117, 4
      %s759 = int_to_ptr.hbm [resolvable:$true] %s758
      %s760 = sshll.u32 [#allocation81], 4
      %s761 = int_to_ptr.vmem [resolvable:$true] %s760
      %766 = dma.hbm_to_vmem [thread:$0]  %s759, 256, %s761, [#allocation80], 128, 128, 8
    $region237: #{update_block_tdu_forward.1} parent=1 // pred_fallthru
      _
    // Predicated region
    $region238: #{update_block_tdu_forward.1} parent=1 // pred_check
      _
    $region239: #{update_block_tdu_forward.1} parent=1 // pred_check_branch
      %768 = sbr.rel (0) target = $region241
    $region240: #{update_block_tdu_forward.1} parent=1 // pred_region
      %770 = vsyncadd [#allocation83], 0
      %s771 = sshll.u32 %s119, 4
      %s772 = int_to_ptr.hbm [resolvable:$true] %s771
      %s773 = sshll.u32 [#allocation82], 4
      %s774 = int_to_ptr.vmem [resolvable:$true] %s773
      %779 = dma.hbm_to_vmem [thread:$0]  %s772, 512, %s774, [#allocation83], 128, 128, 8
    $region241: #{update_block_tdu_forward.1} parent=1 // pred_fallthru
      _
    // Predicated region
    $region242: #{update_block_tdu_forward.1} parent=1 // pred_check
      _
    $region243: #{update_block_tdu_forward.1} parent=1 // pred_check_branch
      %781 = sbr.rel (0) target = $region245
    $region244: #{update_block_tdu_forward.1} parent=1 // pred_region
      %783 = vsyncadd [#allocation83], 0
      %s785 = sshll.u32 %s121, 4
      %s786 = int_to_ptr.hbm [resolvable:$true] %s785
      %s787 = sshll.u32 [#allocation84], 4
      %s788 = int_to_ptr.vmem [resolvable:$true] %s787
      %790 = dma.hbm_to_vmem [thread:$0]  %s786, 16, %s788, [#allocation83]
    $region245: #{update_block_tdu_forward.1} parent=1 // pred_fallthru
      _
    // Predicated region
    $region246: #{update_block_tdu_forward.1} parent=1 // pred_check
      _
    $region247: #{update_block_tdu_forward.1} parent=1 // pred_check_branch
      %792 = sbr.rel (0) target = $region249
    $region248: #{update_block_tdu_forward.1} parent=1 // pred_region
      %794 = vsyncadd [#allocation86], 0
      %s795 = sshll.u32 %s123, 4
      %s796 = int_to_ptr.hbm [resolvable:$true] %s795
      %s797 = sshll.u32 [#allocation85], 4
      %s798 = int_to_ptr.vmem [resolvable:$true] %s797
      %803 = dma.hbm_to_vmem [thread:$0]  %s796, 512, %s798, [#allocation86], 128, 128, 8
    $region249: #{update_block_tdu_forward.1} parent=1 // pred_fallthru
      _
    // Predicated region
    $region250: #{update_block_tdu_forward.1} parent=1 // pred_check
      _
    $region251: #{update_block_tdu_forward.1} parent=1 // pred_check_branch
      %805 = sbr.rel (0) target = $region253
    $region252: #{update_block_tdu_forward.1} parent=1 // pred_region
      %807 = vsyncadd [#allocation86], 0
      %s809 = sshll.u32 %s125, 4
      %s810 = int_to_ptr.hbm [resolvable:$true] %s809
      %s811 = sshll.u32 [#allocation87], 4
      %s812 = int_to_ptr.vmem [resolvable:$true] %s811
      %814 = dma.hbm_to_vmem [thread:$0]  %s810, 16, %s812, [#allocation86]
    $region253: #{update_block_tdu_forward.1} parent=1 // pred_fallthru
      _
    // Predicated region
    $region254: #{update_block_tdu_forward.1} parent=1 // pred_check
      _
    $region255: #{update_block_tdu_forward.1} parent=1 // pred_check_branch
      %816 = sbr.rel (0) target = $region257
    $region256: #{update_block_tdu_forward.1} parent=1 // pred_region
      _
    $region257: #{update_block_tdu_forward.1} parent=1 // pred_fallthru
      _
    // Predicated region
    $region258: #{update_block_tdu_forward.1} parent=1 // pred_check
      _
    $region259: #{update_block_tdu_forward.1} parent=1 // pred_check_branch
      %818 = sbr.rel (0) target = $region261
    $region260: #{update_block_tdu_forward.1} parent=1 // pred_region
      %820 = dma.done [#allocation8], 256
    $region261: #{update_block_tdu_forward.1} parent=1 // pred_fallthru
      _
    // Predicated region
    $region262: #{update_block_tdu_forward.1} parent=1 // pred_check
      _
    $region263: #{update_block_tdu_forward.1} parent=1 // pred_check_branch
      %822 = sbr.rel (0) target = $region265
    $region264: #{update_block_tdu_forward.1} parent=1 // pred_region
      %824 = dma.done [#allocation11], 128
    $region265: #{update_block_tdu_forward.1} parent=1 // pred_fallthru
      _
    // Predicated region
    $region266: #{update_block_tdu_forward.1} parent=1 // pred_check
      _
    $region267: #{update_block_tdu_forward.1} parent=1 // pred_check_branch
      %826 = sbr.rel (0) target = $region269
    $region268: #{update_block_tdu_forward.1} parent=1 // pred_region
      %828 = dma.done [#allocation11], 16
    $region269: #{update_block_tdu_forward.1} parent=1 // pred_fallthru
      _
    // Predicated region
    $region270: #{update_block_tdu_forward.1} parent=1 // pred_check
      _
    $region271: #{update_block_tdu_forward.1} parent=1 // pred_check_branch
      %830 = sbr.rel (0) target = $region273
    $region272: #{update_block_tdu_forward.1} parent=1 // pred_region
      %832 = dma.done [#allocation14], 16
    $region273: #{update_block_tdu_forward.1} parent=1 // pred_fallthru
      _
    // Predicated region
    $region274: #{update_block_tdu_forward.1} parent=1 // pred_check
      _
    $region275: #{update_block_tdu_forward.1} parent=1 // pred_check_branch
      %834 = sbr.rel (0) target = $region277
    $region276: #{update_block_tdu_forward.1} parent=1 // pred_region
      %836 = dma.done [#allocation14], 16
    $region277: #{update_block_tdu_forward.1} parent=1 // pred_fallthru
      _
    // Predicated region
    $region278: #{update_block_tdu_forward.1} parent=1 // pred_check
      _
    $region279: #{update_block_tdu_forward.1} parent=1 // pred_check_branch
      %838 = sbr.rel (0) target = $region281
    $region280: #{update_block_tdu_forward.1} parent=1 // pred_region
      %840 = dma.done [#allocation17], 16
    $region281: #{update_block_tdu_forward.1} parent=1 // pred_fallthru
      _
    // Predicated region
    $region282: #{update_block_tdu_forward.1} parent=1 // pred_check
      _
    $region283: #{update_block_tdu_forward.1} parent=1 // pred_check_branch
      %842 = sbr.rel (0) target = $region285
    $region284: #{update_block_tdu_forward.1} parent=1 // pred_region
      %844 = dma.done [#allocation17], 16
    $region285: #{update_block_tdu_forward.1} parent=1 // pred_fallthru
      _
    // Predicated region
    $region286: #{update_block_tdu_forward.1} parent=1 // pred_check
      _
    $region287: #{update_block_tdu_forward.1} parent=1 // pred_check_branch
      %846 = sbr.rel (0) target = $region289
    $region288: #{update_block_tdu_forward.1} parent=1 // pred_region
      %848 = dma.done [#allocation20], 16
    $region289: #{update_block_tdu_forward.1} parent=1 // pred_fallthru
      _
    // Predicated region
    $region290: #{update_block_tdu_forward.1} parent=1 // pred_check
      _
    $region291: #{update_block_tdu_forward.1} parent=1 // pred_check_branch
      %850 = sbr.rel (0) target = $region293
    $region292: #{update_block_tdu_forward.1} parent=1 // pred_region
      %852 = dma.done [#allocation20], 16
    $region293: #{update_block_tdu_forward.1} parent=1 // pred_fallthru
      _
    // Predicated region
    $region294: #{update_block_tdu_forward.1} parent=1 // pred_check
      _
    $region295: #{update_block_tdu_forward.1} parent=1 // pred_check_branch
      %854 = sbr.rel (0) target = $region297
    $region296: #{update_block_tdu_forward.1} parent=1 // pred_region
      %856 = dma.done [#allocation23], 512
    $region297: #{update_block_tdu_forward.1} parent=1 // pred_fallthru
      _
    // Predicated region
    $region298: #{update_block_tdu_forward.1} parent=1 // pred_check
      _
    $region299: #{update_block_tdu_forward.1} parent=1 // pred_check_branch
      %858 = sbr.rel (0) target = $region301
    $region300: #{update_block_tdu_forward.1} parent=1 // pred_region
      %860 = dma.done [#allocation23], 16
    $region301: #{update_block_tdu_forward.1} parent=1 // pred_fallthru
      _
    // Predicated region
    $region302: #{update_block_tdu_forward.1} parent=1 // pred_check
      _
    $region303: #{update_block_tdu_forward.1} parent=1 // pred_check_branch
      %862 = sbr.rel (0) target = $region305
    $region304: #{update_block_tdu_forward.1} parent=1 // pred_region
      %864 = dma.done [#allocation26], 16
    $region305: #{update_block_tdu_forward.1} parent=1 // pred_fallthru
      _
    // Predicated region
    $region306: #{update_block_tdu_forward.1} parent=1 // pred_check
      _
    $region307: #{update_block_tdu_forward.1} parent=1 // pred_check_branch
      %866 = sbr.rel (0) target = $region309
    $region308: #{update_block_tdu_forward.1} parent=1 // pred_region
      %868 = dma.done [#allocation26], 16
    $region309: #{update_block_tdu_forward.1} parent=1 // pred_fallthru
      _
    // Predicated region
    $region310: #{update_block_tdu_forward.1} parent=1 // pred_check
      _
    $region311: #{update_block_tdu_forward.1} parent=1 // pred_check_branch
      %870 = sbr.rel (0) target = $region313
    $region312: #{update_block_tdu_forward.1} parent=1 // pred_region
      %872 = dma.done [#allocation29], 16
    $region313: #{update_block_tdu_forward.1} parent=1 // pred_fallthru
      _
    // Predicated region
    $region314: #{update_block_tdu_forward.1} parent=1 // pred_check
      _
    $region315: #{update_block_tdu_forward.1} parent=1 // pred_check_branch
      %874 = sbr.rel (0) target = $region317
    $region316: #{update_block_tdu_forward.1} parent=1 // pred_region
      %876 = dma.done [#allocation29], 16
    $region317: #{update_block_tdu_forward.1} parent=1 // pred_fallthru
      _
    // Predicated region
    $region318: #{update_block_tdu_forward.1} parent=1 // pred_check
      _
    $region319: #{update_block_tdu_forward.1} parent=1 // pred_check_branch
      %878 = sbr.rel (0) target = $region321
    $region320: #{update_block_tdu_forward.1} parent=1 // pred_region
      %880 = dma.done [#allocation32], 512
    $region321: #{update_block_tdu_forward.1} parent=1 // pred_fallthru
      _
    // Predicated region
    $region322: #{update_block_tdu_forward.1} parent=1 // pred_check
      _
    $region323: #{update_block_tdu_forward.1} parent=1 // pred_check_branch
      %882 = sbr.rel (0) target = $region325
    $region324: #{update_block_tdu_forward.1} parent=1 // pred_region
      %884 = dma.done [#allocation32], 16
    $region325: #{update_block_tdu_forward.1} parent=1 // pred_fallthru
      _
    // Predicated region
    $region326: #{update_block_tdu_forward.1} parent=1 // pred_check
      _
    $region327: #{update_block_tdu_forward.1} parent=1 // pred_check_branch
      %886 = sbr.rel (0) target = $region329
    $region328: #{update_block_tdu_forward.1} parent=1 // pred_region
      %888 = dma.done [#allocation35], 512
    $region329: #{update_block_tdu_forward.1} parent=1 // pred_fallthru
      _
    // Predicated region
    $region330: #{update_block_tdu_forward.1} parent=1 // pred_check
      _
    $region331: #{update_block_tdu_forward.1} parent=1 // pred_check_branch
      %890 = sbr.rel (0) target = $region333
    $region332: #{update_block_tdu_forward.1} parent=1 // pred_region
      %892 = dma.done [#allocation35], 16
    $region333: #{update_block_tdu_forward.1} parent=1 // pred_fallthru
      _
    // Predicated region
    $region334: #{update_block_tdu_forward.1} parent=1 // pred_check
      _
    $region335: #{update_block_tdu_forward.1} parent=1 // pred_check_branch
      %894 = sbr.rel (0) target = $region337
    $region336: #{update_block_tdu_forward.1} parent=1 // pred_region
      %896 = dma.done [#allocation38], 512
    $region337: #{update_block_tdu_forward.1} parent=1 // pred_fallthru
      _
    // Predicated region
    $region338: #{update_block_tdu_forward.1} parent=1 // pred_check
      _
    $region339: #{update_block_tdu_forward.1} parent=1 // pred_check_branch
      %898 = sbr.rel (0) target = $region341
    $region340: #{update_block_tdu_forward.1} parent=1 // pred_region
      %900 = dma.done [#allocation38], 16
    $region341: #{update_block_tdu_forward.1} parent=1 // pred_fallthru
      _
    // Predicated region
    $region342: #{update_block_tdu_forward.1} parent=1 // pred_check
      _
    $region343: #{update_block_tdu_forward.1} parent=1 // pred_check_branch
      %902 = sbr.rel (0) target = $region345
    $region344: #{update_block_tdu_forward.1} parent=1 // pred_region
      %904 = dma.done [#allocation41], 512
    $region345: #{update_block_tdu_forward.1} parent=1 // pred_fallthru
      _
    // Predicated region
    $region346: #{update_block_tdu_forward.1} parent=1 // pred_check
      _
    $region347: #{update_block_tdu_forward.1} parent=1 // pred_check_branch
      %906 = sbr.rel (0) target = $region349
    $region348: #{update_block_tdu_forward.1} parent=1 // pred_region
      %908 = dma.done [#allocation41], 16
    $region349: #{update_block_tdu_forward.1} parent=1 // pred_fallthru
      _
    // Predicated region
    $region350: #{update_block_tdu_forward.1} parent=1 // pred_check
      _
    $region351: #{update_block_tdu_forward.1} parent=1 // pred_check_branch
      %910 = sbr.rel (0) target = $region353
    $region352: #{update_block_tdu_forward.1} parent=1 // pred_region
      %912 = dma.done [#allocation44], 512
    $region353: #{update_block_tdu_forward.1} parent=1 // pred_fallthru
      _
    // Predicated region
    $region354: #{update_block_tdu_forward.1} parent=1 // pred_check
      _
    $region355: #{update_block_tdu_forward.1} parent=1 // pred_check_branch
      %914 = sbr.rel (0) target = $region357
    $region356: #{update_block_tdu_forward.1} parent=1 // pred_region
      %916 = dma.done [#allocation44], 16
    $region357: #{update_block_tdu_forward.1} parent=1 // pred_fallthru
      _
    // Predicated region
    $region358: #{update_block_tdu_forward.1} parent=1 // pred_check
      _
    $region359: #{update_block_tdu_forward.1} parent=1 // pred_check_branch
      %918 = sbr.rel (0) target = $region361
    $region360: #{update_block_tdu_forward.1} parent=1 // pred_region
      %920 = dma.done [#allocation47], 512
    $region361: #{update_block_tdu_forward.1} parent=1 // pred_fallthru
      _
    // Predicated region
    $region362: #{update_block_tdu_forward.1} parent=1 // pred_check
      _
    $region363: #{update_block_tdu_forward.1} parent=1 // pred_check_branch
      %922 = sbr.rel (0) target = $region365
    $region364: #{update_block_tdu_forward.1} parent=1 // pred_region
      %924 = dma.done [#allocation47], 16
    $region365: #{update_block_tdu_forward.1} parent=1 // pred_fallthru
      _
    // Predicated region
    $region366: #{update_block_tdu_forward.1} parent=1 // pred_check
      _
    $region367: #{update_block_tdu_forward.1} parent=1 // pred_check_branch
      %926 = sbr.rel (0) target = $region369
    $region368: #{update_block_tdu_forward.1} parent=1 // pred_region
      %928 = dma.done [#allocation50], 512
    $region369: #{update_block_tdu_forward.1} parent=1 // pred_fallthru
      _
    // Predicated region
    $region370: #{update_block_tdu_forward.1} parent=1 // pred_check
      _
    $region371: #{update_block_tdu_forward.1} parent=1 // pred_check_branch
      %930 = sbr.rel (0) target = $region373
    $region372: #{update_block_tdu_forward.1} parent=1 // pred_region
      %932 = dma.done [#allocation50], 16
    $region373: #{update_block_tdu_forward.1} parent=1 // pred_fallthru
      _
    // Predicated region
    $region374: #{update_block_tdu_forward.1} parent=1 // pred_check
      _
    $region375: #{update_block_tdu_forward.1} parent=1 // pred_check_branch
      %934 = sbr.rel (0) target = $region377
    $region376: #{update_block_tdu_forward.1} parent=1 // pred_region
      %936 = dma.done [#allocation53], 16
    $region377: #{update_block_tdu_forward.1} parent=1 // pred_fallthru
      _
    // Predicated region
    $region378: #{update_block_tdu_forward.1} parent=1 // pred_check
      _
    $region379: #{update_block_tdu_forward.1} parent=1 // pred_check_branch
      %938 = sbr.rel (0) target = $region381
    $region380: #{update_block_tdu_forward.1} parent=1 // pred_region
      %940 = dma.done [#allocation53], 16
    $region381: #{update_block_tdu_forward.1} parent=1 // pred_fallthru
      _
    // Predicated region
    $region382: #{update_block_tdu_forward.1} parent=1 // pred_check
      _
    $region383: #{update_block_tdu_forward.1} parent=1 // pred_check_branch
      %942 = sbr.rel (0) target = $region385
    $region384: #{update_block_tdu_forward.1} parent=1 // pred_region
      %944 = dma.done [#allocation56], 512
    $region385: #{update_block_tdu_forward.1} parent=1 // pred_fallthru
      _
    // Predicated region
    $region386: #{update_block_tdu_forward.1} parent=1 // pred_check
      _
    $region387: #{update_block_tdu_forward.1} parent=1 // pred_check_branch
      %946 = sbr.rel (0) target = $region389
    $region388: #{update_block_tdu_forward.1} parent=1 // pred_region
      %948 = dma.done [#allocation56], 512
    $region389: #{update_block_tdu_forward.1} parent=1 // pred_fallthru
      _
    // Predicated region
    $region390: #{update_block_tdu_forward.1} parent=1 // pred_check
      _
    $region391: #{update_block_tdu_forward.1} parent=1 // pred_check_branch
      %950 = sbr.rel (0) target = $region393
    $region392: #{update_block_tdu_forward.1} parent=1 // pred_region
      %952 = dma.done [#allocation59], 512
    $region393: #{update_block_tdu_forward.1} parent=1 // pred_fallthru
      _
    // Predicated region
    $region394: #{update_block_tdu_forward.1} parent=1 // pred_check
      _
    $region395: #{update_block_tdu_forward.1} parent=1 // pred_check_branch
      %954 = sbr.rel (0) target = $region397
    $region396: #{update_block_tdu_forward.1} parent=1 // pred_region
      %956 = dma.done [#allocation59], 512
    $region397: #{update_block_tdu_forward.1} parent=1 // pred_fallthru
      _
    // Predicated region
    $region398: #{update_block_tdu_forward.1} parent=1 // pred_check
      _
    $region399: #{update_block_tdu_forward.1} parent=1 // pred_check_branch
      %958 = sbr.rel (0) target = $region401
    $region400: #{update_block_tdu_forward.1} parent=1 // pred_region
      %960 = dma.done [#allocation62], 16
    $region401: #{update_block_tdu_forward.1} parent=1 // pred_fallthru
      _
    // Predicated region
    $region402: #{update_block_tdu_forward.1} parent=1 // pred_check
      _
    $region403: #{update_block_tdu_forward.1} parent=1 // pred_check_branch
      %962 = sbr.rel (0) target = $region405
    $region404: #{update_block_tdu_forward.1} parent=1 // pred_region
      %964 = dma.done [#allocation62], 16
    $region405: #{update_block_tdu_forward.1} parent=1 // pred_fallthru
      _
    // Predicated region
    $region406: #{update_block_tdu_forward.1} parent=1 // pred_check
      _
    $region407: #{update_block_tdu_forward.1} parent=1 // pred_check_branch
      %966 = sbr.rel (0) target = $region409
    $region408: #{update_block_tdu_forward.1} parent=1 // pred_region
      %968 = dma.done [#allocation65], 512
    $region409: #{update_block_tdu_forward.1} parent=1 // pred_fallthru
      _
    // Predicated region
    $region410: #{update_block_tdu_forward.1} parent=1 // pred_check
      _
    $region411: #{update_block_tdu_forward.1} parent=1 // pred_check_branch
      %970 = sbr.rel (0) target = $region413
    $region412: #{update_block_tdu_forward.1} parent=1 // pred_region
      %972 = dma.done [#allocation65], 512
    $region413: #{update_block_tdu_forward.1} parent=1 // pred_fallthru
      _
    // Predicated region
    $region414: #{update_block_tdu_forward.1} parent=1 // pred_check
      _
    $region415: #{update_block_tdu_forward.1} parent=1 // pred_check_branch
      %974 = sbr.rel (0) target = $region417
    $region416: #{update_block_tdu_forward.1} parent=1 // pred_region
      %976 = dma.done [#allocation68], 512
    $region417: #{update_block_tdu_forward.1} parent=1 // pred_fallthru
      _
    // Predicated region
    $region418: #{update_block_tdu_forward.1} parent=1 // pred_check
      _
    $region419: #{update_block_tdu_forward.1} parent=1 // pred_check_branch
      %978 = sbr.rel (0) target = $region421
    $region420: #{update_block_tdu_forward.1} parent=1 // pred_region
      %980 = dma.done [#allocation68], 512
    $region421: #{update_block_tdu_forward.1} parent=1 // pred_fallthru
      _
    // Predicated region
    $region422: #{update_block_tdu_forward.1} parent=1 // pred_check
      _
    $region423: #{update_block_tdu_forward.1} parent=1 // pred_check_branch
      %982 = sbr.rel (0) target = $region425
    $region424: #{update_block_tdu_forward.1} parent=1 // pred_region
      %984 = dma.done [#allocation71], 16
    $region425: #{update_block_tdu_forward.1} parent=1 // pred_fallthru
      _
    // Predicated region
    $region426: #{update_block_tdu_forward.1} parent=1 // pred_check
      _
    $region427: #{update_block_tdu_forward.1} parent=1 // pred_check_branch
      %986 = sbr.rel (0) target = $region429
    $region428: #{update_block_tdu_forward.1} parent=1 // pred_region
      %988 = dma.done [#allocation71], 512
    $region429: #{update_block_tdu_forward.1} parent=1 // pred_fallthru
      _
    // Predicated region
    $region430: #{update_block_tdu_forward.1} parent=1 // pred_check
      _
    $region431: #{update_block_tdu_forward.1} parent=1 // pred_check_branch
      %990 = sbr.rel (0) target = $region433
    $region432: #{update_block_tdu_forward.1} parent=1 // pred_region
      %992 = dma.done [#allocation74], 16
    $region433: #{update_block_tdu_forward.1} parent=1 // pred_fallthru
      _
    // Predicated region
    $region434: #{update_block_tdu_forward.1} parent=1 // pred_check
      _
    $region435: #{update_block_tdu_forward.1} parent=1 // pred_check_branch
      %994 = sbr.rel (0) target = $region437
    $region436: #{update_block_tdu_forward.1} parent=1 // pred_region
      %996 = dma.done [#allocation74], 16
    $region437: #{update_block_tdu_forward.1} parent=1 // pred_fallthru
      _
    // Predicated region
    $region438: #{update_block_tdu_forward.1} parent=1 // pred_check
      _
    $region439: #{update_block_tdu_forward.1} parent=1 // pred_check_branch
      %998 = sbr.rel (0) target = $region441
    $region440: #{update_block_tdu_forward.1} parent=1 // pred_region
      %1000 = dma.done [#allocation77], 256
    $region441: #{update_block_tdu_forward.1} parent=1 // pred_fallthru
      _
    // Predicated region
    $region442: #{update_block_tdu_forward.1} parent=1 // pred_check
      _
    $region443: #{update_block_tdu_forward.1} parent=1 // pred_check_branch
      %1002 = sbr.rel (0) target = $region445
    $region444: #{update_block_tdu_forward.1} parent=1 // pred_region
      %1004 = dma.done [#allocation77], 512
    $region445: #{update_block_tdu_forward.1} parent=1 // pred_fallthru
      _
    // Predicated region
    $region446: #{update_block_tdu_forward.1} parent=1 // pred_check
      _
    $region447: #{update_block_tdu_forward.1} parent=1 // pred_check_branch
      %1006 = sbr.rel (0) target = $region449
    $region448: #{update_block_tdu_forward.1} parent=1 // pred_region
      %1008 = dma.done [#allocation80], 16
    $region449: #{update_block_tdu_forward.1} parent=1 // pred_fallthru
      _
    // Predicated region
    $region450: #{update_block_tdu_forward.1} parent=1 // pred_check
      _
    $region451: #{update_block_tdu_forward.1} parent=1 // pred_check_branch
      %1010 = sbr.rel (0) target = $region453
    $region452: #{update_block_tdu_forward.1} parent=1 // pred_region
      %1012 = dma.done [#allocation80], 256
    $region453: #{update_block_tdu_forward.1} parent=1 // pred_fallthru
      _
    // Predicated region
    $region454: #{update_block_tdu_forward.1} parent=1 // pred_check
      _
    $region455: #{update_block_tdu_forward.1} parent=1 // pred_check_branch
      %1014 = sbr.rel (0) target = $region457
    $region456: #{update_block_tdu_forward.1} parent=1 // pred_region
      %1016 = dma.done [#allocation83], 512
    $region457: #{update_block_tdu_forward.1} parent=1 // pred_fallthru
      _
    // Predicated region
    $region458: #{update_block_tdu_forward.1} parent=1 // pred_check
      _
    $region459: #{update_block_tdu_forward.1} parent=1 // pred_check_branch
      %1018 = sbr.rel (0) target = $region461
    $region460: #{update_block_tdu_forward.1} parent=1 // pred_region
      %1020 = dma.done [#allocation83], 16
    $region461: #{update_block_tdu_forward.1} parent=1 // pred_fallthru
      _
    // Predicated region
    $region462: #{update_block_tdu_forward.1} parent=1 // pred_check
      _
    $region463: #{update_block_tdu_forward.1} parent=1 // pred_check_branch
      %1022 = sbr.rel (0) target = $region465
    $region464: #{update_block_tdu_forward.1} parent=1 // pred_region
      %1024 = dma.done [#allocation86], 512
    $region465: #{update_block_tdu_forward.1} parent=1 // pred_fallthru
      _
    // Predicated region
    $region466: #{update_block_tdu_forward.1} parent=1 // pred_check
      _
    $region467: #{update_block_tdu_forward.1} parent=1 // pred_check_branch
      %1026 = sbr.rel (0) target = $region469
    $region468: #{update_block_tdu_forward.1} parent=1 // pred_region
      %1028 = dma.done [#allocation86], 16
    $region469: #{update_block_tdu_forward.1} parent=1 // pred_fallthru
      _
    %v1029 = vld [vmem:[#allocation12] sm:$0x1]
    %v1030 = vld [vmem:[%s11] sm:$0xff]
    %v1031 = vld [vmem:[%s11 + $0x8] sm:$0xff]
    %v1032 = vld [vmem:[%s11 + $0x10] sm:$0xff]
    %v1033 = vld [vmem:[%s11 + $0x18] sm:$0xff]
    %v1034 = vld [vmem:[#allocation13] sm:$0x1]
    %v1035 = vld [vmem:[%s15] sm:$0xff]
    %v1036 = vld [vmem:[%s15 + $0x8] sm:$0xff]
    %v1037 = vld [vmem:[%s15 + $0x10] sm:$0xff]
    %v1038 = vld [vmem:[%s15 + $0x18] sm:$0xff]
    %v1039 = vld [vmem:[#allocation15] sm:$0x1]
    %v1040 = vld [vmem:[%s19] sm:$0xff]
    %v1041 = vld [vmem:[%s19 + $0x8] sm:$0xff]
    %v1042 = vld [vmem:[%s19 + $0x10] sm:$0xff]
    %v1043 = vld [vmem:[%s19 + $0x18] sm:$0xff]
    %v1044 = vld [vmem:[#allocation16] sm:$0x1]
    %v1045 = vld [vmem:[%s23] sm:$0xff]
    %v1046 = vld [vmem:[%s23 + $0x8] sm:$0xff]
    %v1047 = vld [vmem:[%s23 + $0x10] sm:$0xff]
    %v1048 = vld [vmem:[%s23 + $0x18] sm:$0xff]
    %v1049 = vld [vmem:[#allocation18] sm:$0x1]
    %v1050 = vld [vmem:[%s27] sm:$0xff]
    %v1051 = vld [vmem:[%s27 + $0x8] sm:$0xff]
    %v1052 = vld [vmem:[%s27 + $0x10] sm:$0xff]
    %v1053 = vld [vmem:[%s27 + $0x18] sm:$0xff]
    %v1054 = vld [vmem:[#allocation19] sm:$0x1]
    %v1055 = vld [vmem:[%s31] sm:$0xff]
    %v1056 = vld [vmem:[%s31 + $0x8] sm:$0xff]
    %v1057 = vld [vmem:[%s31 + $0x10] sm:$0xff]
    %v1058 = vld [vmem:[%s31 + $0x18] sm:$0xff]
    %v1059 = vld [vmem:[%s31 + $0x20] sm:$0xff]
    %v1060 = vld [vmem:[%s31 + $0x28] sm:$0xff]
    %v1061 = vld [vmem:[%s31 + $0x30] sm:$0xff]
    %v1062 = vld [vmem:[%s31 + $0x38] sm:$0xff]
    %v1063 = vld [vmem:[#allocation21] sm:$0x1]
    %v1064 = vld [vmem:[#allocation22] sm:$0xff]
    %v1065 = vld [vmem:[#allocation22 + $0x8] sm:$0xff]
    %v1066 = vld [vmem:[#allocation22 + $0x10] sm:$0xff]
    %v1067 = vld [vmem:[#allocation22 + $0x18] sm:$0xff]
    %v1068 = vld [vmem:[#allocation24] sm:$0x1]
    %v1069 = vld [vmem:[#allocation25] sm:$0x1]
    %v1070 = vld [vmem:[#allocation27] sm:$0x1]
    %v1071 = vld [vmem:[#allocation28] sm:$0x1]
    %v1072 = vld [vmem:[#allocation30] sm:$0x1]
    %v1073 = vld [vmem:[#allocation31] sm:$0xff]
    %v1074 = vld [vmem:[#allocation31 + $0x8] sm:$0xff]
    %v1075 = vld [vmem:[#allocation31 + $0x10] sm:$0xff]
    %v1076 = vld [vmem:[#allocation31 + $0x18] sm:$0xff]
    %v1077 = vld [vmem:[#allocation33] sm:$0x1]
    %v1078 = vld [vmem:[#allocation34] sm:$0xff]
    %v1079 = vld [vmem:[#allocation34 + $0x8] sm:$0xff]
    %v1080 = vld [vmem:[#allocation34 + $0x10] sm:$0xff]
    %v1081 = vld [vmem:[#allocation34 + $0x18] sm:$0xff]
    %v1082 = vld [vmem:[#allocation36] sm:$0x1]
    %v1083 = vld [vmem:[#allocation37] sm:$0xff]
    %v1084 = vld [vmem:[#allocation37 + $0x8] sm:$0xff]
    %v1085 = vld [vmem:[#allocation37 + $0x10] sm:$0xff]
    %v1086 = vld [vmem:[#allocation37 + $0x18] sm:$0xff]
    %v1087 = vld [vmem:[#allocation39] sm:$0x1]
    %v1088 = vld [vmem:[#allocation40] sm:$0xff]
    %v1089 = vld [vmem:[#allocation40 + $0x8] sm:$0xff]
    %v1090 = vld [vmem:[#allocation40 + $0x10] sm:$0xff]
    %v1091 = vld [vmem:[#allocation40 + $0x18] sm:$0xff]
    %v1092 = vld [vmem:[#allocation42] sm:$0x1]
    %v1093 = vld [vmem:[#allocation43] sm:$0xff]
    %v1094 = vld [vmem:[#allocation43 + $0x8] sm:$0xff]
    %v1095 = vld [vmem:[#allocation43 + $0x10] sm:$0xff]
    %v1096 = vld [vmem:[#allocation43 + $0x18] sm:$0xff]
    %v1097 = vld [vmem:[#allocation45] sm:$0x1]
    %v1098 = vld [vmem:[#allocation46] sm:$0xff]
    %v1099 = vld [vmem:[#allocation46 + $0x8] sm:$0xff]
    %v1100 = vld [vmem:[#allocation46 + $0x10] sm:$0xff]
    %v1101 = vld [vmem:[#allocation46 + $0x18] sm:$0xff]
    %v1102 = vld [vmem:[#allocation48] sm:$0x1]
    %v1103 = vld [vmem:[#allocation49] sm:$0xff]
    %v1104 = vld [vmem:[#allocation49 + $0x8] sm:$0xff]
    %v1105 = vld [vmem:[#allocation49 + $0x10] sm:$0xff]
    %v1106 = vld [vmem:[#allocation49 + $0x18] sm:$0xff]
    %v1107 = vld [vmem:[#allocation51] sm:$0x1]
    %v1108 = vld [vmem:[%s75] sm:$0xff]
    %v1109 = vld [vmem:[%s75 + $0x8] sm:$0xff]
    %v1110 = vld [vmem:[%s75 + $0x10] sm:$0xff]
    %v1111 = vld [vmem:[%s75 + $0x18] sm:$0xff]
    %v1112 = vld [vmem:[#allocation52] sm:$0x1]
    %v1113 = vld [vmem:[#allocation54] sm:$0x1]
    %v1114 = vld [vmem:[#allocation55] sm:$0xff]
    %v1115 = vld [vmem:[#allocation55 + $0x8] sm:$0xff]
    %v1116 = vld [vmem:[#allocation55 + $0x10] sm:$0xff]
    %v1117 = vld [vmem:[#allocation55 + $0x18] sm:$0xff]
    %v1118 = vld [vmem:[#allocation57] sm:$0xff]
    %v1119 = vld [vmem:[#allocation57 + $0x8] sm:$0xff]
    %v1120 = vld [vmem:[#allocation57 + $0x10] sm:$0xff]
    %v1121 = vld [vmem:[#allocation57 + $0x18] sm:$0xff]
    %v1122 = vld [vmem:[#allocation58] sm:$0xff]
    %v1123 = vld [vmem:[#allocation58 + $0x8] sm:$0xff]
    %v1124 = vld [vmem:[#allocation58 + $0x10] sm:$0xff]
    %v1125 = vld [vmem:[#allocation58 + $0x18] sm:$0xff]
    %v1126 = vld [vmem:[#allocation60] sm:$0xff]
    %v1127 = vld [vmem:[#allocation60 + $0x8] sm:$0xff]
    %v1128 = vld [vmem:[#allocation60 + $0x10] sm:$0xff]
    %v1129 = vld [vmem:[#allocation60 + $0x18] sm:$0xff]
    %v1130 = vld [vmem:[#allocation61] sm:$0x1]
    %v1131 = vld [vmem:[#allocation63] sm:$0x1]
    %v1132 = vld [vmem:[#allocation64] sm:$0xff]
    %v1133 = vld [vmem:[#allocation64 + $0x8] sm:$0xff]
    %v1134 = vld [vmem:[#allocation64 + $0x10] sm:$0xff]
    %v1135 = vld [vmem:[#allocation64 + $0x18] sm:$0xff]
    %v1136 = vld [vmem:[#allocation66] sm:$0xff]
    %v1137 = vld [vmem:[#allocation66 + $0x8] sm:$0xff]
    %v1138 = vld [vmem:[#allocation66 + $0x10] sm:$0xff]
    %v1139 = vld [vmem:[#allocation66 + $0x18] sm:$0xff]
    %v1140 = vld [vmem:[#allocation67] sm:$0xff]
    %v1141 = vld [vmem:[#allocation67 + $0x8] sm:$0xff]
    %v1142 = vld [vmem:[#allocation67 + $0x10] sm:$0xff]
    %v1143 = vld [vmem:[#allocation67 + $0x18] sm:$0xff]
    %v1144 = vld [vmem:[#allocation69] sm:$0xff]
    %v1145 = vld [vmem:[#allocation69 + $0x8] sm:$0xff]
    %v1146 = vld [vmem:[#allocation69 + $0x10] sm:$0xff]
    %v1147 = vld [vmem:[#allocation69 + $0x18] sm:$0xff]
    %v1148 = vld [vmem:[#allocation70] sm:$0x1]
    %v1149 = vld [vmem:[#allocation72] sm:$0xff]
    %v1150 = vld [vmem:[#allocation72 + $0x8] sm:$0xff]
    %v1151 = vld [vmem:[#allocation72 + $0x10] sm:$0xff]
    %v1152 = vld [vmem:[#allocation72 + $0x18] sm:$0xff]
    %v1153 = vld [vmem:[#allocation73] sm:$0x1]
    %v1154 = vld [vmem:[#allocation75] sm:$0x1]
    %v1155 = vld [vmem:[#allocation76] sm:$0xff]
    %v1156 = vld [vmem:[#allocation76 + $0x8] sm:$0xff]
    %v1157 = vld [vmem:[#allocation78] sm:$0xff]
    %v1158 = vld [vmem:[#allocation78 + $0x8] sm:$0xff]
    %v1159 = vld [vmem:[#allocation78 + $0x10] sm:$0xff]
    %v1160 = vld [vmem:[#allocation78 + $0x18] sm:$0xff]
    %v1161 = vld [vmem:[%s113] sm:$0x1]
    %v1162 = vld [vmem:[#allocation79] sm:$0x1]
    %v1163 = vld [vmem:[#allocation81] sm:$0xff]
    %v1164 = vld [vmem:[#allocation81 + $0x8] sm:$0xff]
    %v1165 = vld [vmem:[#allocation82] sm:$0xff]
    %v1166 = vld [vmem:[#allocation82 + $0x8] sm:$0xff]
    %v1167 = vld [vmem:[#allocation82 + $0x10] sm:$0xff]
    %v1168 = vld [vmem:[#allocation82 + $0x18] sm:$0xff]
    %v1169 = vld [vmem:[#allocation84] sm:$0x1]
    %v1170 = vld [vmem:[#allocation85] sm:$0xff]
    %v1171 = vld [vmem:[#allocation85 + $0x8] sm:$0xff]
    %v1172 = vld [vmem:[#allocation85 + $0x10] sm:$0xff]
    %v1173 = vld [vmem:[#allocation85 + $0x18] sm:$0xff]
    %v1174 = vld [vmem:[#allocation87] sm:$0x1]
    %v1175 = vld [vmem:[%s127] sm:$0xff]
    %v1176 = vld [vmem:[%s127 + $0x8] sm:$0xff]
    %v1177 = vld [vmem:[%s127 + $0x10] sm:$0xff]
    %v1178 = vld [vmem:[%s127 + $0x18] sm:$0xff]
    %v1179 = vld [vmem:[%s127 + $0x20] sm:$0xff]
    %v1180 = vld [vmem:[%s127 + $0x28] sm:$0xff]
    %v1181 = vld [vmem:[%s127 + $0x30] sm:$0xff]
    %v1182 = vld [vmem:[%s127 + $0x38] sm:$0xff]
    %v1183 = vld [vmem:[%s1] sm:$0xff]
    %v1184 = vld [vmem:[%s1 + $0x8] sm:$0xff]
    %v1185 = vld [vmem:[%s3] sm:$0xff]
    %v1186 = vld [vmem:[#allocation7] sm:$0xff]
    %v1187 = vld [vmem:[#allocation7 + $0x8] sm:$0xff]
    %v1188 = vld [vmem:[#allocation10] sm:$0xff]
    %v1189 = vlaneseq
    %v1190 = vshrl.u32 %v1189, 7
    %v1191 = vadd.s32 %v1190, 8
    %v1192 = vlaneseq
    %v1193 = vand.u32 %v1192, 127
    %vm1194 = vcmp.eq.s32.totalorder %v1190, %v1193
    %vm1195 = vcmp.eq.s32.totalorder %v1191, %v1193
    %v1196 = vsel %vm1194, 1, 0
    %v1197 = vsel %vm1195, 1, 0
    %v1198 = vcvt.s32.f32 %v1196
    %v1199 = vcvt.s32.f32 %v1197
    %vm1200 = vcmp.le.s32.totalorder %v1193, %v1190
    %vm1201 = vcmp.le.s32.totalorder %v1193, %v1191
    %v1202 = vsel %vm1200, 1, 0
    %v1203 = vsel %vm1201, 1, 0
    %v1204 = vcvt.s32.f32 %v1202
    %v1205 = vcvt.s32.f32 %v1203
    %v1206 = vsub.s32 %v1190, 1
    %v1207 = vsub.s32 %v1191, 1
    %vm1208 = vcmp.eq.s32.totalorder %v1193, %v1206
    %vm1209 = vcmp.eq.s32.totalorder %v1193, %v1207
    %v1210 = vsel %vm1208, 1, 0
    %v1211 = vsel %vm1209, 1, 0
    %v1212 = vcvt.s32.f32 %v1210
    %v1213 = vcvt.s32.f32 %v1211
    %vm1214 = vcmp.ge.s32.totalorder %v1193, 27
    %v1215 = vsel %vm1214, %v1183, -1e+30
    %v1216 = vsel %vm1214, %v1184, -1e+30
    %vm1217 = vcmask 261120
    %v1218 = vsel %vm1217, %v1215, -inf
    %1219 = vmax.xlane.f32.xlu0 %v1218
    %v1220 = vpop.xlane.xlu0 %1219
    %v1221 = vsel %vm1217, %v1216, -inf
    %1222 = vmax.xlane.f32.xlu0 %v1221
    %v1223 = vpop.xlane.xlu0 %1222
    %v1224 = vsub.s32 %v1193, 27
    %v1225 = vcvt.s32.f32 %v1224
    %vm1226 = vcmp.eq.f32.partialorder %v1215, %v1220
    %vm1227 = vcmp.eq.f32.partialorder %v1216, %v1223
    %v1228 = vsel %vm1226, %v1225, 5.0
    %v1229 = vsel %vm1227, %v1225, 5.0
    %v1230 = vsel %vm1217, %v1228, inf
    %1231 = vmin.xlane.f32.xlu0 %v1230
    %v1232 = vpop.xlane.xlu0 %1231
    %v1233 = vsel %vm1217, %v1229, inf
    %1234 = vmin.xlane.f32.xlu0 %v1233
    %v1235 = vpop.xlane.xlu0 %1234
    %v1236 = vmul.f32 %v1232, %v1198
    %v1237 = vmul.f32 %v1235, %v1199
    %vm1238 = vcmask 130048
    %v1239 = vsel %vm1238, %v1236, 0.0
    %v1240 = vsel %vm1238, %v1237, 0.0
    %v1241 = vadd.f32 %v1239, %v1240
    %v1242 = vrot.slane %v1241, 4
    %v1243 = vadd.f32 %v1241, %v1242
    %v1244 = vrot.slane %v1243, 2
    %v1245 = vadd.f32 %v1243, %v1244
    %v1246 = vrot.slane %v1245, 1
    %v1247 = vadd.f32 %v1245, %v1246
    %v1248 = vmul.f32 %v1212, %v1247
    %v1249 = vmul.f32 %v1213, %v1247
    %v1250 = vsel %vm1238, %v1248, 0.0
    %1251 = vadd.xlane.f32.xlu0 %v1250
    %v1252 = vpop.xlane.xlu0 %1251
    %v1253 = vsel %vm1238, %v1249, 0.0
    %1254 = vadd.xlane.f32.xlu0 %v1253
    %v1255 = vpop.xlane.xlu0 %1254
    %vm1256 = vcmp.gt.s32.totalorder %v1190, 0
    %vm1257 = vcmp.gt.s32.totalorder %v1191, 0
    %vm1258 = vcmp.ne.f32.partialorder %v1232, %v1252
    %vm1259 = vcmp.ne.f32.partialorder %v1235, %v1255
    %vm1260 = vmand %vm1256, %vm1258
    %vm1261 = vmand %vm1257, %vm1259
    %v1262 = vsel %vm1260, 1.0, 0.0
    %v1263 = vsel %vm1261, 1.0, 0.0
    %v1264 = vmul.f32 %v1262, %v1198
    %v1265 = vmul.f32 %v1263, %v1199
    %v1266 = vsel %vm1238, %v1264, 0.0
    %v1267 = vsel %vm1238, %v1265, 0.0
    %v1268 = vadd.f32 %v1266, %v1267
    %v1269 = vrot.slane %v1268, 4
    %v1270 = vadd.f32 %v1268, %v1269
    %v1271 = vrot.slane %v1270, 2
    %v1272 = vadd.f32 %v1270, %v1271
    %v1273 = vrot.slane %v1272, 1
    %v1274 = vadd.f32 %v1272, %v1273
    %v1275 = vmul.f32 %v1204, %v1274
    %v1276 = vmul.f32 %v1205, %v1274
    %v1277 = vsel %vm1238, %v1275, 0.0
    %1278 = vadd.xlane.f32.xlu0 %v1277
    %v1279 = vpop.xlane.xlu0 %1278
    %v1280 = vsel %vm1238, %v1276, 0.0
    %1281 = vadd.xlane.f32.xlu0 %v1280
    %v1282 = vpop.xlane.xlu0 %1281
    %v1283 = vmul.f32 %v1279, %v1198
    %v1284 = vmul.f32 %v1282, %v1199
    %v1285 = vsel %vm1238, %v1283, 0.0
    %v1286 = vsel %vm1238, %v1284, 0.0
    %v1287 = vadd.f32 %v1285, %v1286
    %v1288 = vrot.slane %v1287, 4
    %v1289 = vadd.f32 %v1287, %v1288
    %v1290 = vrot.slane %v1289, 2
    %v1291 = vadd.f32 %v1289, %v1290
    %v1292 = vrot.slane %v1291, 1
    %v1293 = vadd.f32 %v1291, %v1292
    %v1294 = vcvt.s32.f32 %v1193
    %vm1295 = vcmp.eq.f32.partialorder %v1279, %v1294
    %vm1296 = vcmp.eq.f32.partialorder %v1282, %v1294
    %v1297 = vsel %vm1295, 1, 0
    %v1298 = vsel %vm1296, 1, 0
    %v1299 = vcvt.s32.f32 %v1297
    %v1300 = vcvt.s32.f32 %v1298
    %v1301 = vcvt.s32.f32 %v1190
    %v1302 = vcvt.s32.f32 %v1191
    %vm1303 = vcmp.eq.f32.partialorder %v1301, %v1293
    %vm1304 = vcmp.eq.f32.partialorder %v1302, %v1293
    %v1305 = vsel %vm1303, 1, 0
    %v1306 = vsel %vm1304, 1, 0
    %v1307 = vcvt.s32.f32 %v1305
    %v1308 = vcvt.s32.f32 %v1306
    %v1309 = vsel %vm1238, %v1307, 0.0
    %1310 = vadd.xlane.f32.xlu0 %v1309
    %v1311 = vpop.xlane.xlu0 %1310
    %v1312 = vsel %vm1238, %v1308, 0.0
    %1313 = vadd.xlane.f32.xlu0 %v1312
    %v1314 = vpop.xlane.xlu0 %1313
    %v1315 = vsel %vm1238, %v1299, 0.0
    %v1316 = vsel %vm1238, %v1300, 0.0
    %v1317 = vadd.f32 %v1315, %v1316
    %v1318 = vrot.slane %v1317, 4
    %v1319 = vadd.f32 %v1317, %v1318
    %v1320 = vrot.slane %v1319, 2
    %v1321 = vadd.f32 %v1319, %v1320
    %v1322 = vrot.slane %v1321, 1
    %v1323 = vadd.f32 %v1321, %v1322
    %vm1324 = vcmp.gt.f32.partialorder %v1311, 0.5
    %vm1325 = vcmp.gt.f32.partialorder %v1314, 0.5
    %v1326 = vsel %vm1324, 1, 0
    %v1327 = vsel %vm1325, 1, 0
    %v1328 = vcvt.s32.f32 %v1326
    %v1329 = vcvt.s32.f32 %v1327
    %vm1330 = vcmp.gt.f32.partialorder %v1323, 0.5
    %v1332 = vsel %vm1238, %v1307, 0
    %v1335 = vsel %vm1238, %v1308, 0
    %1337 = vmatpush.msra.mxu0 0.0
    %1338 = vmatpush.msra.mxu0 0.0
    %1339 = vmatpush.msra.mxu0 0.0
    %1340 = vmatpush.msra.mxu0 0.0
    %1341 = vmatpush.msra.mxu0 0.0
    %1342 = vmatpush.msra.mxu0 0.0
    %1343 = vmatpush.msra.mxu0 0.0
    %1344 = vmatpush.msra.mxu0 0.0
    %1345 = vmatpush.msra.mxu0 0.0
    %1346 = vmatpush.msra.mxu0 0.0
    %1347 = vmatpush.msra.mxu0 0.0
    %1348 = vmatpush.msra.mxu0 0.0
    %1349 = vmatpush.msra.mxu0 0.0
    %1350 = vmatpush.msra.mxu0 0.0
    %1351 = vmatpush.msra.mxu0 %v1184
    %1352 = vmatpush.msra.mxu0 %v1183
    %1353 = vmatmul.f32.gmra.mxu0 %v1332
    %v1354 = vpop.f32.mrf.mxu0
    %v1355 = vadd.f32 0.0, %v1354
    %1356 = vmatmul.f32.gmra.mxu0 %v1335
    %v1357 = vpop.f32.mrf.mxu0
    %v1358 = vadd.f32 0.0, %v1357
    %1359 = vdwg.mxu0
    %v1360 = vmax.f32 %v1311, 1.0
    %v1361 = vmax.f32 %v1314, 1.0
    %v1362 = vrcp.pop %v1360
    %v1363 = vmul.f32 %v1360, %v1362
    %v1364 = vsub.f32 1.0, %v1363
    %v1365 = vmul.f32 %v1362, %v1364
    %v1366 = vadd.f32 %v1362, %v1365
    %vm1367 = vweird.f32 %v1360
    %vm1368 = vweird.f32 %v1362
    %vm1369 = vmor %vm1367, %vm1368
    %v1370 = vsel %vm1369, %v1362, %v1366
    %v1371 = vand.u32 2147483647, %v1360
    %vm1372 = vcmp.eq.f32.partialorder %v1371, 8.507059e+37
    %v1373 = vand.u32 %v1360, 2147483648
    %v1374 = vor.u32 1.1754944e-38, %v1373
    %v1375 = vsel %vm1372, %v1374, %v1370
    %v1376 = vmul.f32 %v1355, %v1375
    %v1377 = vrcp.pop %v1361
    %v1378 = vmul.f32 %v1361, %v1377
    %v1379 = vsub.f32 1.0, %v1378
    %v1380 = vmul.f32 %v1377, %v1379
    %v1381 = vadd.f32 %v1377, %v1380
    %vm1382 = vweird.f32 %v1361
    %vm1383 = vweird.f32 %v1377
    %vm1384 = vmor %vm1382, %vm1383
    %v1385 = vsel %vm1384, %v1377, %v1381
    %v1386 = vand.u32 2147483647, %v1361
    %vm1387 = vcmp.eq.f32.partialorder %v1386, 8.507059e+37
    %v1388 = vand.u32 %v1361, 2147483648
    %v1389 = vor.u32 1.1754944e-38, %v1388
    %v1390 = vsel %vm1387, %v1389, %v1385
    %v1391 = vmul.f32 %v1358, %v1390
    %v1392 = vmul.f32 %v1204, %v1323
    %v1393 = vmul.f32 %v1205, %v1323
    %v1394 = vsel %vm1238, %v1392, 0.0
    %1395 = vadd.xlane.f32.xlu0 %v1394
    %v1396 = vpop.xlane.xlu0 %1395
    %v1397 = vsel %vm1238, %v1393, 0.0
    %1398 = vadd.xlane.f32.xlu0 %v1397
    %v1399 = vpop.xlane.xlu0 %1398
    %v1400 = vmul.f32 %v1396, 2.0
    %v1401 = vmul.f32 %v1399, 2.0
    %v1402 = vsub.f32 %v1400, %v1311
    %v1403 = vsub.f32 %v1401, %v1314
    %v1404 = vsub.f32 %v1402, 1.0
    %v1405 = vsub.f32 %v1403, 1.0
    %v1406 = vmul.f32 %v1404, 0.5
    %v1407 = vmul.f32 %v1405, 0.5
    %v1408 = vfloor.f32 %v1406
    %v1409 = vfloor.f32 %v1407
    %vm1410 = vcmp.eq.f32.partialorder %v1408, %v1294
    %vm1411 = vcmp.eq.f32.partialorder %v1409, %v1294
    %v1412 = vsel %vm1410, 1, 0
    %v1413 = vsel %vm1411, 1, 0
    %v1414 = vcvt.s32.f32 %v1412
    %v1415 = vcvt.s32.f32 %v1413
    %v1417 = vsel %vm1238, %v1414, 0
    %v1420 = vsel %vm1238, %v1415, 0
    %1422 = vmatpush.msra.mxu0 0.0
    %1423 = vmatpush.msra.mxu0 0.0
    %1424 = vmatpush.msra.mxu0 0.0
    %1425 = vmatpush.msra.mxu0 0.0
    %1426 = vmatpush.msra.mxu0 0.0
    %1427 = vmatpush.msra.mxu0 0.0
    %1428 = vmatpush.msra.mxu0 0.0
    %1429 = vmatpush.msra.mxu0 0.0
    %1430 = vmatpush.msra.mxu0 0.0
    %1431 = vmatpush.msra.mxu0 0.0
    %1432 = vmatpush.msra.mxu0 0.0
    %1433 = vmatpush.msra.mxu0 0.0
    %1434 = vmatpush.msra.mxu0 0.0
    %1435 = vmatpush.msra.mxu0 0.0
    %1436 = vmatpush.msra.mxu0 %v1187
    %1437 = vmatpush.msra.mxu0 %v1186
    %1438 = vmatmul.f32.gmra.mxu0 %v1417
    %v1439 = vpop.f32.mrf.mxu0
    %v1440 = vadd.f32 0.0, %v1439
    %1441 = vmatmul.f32.gmra.mxu0 %v1420
    %v1442 = vpop.f32.mrf.mxu0
    %v1443 = vadd.f32 0.0, %v1442
    %1444 = vdwg.mxu0
    %vm1445 = vcmask 7168
    %1446 = vst.msk [vmem:[#allocation4] sm:$0xff] %vm1445, %v1328
    %1447 = vst.msk [vmem:[#allocation4 + $0x8] sm:$0xff] %vm1445, %v1329
    %v1449 = vperm.slane %v1162, 0
    %v1452 = vsel %vm1217, %v1376, 0
    %v1455 = vsel %vm1217, %v1391, 0
    %1457 = vmatpush.msra.mxu0 0.0
    %1458 = vmatpush.msra.mxu0 0.0
    %1459 = vmatpush.msra.mxu0 0.0
    %1460 = vmatpush.msra.mxu0 0.0
    %1461 = vmatpush.msra.mxu0 0.0
    %1462 = vmatpush.msra.mxu0 0.0
    %1463 = vmatpush.msra.mxu0 0.0
    %1464 = vmatpush.msra.mxu0 0.0
    %1465 = vmatpush.msra.mxu0 0.0
    %1466 = vmatpush.msra.mxu0 0.0
    %1467 = vmatpush.msra.mxu0 0.0
    %1468 = vmatpush.msra.mxu0 0.0
    %1469 = vmatpush.msra.mxu0 %v1168
    %1470 = vmatpush.msra.mxu0 %v1167
    %1471 = vmatpush.msra.mxu0 %v1166
    %1472 = vmatpush.msra.mxu0 %v1165
    %1473 = vmatmul.f32.gmra.mxu0 %v1452
    %v1474 = vpop.f32.mrf.mxu0
    %v1475 = vadd.f32 %v1449, %v1474
    %1476 = vmatmul.f32.gmra.mxu0 %v1455
    %v1477 = vpop.f32.mrf.mxu0
    %v1478 = vadd.f32 %v1449, %v1477
    %1479 = vdwg.mxu0
    %vm1480 = vcmask 392192
    %1481 = vst.msk [vmem:[#allocation2] sm:$0xff] %vm1480, %v1475
    %1482 = vst.msk [vmem:[#allocation2 + $0x8] sm:$0xff] %vm1480, %v1478
    %v1484 = vperm.slane %v1154, 0
    %1486 = vmatpush.msra.mxu0 0.0
    %1487 = vmatpush.msra.mxu0 0.0
    %1488 = vmatpush.msra.mxu0 0.0
    %1489 = vmatpush.msra.mxu0 0.0
    %1490 = vmatpush.msra.mxu0 0.0
    %1491 = vmatpush.msra.mxu0 0.0
    %1492 = vmatpush.msra.mxu0 0.0
    %1493 = vmatpush.msra.mxu0 0.0
    %1494 = vmatpush.msra.mxu0 0.0
    %1495 = vmatpush.msra.mxu0 0.0
    %1496 = vmatpush.msra.mxu0 0.0
    %1497 = vmatpush.msra.mxu0 0.0
    %1498 = vmatpush.msra.mxu0 %v1160
    %1499 = vmatpush.msra.mxu0 %v1159
    %1500 = vmatpush.msra.mxu0 %v1158
    %1501 = vmatpush.msra.mxu0 %v1157
    %1502 = vmatmul.f32.gmra.mxu0 %v1452
    %v1503 = vpop.f32.mrf.mxu0
    %v1504 = vadd.f32 %v1484, %v1503
    %1505 = vmatmul.f32.gmra.mxu0 %v1455
    %v1506 = vpop.f32.mrf.mxu0
    %v1507 = vadd.f32 %v1484, %v1506
    %1508 = vdwg.mxu0
    %1509 = vst.msk [vmem:[#allocation3] sm:$0xff] %vm1480, %v1504
    %1510 = vst.msk [vmem:[#allocation3 + $0x8] sm:$0xff] %vm1480, %v1507
    loop: start=0, step=1, limit=16
    $region470: #{update_block_tdu_forward.1} parent=1 // loop_pre_header
      _
    $region471: #{update_block_tdu_forward.1} parent=1 // loop_header
      %s1512 = sphi 0, %s1516
      %p1513 = scmp.ge.s32.totalorder %s1512, 16
      %v1517 = vphi 0.0, %v1592
    $region472: #{update_block_tdu_forward.1} parent=1 // loop_header_branch
      %1515 = sbr.rel (%p1513) target = $region476
    $region473: #{update_block_tdu_forward.1} parent=1 // loop_body
      %s1518 = scalar_lea.vmem [#allocation2], %s1512
      %v1519 = vld [vmem:[%s1518] sm:$0x1]
      %s1520 = scalar_lea.vmem [#allocation4], %s1512
      %v1521 = vld [vmem:[%s1520] sm:$0x1]
      %1523 = vrot.lane.b32.xlu0 %v1517, 112
      %v1524 = vpop.permute.xlu0 %1523
      %v1525 = vsel %vm1238, %v1524, 0
      %1527 = vmatpush.msra.mxu0 0.0
      %1528 = vmatpush.msra.mxu0 0.0
      %1529 = vmatpush.msra.mxu0 0.0
      %1530 = vmatpush.msra.mxu0 0.0
      %1531 = vmatpush.msra.mxu0 0.0
      %1532 = vmatpush.msra.mxu0 0.0
      %1533 = vmatpush.msra.mxu0 0.0
      %1534 = vmatpush.msra.mxu0 0.0
      %1535 = vmatpush.msra.mxu0 0.0
      %1536 = vmatpush.msra.mxu0 0.0
      %1537 = vmatpush.msra.mxu0 0.0
      %1538 = vmatpush.msra.mxu0 0.0
      %1539 = vmatpush.msra.mxu0 0.0
      %1540 = vmatpush.msra.mxu0 0.0
      %1541 = vmatpush.msra.mxu0 %v1164
      %1542 = vmatpush.msra.mxu0 %v1163
      %1543 = vmatmul.f32.gmra.mxu0 %v1525
      %v1544 = vpop.f32.mrf.mxu0
      %v1545 = vadd.f32 %v1161, %v1544
      %1546 = vdwg.mxu0
      %v1547 = vadd.f32 %v1519, %v1545
      %v1548 = vxor.u32 %v1547, 2147483648
      %v1549 = vmul.f32 %v1548, 1.442695
      %v1550 = vpow.pop %v1549
      %v1551 = vadd.f32 %v1550, 1.0
      %v1552 = vrcp.pop %v1551
      %v1553 = vmul.f32 %v1551, %v1552
      %v1554 = vsub.f32 1.0, %v1553
      %v1555 = vmul.f32 %v1552, %v1554
      %v1556 = vadd.f32 %v1552, %v1555
      %vm1557 = vweird.f32 %v1551
      %vm1558 = vweird.f32 %v1552
      %vm1559 = vmor %vm1557, %vm1558
      %v1560 = vsel %vm1559, %v1552, %v1556
      %v1561 = vand.u32 2147483647, %v1551
      %vm1562 = vcmp.eq.f32.partialorder %v1561, 8.507059e+37
      %v1563 = vand.u32 %v1551, 2147483648
      %v1564 = vor.u32 1.1754944e-38, %v1563
      %v1565 = vsel %vm1562, %v1564, %v1560
      %v1566 = vmul.f32 1.0, %v1565
      %1568 = vrot.lane.b32.xlu0 %v1545, 96
      %v1569 = vpop.permute.xlu0 %1568
      %v1571 = vmul.f32 %v1566, %v1569
      %1573 = vrot.lane.b32.xlu0 %v1571, 32
      %v1574 = vpop.permute.xlu0 %1573
      %v1576 = vadd.f32 %v1519, %v1574
      %v1577 = vtanh.pop %v1576
      %v1578 = vsub.f32 1.0, %v1566
      %1580 = vrot.lane.b32.xlu0 %v1577, 112
      %v1581 = vpop.permute.xlu0 %1580
      %v1583 = vmul.f32 %v1578, %v1581
      %v1584 = vmul.f32 %v1566, %v1517
      %v1585 = vadd.f32 %v1583, %v1584
      %vm1586 = vcmp.gt.f32.partialorder %v1521, 0.5
      %v1587 = vsel %vm1586, 1, 0
      %1588 = vset.pattern.permute.xlu0 0
      %1589 = vperm.xlu0 %1588, %v1587
      %v1590 = vpop.permute.xlu0 %1589
      %vm1591 = vcmp.eq.s32.totalorder %v1590, 1
      %v1592 = vsel %vm1591, %v1585, %v1517
      %1594 = vrot.lane.b32.xlu0 %v1592, 112
      %v1595 = vpop.permute.xlu0 %1594
      %s1597 = scalar_lea.vmem [#allocation5], %s1512
      %vm1598 = vcmask 122880
      %1599 = vst.msk [vmem:[%s1597] sm:$0x1] %vm1598, %v1595
    $region474: #{update_block_tdu_forward.1} parent=1 // loop_footer
      %s1516 = sadd.s32 1, %s1512
    $region475: #{update_block_tdu_forward.1} parent=1 // loop_footer_branch
      %1511 = sbr.rel target = $region471
    $region476: #{update_block_tdu_forward.1} parent=1 // loop_exit
      _
    loop: start=0, step=1, limit=16
    $region477: #{update_block_tdu_forward.1} parent=1 // loop_pre_header
      _
    $region478: #{update_block_tdu_forward.1} parent=1 // loop_header
      %s1601 = sphi 0, %s1605
      %p1602 = scmp.ge.s32.totalorder %s1601, 16
      %v1606 = vphi 0.0, %v1682
    $region479: #{update_block_tdu_forward.1} parent=1 // loop_header_branch
      %1604 = sbr.rel (%p1602) target = $region483
    $region480: #{update_block_tdu_forward.1} parent=1 // loop_body
      %s1607 = ssub.s32 15, %s1601
      %s1608 = scalar_lea.vmem [#allocation3], %s1607
      %v1609 = vld [vmem:[%s1608] sm:$0x1]
      %s1610 = scalar_lea.vmem [#allocation4], %s1607
      %v1611 = vld [vmem:[%s1610] sm:$0x1]
      %1613 = vrot.lane.b32.xlu0 %v1606, 112
      %v1614 = vpop.permute.xlu0 %1613
      %v1615 = vsel %vm1238, %v1614, 0
      %1617 = vmatpush.msra.mxu0 0.0
      %1618 = vmatpush.msra.mxu0 0.0
      %1619 = vmatpush.msra.mxu0 0.0
      %1620 = vmatpush.msra.mxu0 0.0
      %1621 = vmatpush.msra.mxu0 0.0
      %1622 = vmatpush.msra.mxu0 0.0
      %1623 = vmatpush.msra.mxu0 0.0
      %1624 = vmatpush.msra.mxu0 0.0
      %1625 = vmatpush.msra.mxu0 0.0
      %1626 = vmatpush.msra.mxu0 0.0
      %1627 = vmatpush.msra.mxu0 0.0
      %1628 = vmatpush.msra.mxu0 0.0
      %1629 = vmatpush.msra.mxu0 0.0
      %1630 = vmatpush.msra.mxu0 0.0
      %1631 = vmatpush.msra.mxu0 %v1156
      %1632 = vmatpush.msra.mxu0 %v1155
      %1633 = vmatmul.f32.gmra.mxu0 %v1615
      %v1634 = vpop.f32.mrf.mxu0
      %v1635 = vadd.f32 %v1153, %v1634
      %1636 = vdwg.mxu0
      %v1637 = vadd.f32 %v1609, %v1635
      %v1638 = vxor.u32 %v1637, 2147483648
      %v1639 = vmul.f32 %v1638, 1.442695
      %v1640 = vpow.pop %v1639
      %v1641 = vadd.f32 %v1640, 1.0
      %v1642 = vrcp.pop %v1641
      %v1643 = vmul.f32 %v1641, %v1642
      %v1644 = vsub.f32 1.0, %v1643
      %v1645 = vmul.f32 %v1642, %v1644
      %v1646 = vadd.f32 %v1642, %v1645
      %vm1647 = vweird.f32 %v1641
      %vm1648 = vweird.f32 %v1642
      %vm1649 = vmor %vm1647, %vm1648
      %v1650 = vsel %vm1649, %v1642, %v1646
      %v1651 = vand.u32 2147483647, %v1641
      %vm1652 = vcmp.eq.f32.partialorder %v1651, 8.507059e+37
      %v1653 = vand.u32 %v1641, 2147483648
      %v1654 = vor.u32 1.1754944e-38, %v1653
      %v1655 = vsel %vm1652, %v1654, %v1650
      %v1656 = vmul.f32 1.0, %v1655
      %1658 = vrot.lane.b32.xlu0 %v1635, 96
      %v1659 = vpop.permute.xlu0 %1658
      %v1661 = vmul.f32 %v1656, %v1659
      %1663 = vrot.lane.b32.xlu0 %v1661, 32
      %v1664 = vpop.permute.xlu0 %1663
      %v1666 = vadd.f32 %v1609, %v1664
      %v1667 = vtanh.pop %v1666
      %v1668 = vsub.f32 1.0, %v1656
      %1670 = vrot.lane.b32.xlu0 %v1667, 112
      %v1671 = vpop.permute.xlu0 %1670
      %v1673 = vmul.f32 %v1668, %v1671
      %v1674 = vmul.f32 %v1656, %v1606
      %v1675 = vadd.f32 %v1673, %v1674
      %vm1676 = vcmp.gt.f32.partialorder %v1611, 0.5
      %v1677 = vsel %vm1676, 1, 0
      %1678 = vset.pattern.permute.xlu0 0
      %1679 = vperm.xlu0 %1678, %v1677
      %v1680 = vpop.permute.xlu0 %1679
      %vm1681 = vcmp.eq.s32.totalorder %v1680, 1
      %v1682 = vsel %vm1681, %v1675, %v1606
      %1684 = vrot.lane.b32.xlu0 %v1682, 112
      %v1685 = vpop.permute.xlu0 %1684
      %s1687 = scalar_lea.vmem [#allocation6], %s1607
      %vm1688 = vcmask 122880
      %1689 = vst.msk [vmem:[%s1687] sm:$0x1] %vm1688, %v1685
    $region481: #{update_block_tdu_forward.1} parent=1 // loop_footer
      %s1605 = sadd.s32 1, %s1601
    $region482: #{update_block_tdu_forward.1} parent=1 // loop_footer_branch
      %1600 = sbr.rel target = $region478
    $region483: #{update_block_tdu_forward.1} parent=1 // loop_exit
      _
    %v1690 = vld [vmem:[#allocation5] sm:$0xff]
    %v1691 = vld [vmem:[#allocation5 + $0x8] sm:$0xff]
    %v1692 = vld [vmem:[#allocation6] sm:$0xff]
    %v1693 = vld [vmem:[#allocation6 + $0x8] sm:$0xff]
    %1696 = vrot.lane.b32.xlu0 %v1692, 16
    %v1697 = vpop.permute.xlu0 %1696
    %1698 = vrot.lane.b32.xlu0 %v1693, 16
    %v1699 = vpop.permute.xlu0 %1698
    %v1702 = vsel %vm1238, %v1690, %v1697
    %v1703 = vsel %vm1238, %v1691, %v1699
    %v1704 = vmax.f32 %v1702, 0.0
    %v1705 = vmax.f32 %v1703, 0.0
    %v1707 = vperm.slane %v1169, 0
    %v1710 = vsel %vm1217, %v1704, 0
    %v1713 = vsel %vm1217, %v1705, 0
    %1715 = vmatpush.msra.mxu0 0.0
    %1716 = vmatpush.msra.mxu0 0.0
    %1717 = vmatpush.msra.mxu0 0.0
    %1718 = vmatpush.msra.mxu0 0.0
    %1719 = vmatpush.msra.mxu0 0.0
    %1720 = vmatpush.msra.mxu0 0.0
    %1721 = vmatpush.msra.mxu0 0.0
    %1722 = vmatpush.msra.mxu0 0.0
    %1723 = vmatpush.msra.mxu0 0.0
    %1724 = vmatpush.msra.mxu0 0.0
    %1725 = vmatpush.msra.mxu0 0.0
    %1726 = vmatpush.msra.mxu0 0.0
    %1727 = vmatpush.msra.mxu0 %v1173
    %1728 = vmatpush.msra.mxu0 %v1172
    %1729 = vmatpush.msra.mxu0 %v1171
    %1730 = vmatpush.msra.mxu0 %v1170
    %1731 = vmatmul.f32.gmra.mxu0 %v1710
    %v1732 = vpop.f32.mrf.mxu0
    %v1733 = vadd.f32 %v1707, %v1732
    %1734 = vmatmul.f32.gmra.mxu0 %v1713
    %v1735 = vpop.f32.mrf.mxu0
    %v1736 = vadd.f32 %v1707, %v1735
    %1737 = vdwg.mxu0
    %v1738 = vsel %vm1214, %v1733, -1e+30
    %v1739 = vsel %vm1214, %v1736, -1e+30
    %v1740 = vsel %vm1217, %v1738, -inf
    %1741 = vmax.xlane.f32.xlu0 %v1740
    %v1742 = vpop.xlane.xlu0 %1741
    %v1743 = vsel %vm1217, %v1739, -inf
    %1744 = vmax.xlane.f32.xlu0 %v1743
    %v1745 = vpop.xlane.xlu0 %1744
    %v1746 = vsub.f32 %v1733, %v1742
    %v1747 = vsub.f32 %v1736, %v1745
    %v1748 = vsel %vm1214, %v1746, -1e+30
    %v1749 = vsel %vm1214, %v1747, -1e+30
    %v1750 = vmul.f32 %v1748, 1.442695
    %v1751 = vpow.pop %v1750
    %v1752 = vmul.f32 %v1749, 1.442695
    %v1753 = vpow.pop %v1752
    %v1754 = vsel %vm1217, %v1751, 0.0
    %1755 = vadd.xlane.f32.xlu0 %v1754
    %v1756 = vpop.xlane.xlu0 %1755
    %v1757 = vsel %vm1217, %v1753, 0.0
    %1758 = vadd.xlane.f32.xlu0 %v1757
    %v1759 = vpop.xlane.xlu0 %1758
    %v1760 = vrcp.pop %v1756
    %v1761 = vmul.f32 %v1756, %v1760
    %v1762 = vsub.f32 1.0, %v1761
    %v1763 = vmul.f32 %v1760, %v1762
    %v1764 = vadd.f32 %v1760, %v1763
    %vm1765 = vweird.f32 %v1756
    %vm1766 = vweird.f32 %v1760
    %vm1767 = vmor %vm1765, %vm1766
    %v1768 = vsel %vm1767, %v1760, %v1764
    %v1769 = vand.u32 2147483647, %v1756
    %vm1770 = vcmp.eq.f32.partialorder %v1769, 8.507059e+37
    %v1771 = vand.u32 %v1756, 2147483648
    %v1772 = vor.u32 1.1754944e-38, %v1771
    %v1773 = vsel %vm1770, %v1772, %v1768
    %v1774 = vmul.f32 %v1751, %v1773
    %v1775 = vrcp.pop %v1759
    %v1776 = vmul.f32 %v1759, %v1775
    %v1777 = vsub.f32 1.0, %v1776
    %v1778 = vmul.f32 %v1775, %v1777
    %v1779 = vadd.f32 %v1775, %v1778
    %vm1780 = vweird.f32 %v1759
    %vm1781 = vweird.f32 %v1775
    %vm1782 = vmor %vm1780, %vm1781
    %v1783 = vsel %vm1782, %v1775, %v1779
    %v1784 = vand.u32 2147483647, %v1759
    %vm1785 = vcmp.eq.f32.partialorder %v1784, 8.507059e+37
    %v1786 = vand.u32 %v1759, 2147483648
    %v1787 = vor.u32 1.1754944e-38, %v1786
    %v1788 = vsel %vm1785, %v1787, %v1783
    %v1789 = vmul.f32 %v1753, %v1788
    %v1790 = vsel %vm1214, %v1774, %v1733
    %v1791 = vsel %vm1214, %v1789, %v1736
    %v1792 = vadd.f32 %v1185, %v1188
    %v1794 = vperm.slane %v1102, 0
    %v1797 = vsel %vm1217, %v1792, 0
    %1799 = vmatpush.msra.mxu0 0.0
    %1800 = vmatpush.msra.mxu0 0.0
    %1801 = vmatpush.msra.mxu0 0.0
    %1802 = vmatpush.msra.mxu0 0.0
    %1803 = vmatpush.msra.mxu0 0.0
    %1804 = vmatpush.msra.mxu0 0.0
    %1805 = vmatpush.msra.mxu0 0.0
    %1806 = vmatpush.msra.mxu0 0.0
    %1807 = vmatpush.msra.mxu0 0.0
    %1808 = vmatpush.msra.mxu0 0.0
    %1809 = vmatpush.msra.mxu0 0.0
    %1810 = vmatpush.msra.mxu0 0.0
    %1811 = vmatpush.msra.mxu0 %v1106
    %1812 = vmatpush.msra.mxu0 %v1105
    %1813 = vmatpush.msra.mxu0 %v1104
    %1814 = vmatpush.msra.mxu0 %v1103
    %1815 = vmatmul.f32.gmra.mxu0 %v1797
    %v1816 = vpop.f32.mrf.mxu0
    %v1817 = vadd.f32 %v1794, %v1816
    %1818 = vdwg.mxu0
    %v1819 = vadd.f32 %v1790, %v1440
    %v1820 = vadd.f32 %v1791, %v1443
    %v1822 = vperm.slane %v1092, 0
    %v1825 = vsel %vm1217, %v1819, 0
    %v1828 = vsel %vm1217, %v1820, 0
    %1830 = vmatpush.msra.mxu0 0.0
    %1831 = vmatpush.msra.mxu0 0.0
    %1832 = vmatpush.msra.mxu0 0.0
    %1833 = vmatpush.msra.mxu0 0.0
    %1834 = vmatpush.msra.mxu0 0.0
    %1835 = vmatpush.msra.mxu0 0.0
    %1836 = vmatpush.msra.mxu0 0.0
    %1837 = vmatpush.msra.mxu0 0.0
    %1838 = vmatpush.msra.mxu0 0.0
    %1839 = vmatpush.msra.mxu0 0.0
    %1840 = vmatpush.msra.mxu0 0.0
    %1841 = vmatpush.msra.mxu0 0.0
    %1842 = vmatpush.msra.mxu0 %v1096
    %1843 = vmatpush.msra.mxu0 %v1095
    %1844 = vmatpush.msra.mxu0 %v1094
    %1845 = vmatpush.msra.mxu0 %v1093
    %1846 = vmatmul.f32.gmra.mxu0 %v1825
    %v1847 = vpop.f32.mrf.mxu0
    %v1848 = vadd.f32 %v1822, %v1847
    %1849 = vmatmul.f32.gmra.mxu0 %v1828
    %v1850 = vpop.f32.mrf.mxu0
    %v1851 = vadd.f32 %v1822, %v1850
    %1852 = vdwg.mxu0
    %v1854 = vperm.slane %v1107, 0
    %v1857 = vsel %vm1217, %v1790, 0
    %v1860 = vsel %vm1217, %v1791, 0
    %1862 = vmatpush.msra.mxu0 0.0
    %1863 = vmatpush.msra.mxu0 0.0
    %1864 = vmatpush.msra.mxu0 0.0
    %1865 = vmatpush.msra.mxu0 0.0
    %1866 = vmatpush.msra.mxu0 0.0
    %1867 = vmatpush.msra.mxu0 0.0
    %1868 = vmatpush.msra.mxu0 0.0
    %1869 = vmatpush.msra.mxu0 0.0
    %1870 = vmatpush.msra.mxu0 0.0
    %1871 = vmatpush.msra.mxu0 0.0
    %1872 = vmatpush.msra.mxu0 0.0
    %1873 = vmatpush.msra.mxu0 0.0
    %1874 = vmatpush.msra.mxu0 %v1111
    %1875 = vmatpush.msra.mxu0 %v1110
    %1876 = vmatpush.msra.mxu0 %v1109
    %1877 = vmatpush.msra.mxu0 %v1108
    %1878 = vmatmul.f32.gmra.mxu0 %v1857
    %v1879 = vpop.f32.mrf.mxu0
    %v1880 = vadd.f32 %v1854, %v1879
    %1881 = vmatmul.f32.gmra.mxu0 %v1860
    %v1882 = vpop.f32.mrf.mxu0
    %v1883 = vadd.f32 %v1854, %v1882
    %1884 = vdwg.mxu0
    %v1886 = vsel %vm1217, %v1817, 0
    %v1889 = vsel %vm1217, %v1848, 0
    %v1892 = vsel %vm1217, %v1851, 0
    %1894 = vmatpush.xpose.msra.mxu0 0.0
    %1895 = vmatpush.xpose.msra.mxu0 0.0
    %1896 = vmatpush.xpose.msra.mxu0 0.0
    %1897 = vmatpush.xpose.msra.mxu0 0.0
    %1898 = vmatpush.xpose.msra.mxu0 0.0
    %1899 = vmatpush.xpose.msra.mxu0 0.0
    %1900 = vmatpush.xpose.msra.mxu0 0.0
    %1901 = vmatpush.xpose.msra.mxu0 0.0
    %1902 = vmatpush.xpose.msra.mxu0 0.0
    %1903 = vmatpush.xpose.msra.mxu0 0.0
    %1904 = vmatpush.xpose.msra.mxu0 0.0
    %1905 = vmatpush.xpose.msra.mxu0 0.0
    %1906 = vmatpush.xpose.msra.mxu0 0.0
    %1907 = vmatpush.xpose.msra.mxu0 0.0
    %1908 = vmatpush.xpose.msra.mxu0 %v1892
    %1909 = vmatpush.xpose.msra.mxu0 %v1889
    %1910 = vmatmul.f32.gmra.mxu0 %v1886
    %v1911 = vpop.f32.mrf.mxu0
    %v1912 = vadd.f32 0.0, %v1911
    %1913 = vdwg.mxu0
    %v1914 = vmul.f32 %v1912, 0.17677669
    %v1915 = vsel %vm1330, 1, 0
    %vm1916 = vcmp.eq.s32.totalorder %v1915, 1
    %v1917 = vsel %vm1916, %v1914, -1e+30
    %v1918 = vsel %vm1238, %v1917, -inf
    %1919 = vmax.xlane.f32.xlu0 %v1918
    %v1920 = vpop.xlane.xlu0 %1919
    %v1921 = vsub.f32 %v1917, %v1920
    %v1922 = vmul.f32 %v1921, 1.442695
    %v1923 = vpow.pop %v1922
    %v1924 = vsel %vm1238, %v1923, 0.0
    %1925 = vadd.xlane.f32.xlu0 %v1924
    %v1926 = vpop.xlane.xlu0 %1925
    %v1927 = vrcp.pop %v1926
    %v1928 = vmul.f32 %v1926, %v1927
    %v1929 = vsub.f32 1.0, %v1928
    %v1930 = vmul.f32 %v1927, %v1929
    %v1931 = vadd.f32 %v1927, %v1930
    %vm1932 = vweird.f32 %v1926
    %vm1933 = vweird.f32 %v1927
    %vm1934 = vmor %vm1932, %vm1933
    %v1935 = vsel %vm1934, %v1927, %v1931
    %v1936 = vand.u32 2147483647, %v1926
    %vm1937 = vcmp.eq.f32.partialorder %v1936, 8.507059e+37
    %v1938 = vand.u32 %v1926, 2147483648
    %v1939 = vor.u32 1.1754944e-38, %v1938
    %v1940 = vsel %vm1937, %v1939, %v1935
    %v1941 = vmul.f32 %v1923, %v1940
    %v1943 = vsel %vm1238, %v1941, 0
    %1945 = vmatpush.msra.mxu0 0.0
    %1946 = vmatpush.msra.mxu0 0.0
    %1947 = vmatpush.msra.mxu0 0.0
    %1948 = vmatpush.msra.mxu0 0.0
    %1949 = vmatpush.msra.mxu0 0.0
    %1950 = vmatpush.msra.mxu0 0.0
    %1951 = vmatpush.msra.mxu0 0.0
    %1952 = vmatpush.msra.mxu0 0.0
    %1953 = vmatpush.msra.mxu0 0.0
    %1954 = vmatpush.msra.mxu0 0.0
    %1955 = vmatpush.msra.mxu0 0.0
    %1956 = vmatpush.msra.mxu0 0.0
    %1957 = vmatpush.msra.mxu0 0.0
    %1958 = vmatpush.msra.mxu0 0.0
    %1959 = vmatpush.msra.mxu0 %v1883
    %1960 = vmatpush.msra.mxu0 %v1880
    %1961 = vmatmul.f32.gmra.mxu0 %v1943
    %v1962 = vpop.f32.mrf.mxu0
    %v1963 = vadd.f32 0.0, %v1962
    %1964 = vdwg.mxu0
    %v1966 = vperm.slane %v1097, 0
    %v1969 = vsel %vm1217, %v1963, 0
    %1971 = vmatpush.msra.mxu0 0.0
    %1972 = vmatpush.msra.mxu0 0.0
    %1973 = vmatpush.msra.mxu0 0.0
    %1974 = vmatpush.msra.mxu0 0.0
    %1975 = vmatpush.msra.mxu0 0.0
    %1976 = vmatpush.msra.mxu0 0.0
    %1977 = vmatpush.msra.mxu0 0.0
    %1978 = vmatpush.msra.mxu0 0.0
    %1979 = vmatpush.msra.mxu0 0.0
    %1980 = vmatpush.msra.mxu0 0.0
    %1981 = vmatpush.msra.mxu0 0.0
    %1982 = vmatpush.msra.mxu0 0.0
    %1983 = vmatpush.msra.mxu0 %v1101
    %1984 = vmatpush.msra.mxu0 %v1100
    %1985 = vmatpush.msra.mxu0 %v1099
    %1986 = vmatpush.msra.mxu0 %v1098
    %1987 = vmatmul.f32.gmra.mxu0 %v1969
    %v1988 = vpop.f32.mrf.mxu0
    %v1989 = vadd.f32 %v1966, %v1988
    %1990 = vdwg.mxu0
    %v1991 = vadd.f32 %v1989, %v1188
    %v1993 = vperm.slane %v1077, 0
    %v1996 = vsel %vm1217, %v1991, 0
    %1998 = vmatpush.msra.mxu0 0.0
    %1999 = vmatpush.msra.mxu0 0.0
    %2000 = vmatpush.msra.mxu0 0.0
    %2001 = vmatpush.msra.mxu0 0.0
    %2002 = vmatpush.msra.mxu0 0.0
    %2003 = vmatpush.msra.mxu0 0.0
    %2004 = vmatpush.msra.mxu0 0.0
    %2005 = vmatpush.msra.mxu0 0.0
    %2006 = vmatpush.msra.mxu0 0.0
    %2007 = vmatpush.msra.mxu0 0.0
    %2008 = vmatpush.msra.mxu0 0.0
    %2009 = vmatpush.msra.mxu0 0.0
    %2010 = vmatpush.msra.mxu0 %v1081
    %2011 = vmatpush.msra.mxu0 %v1080
    %2012 = vmatpush.msra.mxu0 %v1079
    %2013 = vmatpush.msra.mxu0 %v1078
    %2014 = vmatmul.f32.gmra.mxu0 %v1996
    %v2015 = vpop.f32.mrf.mxu0
    %v2016 = vadd.f32 %v1993, %v2015
    %2017 = vdwg.mxu0
    %v2019 = vperm.slane %v1063, 0
    %2021 = vmatpush.msra.mxu0 0.0
    %2022 = vmatpush.msra.mxu0 0.0
    %2023 = vmatpush.msra.mxu0 0.0
    %2024 = vmatpush.msra.mxu0 0.0
    %2025 = vmatpush.msra.mxu0 0.0
    %2026 = vmatpush.msra.mxu0 0.0
    %2027 = vmatpush.msra.mxu0 0.0
    %2028 = vmatpush.msra.mxu0 0.0
    %2029 = vmatpush.msra.mxu0 0.0
    %2030 = vmatpush.msra.mxu0 0.0
    %2031 = vmatpush.msra.mxu0 0.0
    %2032 = vmatpush.msra.mxu0 0.0
    %2033 = vmatpush.msra.mxu0 %v1067
    %2034 = vmatpush.msra.mxu0 %v1066
    %2035 = vmatpush.msra.mxu0 %v1065
    %2036 = vmatpush.msra.mxu0 %v1064
    %2037 = vmatmul.f32.gmra.mxu0 %v1996
    %v2038 = vpop.f32.mrf.mxu0
    %v2039 = vadd.f32 %v2019, %v2038
    %2040 = vdwg.mxu0
    %v2042 = vperm.slane %v1082, 0
    %v2045 = vsel %vm1217, %v1989, 0
    %2047 = vmatpush.msra.mxu0 0.0
    %2048 = vmatpush.msra.mxu0 0.0
    %2049 = vmatpush.msra.mxu0 0.0
    %2050 = vmatpush.msra.mxu0 0.0
    %2051 = vmatpush.msra.mxu0 0.0
    %2052 = vmatpush.msra.mxu0 0.0
    %2053 = vmatpush.msra.mxu0 0.0
    %2054 = vmatpush.msra.mxu0 0.0
    %2055 = vmatpush.msra.mxu0 0.0
    %2056 = vmatpush.msra.mxu0 0.0
    %2057 = vmatpush.msra.mxu0 0.0
    %2058 = vmatpush.msra.mxu0 0.0
    %2059 = vmatpush.msra.mxu0 %v1086
    %2060 = vmatpush.msra.mxu0 %v1085
    %2061 = vmatpush.msra.mxu0 %v1084
    %2062 = vmatpush.msra.mxu0 %v1083
    %2063 = vmatmul.f32.gmra.mxu0 %v2045
    %v2064 = vpop.f32.mrf.mxu0
    %v2065 = vadd.f32 %v2042, %v2064
    %2066 = vdwg.mxu0
    %vm2067 = vcmp.ge.s32.totalorder %v1193, 0
    %vm2068 = vcmp.lt.s32.totalorder %v1193, 8
    %vm2069 = vmand %vm2067, %vm2068
    %v2070 = vsel %vm2069, 1, 0
    %v2071 = vcvt.s32.f32 %v2070
    %v2072 = vmul.f32 %v2016, %v2071
    %v2073 = vmul.f32 %v2039, %v2071
    %v2075 = vsel %vm1217, %v2072, 0
    %v2078 = vsel %vm1217, %v2073, 0
    %2080 = vmatpush.xpose.msra.mxu0 0.0
    %2081 = vmatpush.xpose.msra.mxu0 0.0
    %2082 = vmatpush.xpose.msra.mxu0 0.0
    %2083 = vmatpush.xpose.msra.mxu0 0.0
    %2084 = vmatpush.xpose.msra.mxu0 0.0
    %2085 = vmatpush.xpose.msra.mxu0 0.0
    %2086 = vmatpush.xpose.msra.mxu0 0.0
    %2087 = vmatpush.xpose.msra.mxu0 0.0
    %2088 = vmatpush.xpose.msra.mxu0 0.0
    %2089 = vmatpush.xpose.msra.mxu0 0.0
    %2090 = vmatpush.xpose.msra.mxu0 0.0
    %2091 = vmatpush.xpose.msra.mxu0 0.0
    %2092 = vmatpush.xpose.msra.mxu0 0.0
    %2093 = vmatpush.xpose.msra.mxu0 0.0
    %2094 = vmatpush.xpose.msra.mxu0 0.0
    %2095 = vmatpush.xpose.msra.mxu0 %v2078
    %2096 = vmatmul.f32.gmra.mxu0 %v2075
    %v2097 = vpop.f32.mrf.mxu0
    %v2098 = vadd.f32 0.0, %v2097
    %2099 = vdwg.mxu0
    %v2100 = vmul.f32 %v2098, 0.35355338
    %vm2101 = vcmask 64512
    %v2102 = vsel %vm2101, %v2100, -inf
    %2103 = vmax.xlane.f32.xlu0 %v2102
    %v2104 = vpop.xlane.xlu0 %2103
    %v2105 = vsub.f32 %v2100, %v2104
    %v2106 = vmul.f32 %v2105, 1.442695
    %v2107 = vpow.pop %v2106
    %v2108 = vsel %vm2101, %v2107, 0.0
    %2109 = vadd.xlane.f32.xlu0 %v2108
    %v2110 = vpop.xlane.xlu0 %2109
    %v2111 = vrcp.pop %v2110
    %v2112 = vmul.f32 %v2110, %v2111
    %v2113 = vsub.f32 1.0, %v2112
    %v2114 = vmul.f32 %v2111, %v2113
    %v2115 = vadd.f32 %v2111, %v2114
    %vm2116 = vweird.f32 %v2110
    %vm2117 = vweird.f32 %v2111
    %vm2118 = vmor %vm2116, %vm2117
    %v2119 = vsel %vm2118, %v2111, %v2115
    %v2120 = vand.u32 2147483647, %v2110
    %vm2121 = vcmp.eq.f32.partialorder %v2120, 8.507059e+37
    %v2122 = vand.u32 %v2110, 2147483648
    %v2123 = vor.u32 1.1754944e-38, %v2122
    %v2124 = vsel %vm2121, %v2123, %v2119
    %v2125 = vmul.f32 %v2107, %v2124
    %v2126 = vmul.f32 %v2065, %v2071
    %vm2127 = vcmp.ge.s32.totalorder %v1193, 8
    %vm2128 = vcmp.lt.s32.totalorder %v1193, 16
    %vm2129 = vmand %vm2127, %vm2128
    %v2130 = vsel %vm2129, 1, 0
    %v2131 = vcvt.s32.f32 %v2130
    %v2132 = vmul.f32 %v2016, %v2131
    %v2133 = vmul.f32 %v2039, %v2131
    %v2135 = vsel %vm1217, %v2132, 0
    %v2138 = vsel %vm1217, %v2133, 0
    %2140 = vmatpush.xpose.msra.mxu0 0.0
    %2141 = vmatpush.xpose.msra.mxu0 0.0
    %2142 = vmatpush.xpose.msra.mxu0 0.0
    %2143 = vmatpush.xpose.msra.mxu0 0.0
    %2144 = vmatpush.xpose.msra.mxu0 0.0
    %2145 = vmatpush.xpose.msra.mxu0 0.0
    %2146 = vmatpush.xpose.msra.mxu0 0.0
    %2147 = vmatpush.xpose.msra.mxu0 0.0
    %2148 = vmatpush.xpose.msra.mxu0 0.0
    %2149 = vmatpush.xpose.msra.mxu0 0.0
    %2150 = vmatpush.xpose.msra.mxu0 0.0
    %2151 = vmatpush.xpose.msra.mxu0 0.0
    %2152 = vmatpush.xpose.msra.mxu0 0.0
    %2153 = vmatpush.xpose.msra.mxu0 0.0
    %2154 = vmatpush.xpose.msra.mxu0 0.0
    %2155 = vmatpush.xpose.msra.mxu0 %v2138
    %2156 = vmatmul.f32.gmra.mxu0 %v2135
    %v2157 = vpop.f32.mrf.mxu0
    %v2158 = vadd.f32 0.0, %v2157
    %2159 = vdwg.mxu0
    %v2160 = vmul.f32 %v2158, 0.35355338
    %v2161 = vsel %vm2101, %v2160, -inf
    %2162 = vmax.xlane.f32.xlu0 %v2161
    %v2163 = vpop.xlane.xlu0 %2162
    %v2164 = vsub.f32 %v2160, %v2163
    %v2165 = vmul.f32 %v2164, 1.442695
    %v2166 = vpow.pop %v2165
    %v2167 = vsel %vm2101, %v2166, 0.0
    %2168 = vadd.xlane.f32.xlu0 %v2167
    %v2169 = vpop.xlane.xlu0 %2168
    %v2170 = vrcp.pop %v2169
    %v2171 = vmul.f32 %v2169, %v2170
    %v2172 = vsub.f32 1.0, %v2171
    %v2173 = vmul.f32 %v2170, %v2172
    %v2174 = vadd.f32 %v2170, %v2173
    %vm2175 = vweird.f32 %v2169
    %vm2176 = vweird.f32 %v2170
    %vm2177 = vmor %vm2175, %vm2176
    %v2178 = vsel %vm2177, %v2170, %v2174
    %v2179 = vand.u32 2147483647, %v2169
    %vm2180 = vcmp.eq.f32.partialorder %v2179, 8.507059e+37
    %v2181 = vand.u32 %v2169, 2147483648
    %v2182 = vor.u32 1.1754944e-38, %v2181
    %v2183 = vsel %vm2180, %v2182, %v2178
    %v2184 = vmul.f32 %v2166, %v2183
    %v2185 = vmul.f32 %v2065, %v2131
    %v2187 = vsel %vm2101, %v2184, 0
    %2189 = vmatpush.msra.mxu0 0.0
    %2190 = vmatpush.msra.mxu0 0.0
    %2191 = vmatpush.msra.mxu0 0.0
    %2192 = vmatpush.msra.mxu0 0.0
    %2193 = vmatpush.msra.mxu0 0.0
    %2194 = vmatpush.msra.mxu0 0.0
    %2195 = vmatpush.msra.mxu0 0.0
    %2196 = vmatpush.msra.mxu0 0.0
    %2197 = vmatpush.msra.mxu0 0.0
    %2198 = vmatpush.msra.mxu0 0.0
    %2199 = vmatpush.msra.mxu0 0.0
    %2200 = vmatpush.msra.mxu0 0.0
    %2201 = vmatpush.msra.mxu0 0.0
    %2202 = vmatpush.msra.mxu0 0.0
    %2203 = vmatpush.msra.mxu0 0.0
    %2204 = vmatpush.msra.mxu0 %v2185
    %2205 = vmatmul.f32.gmra.mxu0 %v2187
    %v2206 = vpop.f32.mrf.mxu0
    %v2207 = vadd.f32 0.0, %v2206
    %2208 = vdwg.mxu0
    %v2210 = vsel %vm2101, %v2125, 0
    %2212 = vmatpush.msra.mxu0 0.0
    %2213 = vmatpush.msra.mxu0 0.0
    %2214 = vmatpush.msra.mxu0 0.0
    %2215 = vmatpush.msra.mxu0 0.0
    %2216 = vmatpush.msra.mxu0 0.0
    %2217 = vmatpush.msra.mxu0 0.0
    %2218 = vmatpush.msra.mxu0 0.0
    %2219 = vmatpush.msra.mxu0 0.0
    %2220 = vmatpush.msra.mxu0 0.0
    %2221 = vmatpush.msra.mxu0 0.0
    %2222 = vmatpush.msra.mxu0 0.0
    %2223 = vmatpush.msra.mxu0 0.0
    %2224 = vmatpush.msra.mxu0 0.0
    %2225 = vmatpush.msra.mxu0 0.0
    %2226 = vmatpush.msra.mxu0 0.0
    %2227 = vmatpush.msra.mxu0 %v2126
    %2228 = vmatmul.f32.gmra.mxu0 %v2210
    %v2229 = vpop.f32.mrf.mxu0
    %v2230 = vadd.f32 %v2207, %v2229
    %2231 = vdwg.mxu0
    %vm2232 = vcmp.ge.s32.totalorder %v1193, 16
    %vm2233 = vcmp.lt.s32.totalorder %v1193, 24
    %vm2234 = vmand %vm2232, %vm2233
    %v2235 = vsel %vm2234, 1, 0
    %v2236 = vcvt.s32.f32 %v2235
    %v2237 = vmul.f32 %v2016, %v2236
    %v2238 = vmul.f32 %v2039, %v2236
    %v2240 = vsel %vm1217, %v2237, 0
    %v2243 = vsel %vm1217, %v2238, 0
    %2245 = vmatpush.xpose.msra.mxu0 0.0
    %2246 = vmatpush.xpose.msra.mxu0 0.0
    %2247 = vmatpush.xpose.msra.mxu0 0.0
    %2248 = vmatpush.xpose.msra.mxu0 0.0
    %2249 = vmatpush.xpose.msra.mxu0 0.0
    %2250 = vmatpush.xpose.msra.mxu0 0.0
    %2251 = vmatpush.xpose.msra.mxu0 0.0
    %2252 = vmatpush.xpose.msra.mxu0 0.0
    %2253 = vmatpush.xpose.msra.mxu0 0.0
    %2254 = vmatpush.xpose.msra.mxu0 0.0
    %2255 = vmatpush.xpose.msra.mxu0 0.0
    %2256 = vmatpush.xpose.msra.mxu0 0.0
    %2257 = vmatpush.xpose.msra.mxu0 0.0
    %2258 = vmatpush.xpose.msra.mxu0 0.0
    %2259 = vmatpush.xpose.msra.mxu0 0.0
    %2260 = vmatpush.xpose.msra.mxu0 %v2243
    %2261 = vmatmul.f32.gmra.mxu0 %v2240
    %v2262 = vpop.f32.mrf.mxu0
    %v2263 = vadd.f32 0.0, %v2262
    %2264 = vdwg.mxu0
    %v2265 = vmul.f32 %v2263, 0.35355338
    %v2266 = vsel %vm2101, %v2265, -inf
    %2267 = vmax.xlane.f32.xlu0 %v2266
    %v2268 = vpop.xlane.xlu0 %2267
    %v2269 = vsub.f32 %v2265, %v2268
    %v2270 = vmul.f32 %v2269, 1.442695
    %v2271 = vpow.pop %v2270
    %v2272 = vsel %vm2101, %v2271, 0.0
    %2273 = vadd.xlane.f32.xlu0 %v2272
    %v2274 = vpop.xlane.xlu0 %2273
    %v2275 = vrcp.pop %v2274
    %v2276 = vmul.f32 %v2274, %v2275
    %v2277 = vsub.f32 1.0, %v2276
    %v2278 = vmul.f32 %v2275, %v2277
    %v2279 = vadd.f32 %v2275, %v2278
    %vm2280 = vweird.f32 %v2274
    %vm2281 = vweird.f32 %v2275
    %vm2282 = vmor %vm2280, %vm2281
    %v2283 = vsel %vm2282, %v2275, %v2279
    %v2284 = vand.u32 2147483647, %v2274
    %vm2285 = vcmp.eq.f32.partialorder %v2284, 8.507059e+37
    %v2286 = vand.u32 %v2274, 2147483648
    %v2287 = vor.u32 1.1754944e-38, %v2286
    %v2288 = vsel %vm2285, %v2287, %v2283
    %v2289 = vmul.f32 %v2271, %v2288
    %v2290 = vmul.f32 %v2065, %v2236
    %v2292 = vsel %vm2101, %v2289, 0
    %2294 = vmatpush.msra.mxu0 0.0
    %2295 = vmatpush.msra.mxu0 0.0
    %2296 = vmatpush.msra.mxu0 0.0
    %2297 = vmatpush.msra.mxu0 0.0
    %2298 = vmatpush.msra.mxu0 0.0
    %2299 = vmatpush.msra.mxu0 0.0
    %2300 = vmatpush.msra.mxu0 0.0
    %2301 = vmatpush.msra.mxu0 0.0
    %2302 = vmatpush.msra.mxu0 0.0
    %2303 = vmatpush.msra.mxu0 0.0
    %2304 = vmatpush.msra.mxu0 0.0
    %2305 = vmatpush.msra.mxu0 0.0
    %2306 = vmatpush.msra.mxu0 0.0
    %2307 = vmatpush.msra.mxu0 0.0
    %2308 = vmatpush.msra.mxu0 0.0
    %2309 = vmatpush.msra.mxu0 %v2290
    %2310 = vmatmul.f32.gmra.mxu0 %v2292
    %v2311 = vpop.f32.mrf.mxu0
    %v2312 = vadd.f32 0.0, %v2311
    %2313 = vdwg.mxu0
    %v2314 = vadd.f32 %v2230, %v2312
    %vm2315 = vcmp.ge.s32.totalorder %v1193, 24
    %vm2316 = vcmp.lt.s32.totalorder %v1193, 32
    %vm2317 = vmand %vm2315, %vm2316
    %v2318 = vsel %vm2317, 1, 0
    %v2319 = vcvt.s32.f32 %v2318
    %v2320 = vmul.f32 %v2016, %v2319
    %v2321 = vmul.f32 %v2039, %v2319
    %v2323 = vsel %vm1217, %v2320, 0
    %v2326 = vsel %vm1217, %v2321, 0
    %2328 = vmatpush.xpose.msra.mxu0 0.0
    %2329 = vmatpush.xpose.msra.mxu0 0.0
    %2330 = vmatpush.xpose.msra.mxu0 0.0
    %2331 = vmatpush.xpose.msra.mxu0 0.0
    %2332 = vmatpush.xpose.msra.mxu0 0.0
    %2333 = vmatpush.xpose.msra.mxu0 0.0
    %2334 = vmatpush.xpose.msra.mxu0 0.0
    %2335 = vmatpush.xpose.msra.mxu0 0.0
    %2336 = vmatpush.xpose.msra.mxu0 0.0
    %2337 = vmatpush.xpose.msra.mxu0 0.0
    %2338 = vmatpush.xpose.msra.mxu0 0.0
    %2339 = vmatpush.xpose.msra.mxu0 0.0
    %2340 = vmatpush.xpose.msra.mxu0 0.0
    %2341 = vmatpush.xpose.msra.mxu0 0.0
    %2342 = vmatpush.xpose.msra.mxu0 0.0
    %2343 = vmatpush.xpose.msra.mxu0 %v2326
    %2344 = vmatmul.f32.gmra.mxu0 %v2323
    %v2345 = vpop.f32.mrf.mxu0
    %v2346 = vadd.f32 0.0, %v2345
    %2347 = vdwg.mxu0
    %v2348 = vmul.f32 %v2346, 0.35355338
    %v2349 = vsel %vm2101, %v2348, -inf
    %2350 = vmax.xlane.f32.xlu0 %v2349
    %v2351 = vpop.xlane.xlu0 %2350
    %v2352 = vsub.f32 %v2348, %v2351
    %v2353 = vmul.f32 %v2352, 1.442695
    %v2354 = vpow.pop %v2353
    %v2355 = vsel %vm2101, %v2354, 0.0
    %2356 = vadd.xlane.f32.xlu0 %v2355
    %v2357 = vpop.xlane.xlu0 %2356
    %v2358 = vrcp.pop %v2357
    %v2359 = vmul.f32 %v2357, %v2358
    %v2360 = vsub.f32 1.0, %v2359
    %v2361 = vmul.f32 %v2358, %v2360
    %v2362 = vadd.f32 %v2358, %v2361
    %vm2363 = vweird.f32 %v2357
    %vm2364 = vweird.f32 %v2358
    %vm2365 = vmor %vm2363, %vm2364
    %v2366 = vsel %vm2365, %v2358, %v2362
    %v2367 = vand.u32 2147483647, %v2357
    %vm2368 = vcmp.eq.f32.partialorder %v2367, 8.507059e+37
    %v2369 = vand.u32 %v2357, 2147483648
    %v2370 = vor.u32 1.1754944e-38, %v2369
    %v2371 = vsel %vm2368, %v2370, %v2366
    %v2372 = vmul.f32 %v2354, %v2371
    %v2373 = vmul.f32 %v2065, %v2319
    %v2375 = vsel %vm2101, %v2372, 0
    %2377 = vmatpush.msra.mxu0 0.0
    %2378 = vmatpush.msra.mxu0 0.0
    %2379 = vmatpush.msra.mxu0 0.0
    %2380 = vmatpush.msra.mxu0 0.0
    %2381 = vmatpush.msra.mxu0 0.0
    %2382 = vmatpush.msra.mxu0 0.0
    %2383 = vmatpush.msra.mxu0 0.0
    %2384 = vmatpush.msra.mxu0 0.0
    %2385 = vmatpush.msra.mxu0 0.0
    %2386 = vmatpush.msra.mxu0 0.0
    %2387 = vmatpush.msra.mxu0 0.0
    %2388 = vmatpush.msra.mxu0 0.0
    %2389 = vmatpush.msra.mxu0 0.0
    %2390 = vmatpush.msra.mxu0 0.0
    %2391 = vmatpush.msra.mxu0 0.0
    %2392 = vmatpush.msra.mxu0 %v2373
    %2393 = vmatmul.f32.gmra.mxu0 %v2375
    %v2394 = vpop.f32.mrf.mxu0
    %v2395 = vadd.f32 0.0, %v2394
    %2396 = vdwg.mxu0
    %v2397 = vadd.f32 %v2314, %v2395
    %v2399 = vperm.slane %v1072, 0
    %v2402 = vsel %vm1217, %v2397, 0
    %2404 = vmatpush.msra.mxu0 0.0
    %2405 = vmatpush.msra.mxu0 0.0
    %2406 = vmatpush.msra.mxu0 0.0
    %2407 = vmatpush.msra.mxu0 0.0
    %2408 = vmatpush.msra.mxu0 0.0
    %2409 = vmatpush.msra.mxu0 0.0
    %2410 = vmatpush.msra.mxu0 0.0
    %2411 = vmatpush.msra.mxu0 0.0
    %2412 = vmatpush.msra.mxu0 0.0
    %2413 = vmatpush.msra.mxu0 0.0
    %2414 = vmatpush.msra.mxu0 0.0
    %2415 = vmatpush.msra.mxu0 0.0
    %2416 = vmatpush.msra.mxu0 %v1076
    %2417 = vmatpush.msra.mxu0 %v1075
    %2418 = vmatpush.msra.mxu0 %v1074
    %2419 = vmatpush.msra.mxu0 %v1073
    %2420 = vmatmul.f32.gmra.mxu0 %v2402
    %v2421 = vpop.f32.mrf.mxu0
    %v2422 = vadd.f32 %v2399, %v2421
    %2423 = vdwg.mxu0
    %v2424 = vadd.f32 %v1989, %v2422
    %v2425 = vsel %vm1217, %v2424, 0.0
    %2426 = vadd.xlane.f32.xlu0 %v2425
    %v2427 = vpop.xlane.xlu0 %2426
    %v2428 = vrcp.pop 32.0
    %v2429 = vmul.f32 32.0, %v2428
    %v2430 = vsub.f32 1.0, %v2429
    %v2431 = vmul.f32 %v2428, %v2430
    %v2432 = vadd.f32 %v2428, %v2431
    %vm2433 = vweird.f32 %v2428
    %v2434 = vsel %vm2433, %v2428, %v2432
    %v2435 = vmul.f32 %v2427, %v2434
    %v2436 = vsub.f32 %v2424, %v2435
    %v2437 = vmul.f32 %v2436, %v2436
    %v2438 = vsel %vm1217, %v2437, 0.0
    %2439 = vadd.xlane.f32.xlu0 %v2438
    %v2440 = vpop.xlane.xlu0 %2439
    %v2441 = vmul.f32 %v2440, %v2434
    %v2442 = vadd.f32 %v2441, 1e-05
    %v2443 = vrsqrt.pop %v2442
    %v2444 = vmul.f32 %v2443, %v2442
    %v2445 = vmul.f32 %v2444, %v2443
    %v2446 = vmul.f32 0.5, %v2445
    %v2447 = vsub.f32 1.5, %v2446
    %v2448 = vmul.f32 %v2443, %v2447
    %vm2449 = vweird.f32 %v2442
    %vm2450 = vweird.f32 %v2443
    %vm2451 = vmor %vm2449, %vm2450
    %v2452 = vsel %vm2451, %v2443, %v2448
    %v2453 = vmul.f32 %v2436, %v2452
    %v2455 = vperm.slane %v1069, 0
    %v2457 = vmul.f32 %v2453, %v2455
    %v2459 = vperm.slane %v1068, 0
    %v2461 = vadd.f32 %v2457, %v2459
    %v2463 = vperm.slane %v1049, 0
    %v2466 = vsel %vm1217, %v2461, 0
    %2468 = vmatpush.msra.mxu0 0.0
    %2469 = vmatpush.msra.mxu0 0.0
    %2470 = vmatpush.msra.mxu0 0.0
    %2471 = vmatpush.msra.mxu0 0.0
    %2472 = vmatpush.msra.mxu0 0.0
    %2473 = vmatpush.msra.mxu0 0.0
    %2474 = vmatpush.msra.mxu0 0.0
    %2475 = vmatpush.msra.mxu0 0.0
    %2476 = vmatpush.msra.mxu0 0.0
    %2477 = vmatpush.msra.mxu0 0.0
    %2478 = vmatpush.msra.mxu0 0.0
    %2479 = vmatpush.msra.mxu0 0.0
    %2480 = vmatpush.msra.mxu0 %v1053
    %2481 = vmatpush.msra.mxu0 %v1052
    %2482 = vmatpush.msra.mxu0 %v1051
    %2483 = vmatpush.msra.mxu0 %v1050
    %2484 = vmatmul.f32.gmra.mxu0 %v2466
    %v2485 = vpop.f32.mrf.mxu0
    %v2486 = vadd.f32 %v2463, %v2485
    %2487 = vdwg.mxu0
    %v2488 = vmax.f32 %v2486, 0.0
    %v2490 = vperm.slane %v1054, 0
    %vm2492 = vcmask 523264
    %v2494 = vsel %vm2492, %v2488, 0
    %2496 = vmatpush.msra.mxu0 0.0
    %2497 = vmatpush.msra.mxu0 0.0
    %2498 = vmatpush.msra.mxu0 0.0
    %2499 = vmatpush.msra.mxu0 0.0
    %2500 = vmatpush.msra.mxu0 0.0
    %2501 = vmatpush.msra.mxu0 0.0
    %2502 = vmatpush.msra.mxu0 0.0
    %2503 = vmatpush.msra.mxu0 0.0
    %2504 = vmatpush.msra.mxu0 %v1062
    %2505 = vmatpush.msra.mxu0 %v1061
    %2506 = vmatpush.msra.mxu0 %v1060
    %2507 = vmatpush.msra.mxu0 %v1059
    %2508 = vmatpush.msra.mxu0 %v1058
    %2509 = vmatpush.msra.mxu0 %v1057
    %2510 = vmatpush.msra.mxu0 %v1056
    %2511 = vmatpush.msra.mxu0 %v1055
    %2512 = vmatmul.f32.gmra.mxu0 %v2494
    %v2513 = vpop.f32.mrf.mxu0
    %v2514 = vadd.f32 %v2490, %v2513
    %2515 = vdwg.mxu0
    %v2516 = vadd.f32 %v2461, %v2514
    %v2517 = vsel %vm1217, %v2516, 0.0
    %2518 = vadd.xlane.f32.xlu0 %v2517
    %v2519 = vpop.xlane.xlu0 %2518
    %v2520 = vmul.f32 %v2519, %v2434
    %v2521 = vsub.f32 %v2516, %v2520
    %v2522 = vmul.f32 %v2521, %v2521
    %v2523 = vsel %vm1217, %v2522, 0.0
    %2524 = vadd.xlane.f32.xlu0 %v2523
    %v2525 = vpop.xlane.xlu0 %2524
    %v2526 = vmul.f32 %v2525, %v2434
    %v2527 = vadd.f32 %v2526, 1e-05
    %v2528 = vrsqrt.pop %v2527
    %v2529 = vmul.f32 %v2528, %v2527
    %v2530 = vmul.f32 %v2529, %v2528
    %v2531 = vmul.f32 0.5, %v2530
    %v2532 = vsub.f32 1.5, %v2531
    %v2533 = vmul.f32 %v2528, %v2532
    %vm2534 = vweird.f32 %v2527
    %vm2535 = vweird.f32 %v2528
    %vm2536 = vmor %vm2534, %vm2535
    %v2537 = vsel %vm2536, %v2528, %v2533
    %v2538 = vmul.f32 %v2521, %v2537
    %v2540 = vperm.slane %v1071, 0
    %v2542 = vmul.f32 %v2538, %v2540
    %v2544 = vperm.slane %v1070, 0
    %v2546 = vadd.f32 %v2542, %v2544
    %v2548 = vperm.slane %v1087, 0
    %v2551 = vsel %vm1217, %v2546, 0
    %2553 = vmatpush.msra.mxu0 0.0
    %2554 = vmatpush.msra.mxu0 0.0
    %2555 = vmatpush.msra.mxu0 0.0
    %2556 = vmatpush.msra.mxu0 0.0
    %2557 = vmatpush.msra.mxu0 0.0
    %2558 = vmatpush.msra.mxu0 0.0
    %2559 = vmatpush.msra.mxu0 0.0
    %2560 = vmatpush.msra.mxu0 0.0
    %2561 = vmatpush.msra.mxu0 0.0
    %2562 = vmatpush.msra.mxu0 0.0
    %2563 = vmatpush.msra.mxu0 0.0
    %2564 = vmatpush.msra.mxu0 0.0
    %2565 = vmatpush.msra.mxu0 %v1091
    %2566 = vmatpush.msra.mxu0 %v1090
    %2567 = vmatpush.msra.mxu0 %v1089
    %2568 = vmatpush.msra.mxu0 %v1088
    %2569 = vmatmul.f32.gmra.mxu0 %v2551
    %v2570 = vpop.f32.mrf.mxu0
    %v2571 = vadd.f32 %v2548, %v2570
    %2572 = vdwg.mxu0
    %vm2573 = vcmp.ge.s32.totalorder %v1193, 26
    %v2574 = vsel %vm2573, %v2571, -1e+30
    %v2575 = vsel %vm1217, %v2574, -inf
    %2576 = vmax.xlane.f32.xlu0 %v2575
    %v2577 = vpop.xlane.xlu0 %2576
    %v2578 = vsub.f32 %v2571, %v2577
    %v2579 = vsel %vm2573, %v2578, -1e+30
    %v2580 = vmul.f32 %v2579, 1.442695
    %v2581 = vpow.pop %v2580
    %v2582 = vsel %vm1217, %v2581, 0.0
    %2583 = vadd.xlane.f32.xlu0 %v2582
    %v2584 = vpop.xlane.xlu0 %2583
    %v2585 = vrcp.pop %v2584
    %v2586 = vmul.f32 %v2584, %v2585
    %v2587 = vsub.f32 1.0, %v2586
    %v2588 = vmul.f32 %v2585, %v2587
    %v2589 = vadd.f32 %v2585, %v2588
    %vm2590 = vweird.f32 %v2584
    %vm2591 = vweird.f32 %v2585
    %vm2592 = vmor %vm2590, %vm2591
    %v2593 = vsel %vm2592, %v2585, %v2589
    %v2594 = vand.u32 2147483647, %v2584
    %vm2595 = vcmp.eq.f32.partialorder %v2594, 8.507059e+37
    %v2596 = vand.u32 %v2584, 2147483648
    %v2597 = vor.u32 1.1754944e-38, %v2596
    %v2598 = vsel %vm2595, %v2597, %v2593
    %v2599 = vmul.f32 %v2581, %v2598
    %v2600 = vsel %vm2573, %v2599, %v2571
    %v2602 = vperm.slane %v1039, 0
    %2604 = vmatpush.msra.mxu0 0.0
    %2605 = vmatpush.msra.mxu0 0.0
    %2606 = vmatpush.msra.mxu0 0.0
    %2607 = vmatpush.msra.mxu0 0.0
    %2608 = vmatpush.msra.mxu0 0.0
    %2609 = vmatpush.msra.mxu0 0.0
    %2610 = vmatpush.msra.mxu0 0.0
    %2611 = vmatpush.msra.mxu0 0.0
    %2612 = vmatpush.msra.mxu0 0.0
    %2613 = vmatpush.msra.mxu0 0.0
    %2614 = vmatpush.msra.mxu0 0.0
    %2615 = vmatpush.msra.mxu0 0.0
    %2616 = vmatpush.msra.mxu0 %v1043
    %2617 = vmatpush.msra.mxu0 %v1042
    %2618 = vmatpush.msra.mxu0 %v1041
    %2619 = vmatpush.msra.mxu0 %v1040
    %2620 = vmatmul.f32.gmra.mxu0 %v1825
    %v2621 = vpop.f32.mrf.mxu0
    %v2622 = vadd.f32 %v2602, %v2621
    %2623 = vmatmul.f32.gmra.mxu0 %v1828
    %v2624 = vpop.f32.mrf.mxu0
    %v2625 = vadd.f32 %v2602, %v2624
    %2626 = vdwg.mxu0
    %v2627 = vadd.f32 %v2600, %v1188
    %v2629 = vperm.slane %v1029, 0
    %v2632 = vsel %vm1217, %v2627, 0
    %2634 = vmatpush.msra.mxu0 0.0
    %2635 = vmatpush.msra.mxu0 0.0
    %2636 = vmatpush.msra.mxu0 0.0
    %2637 = vmatpush.msra.mxu0 0.0
    %2638 = vmatpush.msra.mxu0 0.0
    %2639 = vmatpush.msra.mxu0 0.0
    %2640 = vmatpush.msra.mxu0 0.0
    %2641 = vmatpush.msra.mxu0 0.0
    %2642 = vmatpush.msra.mxu0 0.0
    %2643 = vmatpush.msra.mxu0 0.0
    %2644 = vmatpush.msra.mxu0 0.0
    %2645 = vmatpush.msra.mxu0 0.0
    %2646 = vmatpush.msra.mxu0 %v1033
    %2647 = vmatpush.msra.mxu0 %v1032
    %2648 = vmatpush.msra.mxu0 %v1031
    %2649 = vmatpush.msra.mxu0 %v1030
    %2650 = vmatmul.f32.gmra.mxu0 %v2632
    %v2651 = vpop.f32.mrf.mxu0
    %v2652 = vadd.f32 %v2629, %v2651
    %2653 = vdwg.mxu0
    %v2655 = vperm.slane %v1044, 0
    %v2658 = vsel %vm1217, %v2600, 0
    %2660 = vmatpush.msra.mxu0 0.0
    %2661 = vmatpush.msra.mxu0 0.0
    %2662 = vmatpush.msra.mxu0 0.0
    %2663 = vmatpush.msra.mxu0 0.0
    %2664 = vmatpush.msra.mxu0 0.0
    %2665 = vmatpush.msra.mxu0 0.0
    %2666 = vmatpush.msra.mxu0 0.0
    %2667 = vmatpush.msra.mxu0 0.0
    %2668 = vmatpush.msra.mxu0 0.0
    %2669 = vmatpush.msra.mxu0 0.0
    %2670 = vmatpush.msra.mxu0 0.0
    %2671 = vmatpush.msra.mxu0 0.0
    %2672 = vmatpush.msra.mxu0 %v1048
    %2673 = vmatpush.msra.mxu0 %v1047
    %2674 = vmatpush.msra.mxu0 %v1046
    %2675 = vmatpush.msra.mxu0 %v1045
    %2676 = vmatmul.f32.gmra.mxu0 %v2658
    %v2677 = vpop.f32.mrf.mxu0
    %v2678 = vadd.f32 %v2655, %v2677
    %2679 = vdwg.mxu0
    %v2681 = vsel %vm1217, %v2622, 0
    %v2684 = vsel %vm1217, %v2625, 0
    %v2687 = vsel %vm1217, %v2652, 0
    %2689 = vmatpush.xpose.msra.mxu0 0.0
    %2690 = vmatpush.xpose.msra.mxu0 0.0
    %2691 = vmatpush.xpose.msra.mxu0 0.0
    %2692 = vmatpush.xpose.msra.mxu0 0.0
    %2693 = vmatpush.xpose.msra.mxu0 0.0
    %2694 = vmatpush.xpose.msra.mxu0 0.0
    %2695 = vmatpush.xpose.msra.mxu0 0.0
    %2696 = vmatpush.xpose.msra.mxu0 0.0
    %2697 = vmatpush.xpose.msra.mxu0 0.0
    %2698 = vmatpush.xpose.msra.mxu0 0.0
    %2699 = vmatpush.xpose.msra.mxu0 0.0
    %2700 = vmatpush.xpose.msra.mxu0 0.0
    %2701 = vmatpush.xpose.msra.mxu0 0.0
    %2702 = vmatpush.xpose.msra.mxu0 0.0
    %2703 = vmatpush.xpose.msra.mxu0 0.0
    %2704 = vmatpush.xpose.msra.mxu0 %v2687
    %2705 = vmatmul.f32.gmra.mxu0 %v2681
    %v2706 = vpop.f32.mrf.mxu0
    %v2707 = vadd.f32 0.0, %v2706
    %2708 = vmatmul.f32.gmra.mxu0 %v2684
    %v2709 = vpop.f32.mrf.mxu0
    %v2710 = vadd.f32 0.0, %v2709
    %2711 = vdwg.mxu0
    %v2712 = vmul.f32 %v2707, 0.17677669
    %v2713 = vmul.f32 %v2710, 0.17677669
    %v2714 = vsel %vm2101, %v2712, -inf
    %2715 = vmax.xlane.f32.xlu0 %v2714
    %v2716 = vpop.xlane.xlu0 %2715
    %v2717 = vsel %vm2101, %v2713, -inf
    %2718 = vmax.xlane.f32.xlu0 %v2717
    %v2719 = vpop.xlane.xlu0 %2718
    %v2720 = vsub.f32 %v2712, %v2716
    %v2721 = vsub.f32 %v2713, %v2719
    %v2722 = vmul.f32 %v2720, 1.442695
    %v2723 = vpow.pop %v2722
    %v2724 = vmul.f32 %v2721, 1.442695
    %v2725 = vpow.pop %v2724
    %v2726 = vsel %vm2101, %v2723, 0.0
    %2727 = vadd.xlane.f32.xlu0 %v2726
    %v2728 = vpop.xlane.xlu0 %2727
    %v2729 = vsel %vm2101, %v2725, 0.0
    %2730 = vadd.xlane.f32.xlu0 %v2729
    %v2731 = vpop.xlane.xlu0 %2730
    %v2732 = vrcp.pop %v2728
    %v2733 = vmul.f32 %v2728, %v2732
    %v2734 = vsub.f32 1.0, %v2733
    %v2735 = vmul.f32 %v2732, %v2734
    %v2736 = vadd.f32 %v2732, %v2735
    %vm2737 = vweird.f32 %v2728
    %vm2738 = vweird.f32 %v2732
    %vm2739 = vmor %vm2737, %vm2738
    %v2740 = vsel %vm2739, %v2732, %v2736
    %v2741 = vand.u32 2147483647, %v2728
    %vm2742 = vcmp.eq.f32.partialorder %v2741, 8.507059e+37
    %v2743 = vand.u32 %v2728, 2147483648
    %v2744 = vor.u32 1.1754944e-38, %v2743
    %v2745 = vsel %vm2742, %v2744, %v2740
    %v2746 = vmul.f32 %v2723, %v2745
    %v2747 = vrcp.pop %v2731
    %v2748 = vmul.f32 %v2731, %v2747
    %v2749 = vsub.f32 1.0, %v2748
    %v2750 = vmul.f32 %v2747, %v2749
    %v2751 = vadd.f32 %v2747, %v2750
    %vm2752 = vweird.f32 %v2731
    %vm2753 = vweird.f32 %v2747
    %vm2754 = vmor %vm2752, %vm2753
    %v2755 = vsel %vm2754, %v2747, %v2751
    %v2756 = vand.u32 2147483647, %v2731
    %vm2757 = vcmp.eq.f32.partialorder %v2756, 8.507059e+37
    %v2758 = vand.u32 %v2731, 2147483648
    %v2759 = vor.u32 1.1754944e-38, %v2758
    %v2760 = vsel %vm2757, %v2759, %v2755
    %v2761 = vmul.f32 %v2725, %v2760
    %v2763 = vsel %vm2101, %v2746, 0
    %v2766 = vsel %vm2101, %v2761, 0
    %2768 = vmatpush.msra.mxu0 0.0
    %2769 = vmatpush.msra.mxu0 0.0
    %2770 = vmatpush.msra.mxu0 0.0
    %2771 = vmatpush.msra.mxu0 0.0
    %2772 = vmatpush.msra.mxu0 0.0
    %2773 = vmatpush.msra.mxu0 0.0
    %2774 = vmatpush.msra.mxu0 0.0
    %2775 = vmatpush.msra.mxu0 0.0
    %2776 = vmatpush.msra.mxu0 0.0
    %2777 = vmatpush.msra.mxu0 0.0
    %2778 = vmatpush.msra.mxu0 0.0
    %2779 = vmatpush.msra.mxu0 0.0
    %2780 = vmatpush.msra.mxu0 0.0
    %2781 = vmatpush.msra.mxu0 0.0
    %2782 = vmatpush.msra.mxu0 0.0
    %2783 = vmatpush.msra.mxu0 %v2678
    %2784 = vmatmul.f32.gmra.mxu0 %v2763
    %v2785 = vpop.f32.mrf.mxu0
    %v2786 = vadd.f32 0.0, %v2785
    %2787 = vmatmul.f32.gmra.mxu0 %v2766
    %v2788 = vpop.f32.mrf.mxu0
    %v2789 = vadd.f32 0.0, %v2788
    %2790 = vdwg.mxu0
    %v2792 = vperm.slane %v1034, 0
    %v2795 = vsel %vm1217, %v2786, 0
    %v2798 = vsel %vm1217, %v2789, 0
    %2800 = vmatpush.msra.mxu0 0.0
    %2801 = vmatpush.msra.mxu0 0.0
    %2802 = vmatpush.msra.mxu0 0.0
    %2803 = vmatpush.msra.mxu0 0.0
    %2804 = vmatpush.msra.mxu0 0.0
    %2805 = vmatpush.msra.mxu0 0.0
    %2806 = vmatpush.msra.mxu0 0.0
    %2807 = vmatpush.msra.mxu0 0.0
    %2808 = vmatpush.msra.mxu0 0.0
    %2809 = vmatpush.msra.mxu0 0.0
    %2810 = vmatpush.msra.mxu0 0.0
    %2811 = vmatpush.msra.mxu0 0.0
    %2812 = vmatpush.msra.mxu0 %v1038
    %2813 = vmatpush.msra.mxu0 %v1037
    %2814 = vmatpush.msra.mxu0 %v1036
    %2815 = vmatpush.msra.mxu0 %v1035
    %2816 = vmatmul.f32.gmra.mxu0 %v2795
    %v2817 = vpop.f32.mrf.mxu0
    %v2818 = vadd.f32 %v2792, %v2817
    %2819 = vmatmul.f32.gmra.mxu0 %v2798
    %v2820 = vpop.f32.mrf.mxu0
    %v2821 = vadd.f32 %v2792, %v2820
    %2822 = vdwg.mxu0
    %v2824 = vsel %vm1238, %v1299, 0
    %v2827 = vsel %vm1238, %v1300, 0
    %2829 = vmatpush.msra.mxu0 0.0
    %2830 = vmatpush.msra.mxu0 0.0
    %2831 = vmatpush.msra.mxu0 0.0
    %2832 = vmatpush.msra.mxu0 0.0
    %2833 = vmatpush.msra.mxu0 0.0
    %2834 = vmatpush.msra.mxu0 0.0
    %2835 = vmatpush.msra.mxu0 0.0
    %2836 = vmatpush.msra.mxu0 0.0
    %2837 = vmatpush.msra.mxu0 0.0
    %2838 = vmatpush.msra.mxu0 0.0
    %2839 = vmatpush.msra.mxu0 0.0
    %2840 = vmatpush.msra.mxu0 0.0
    %2841 = vmatpush.msra.mxu0 0.0
    %2842 = vmatpush.msra.mxu0 0.0
    %2843 = vmatpush.msra.mxu0 %v2821
    %2844 = vmatpush.msra.mxu0 %v2818
    %2845 = vmatmul.f32.gmra.mxu0 %v2824
    %v2846 = vpop.f32.mrf.mxu0
    %v2847 = vadd.f32 0.0, %v2846
    %2848 = vmatmul.f32.gmra.mxu0 %v2827
    %v2849 = vpop.f32.mrf.mxu0
    %v2850 = vadd.f32 0.0, %v2849
    %2851 = vdwg.mxu0
    %v2853 = vsel %vm1217, %v1183, 0
    %v2856 = vsel %vm1217, %v1184, 0
    %2858 = vmatpush.msra.mxu0 0.0
    %2859 = vmatpush.msra.mxu0 0.0
    %2860 = vmatpush.msra.mxu0 0.0
    %2861 = vmatpush.msra.mxu0 0.0
    %2862 = vmatpush.msra.mxu0 0.0
    %2863 = vmatpush.msra.mxu0 0.0
    %2864 = vmatpush.msra.mxu0 0.0
    %2865 = vmatpush.msra.mxu0 0.0
    %2866 = vmatpush.msra.mxu0 0.0
    %2867 = vmatpush.msra.mxu0 0.0
    %2868 = vmatpush.msra.mxu0 0.0
    %2869 = vmatpush.msra.mxu0 0.0
    %2870 = vmatpush.msra.mxu0 %v1182
    %2871 = vmatpush.msra.mxu0 %v1181
    %2872 = vmatpush.msra.mxu0 %v1180
    %2873 = vmatpush.msra.mxu0 %v1179
    %2874 = vmatmul.f32.gmra.mxu0 %v2853
    %v2875 = vpop.f32.mrf.mxu0
    %v2876 = vadd.f32 0.0, %v2875
    %2877 = vmatmul.f32.gmra.mxu0 %v2856
    %v2878 = vpop.f32.mrf.mxu0
    %v2879 = vadd.f32 0.0, %v2878
    %2880 = vdwg.mxu0
    %v2882 = vsel %vm1217, %v2847, 0
    %v2885 = vsel %vm1217, %v2850, 0
    %2887 = vmatpush.msra.mxu0 0.0
    %2888 = vmatpush.msra.mxu0 0.0
    %2889 = vmatpush.msra.mxu0 0.0
    %2890 = vmatpush.msra.mxu0 0.0
    %2891 = vmatpush.msra.mxu0 0.0
    %2892 = vmatpush.msra.mxu0 0.0
    %2893 = vmatpush.msra.mxu0 0.0
    %2894 = vmatpush.msra.mxu0 0.0
    %2895 = vmatpush.msra.mxu0 0.0
    %2896 = vmatpush.msra.mxu0 0.0
    %2897 = vmatpush.msra.mxu0 0.0
    %2898 = vmatpush.msra.mxu0 0.0
    %2899 = vmatpush.msra.mxu0 %v1178
    %2900 = vmatpush.msra.mxu0 %v1177
    %2901 = vmatpush.msra.mxu0 %v1176
    %2902 = vmatpush.msra.mxu0 %v1175
    %2903 = vmatmul.f32.gmra.mxu0 %v2882
    %v2904 = vpop.f32.mrf.mxu0
    %v2905 = vadd.f32 %v2876, %v2904
    %2906 = vmatmul.f32.gmra.mxu0 %v2885
    %v2907 = vpop.f32.mrf.mxu0
    %v2908 = vadd.f32 %v2879, %v2907
    %2909 = vdwg.mxu0
    %v2911 = vperm.slane %v1174, 0
    %v2913 = vadd.f32 %v2905, %v2911
    %v2914 = vadd.f32 %v2908, %v2911
    %v2915 = vmax.f32 %v2913, 0.0
    %v2916 = vmax.f32 %v2914, 0.0
    %v2917 = vadd.s32 %v1190, 1
    %v2918 = vadd.s32 %v1191, 1
    %vm2919 = vcmp.eq.s32.totalorder %v1193, %v2917
    %vm2920 = vcmp.eq.s32.totalorder %v1193, %v2918
    %v2921 = vsel %vm2919, 1, 0
    %v2922 = vsel %vm2920, 1, 0
    %v2923 = vcvt.s32.f32 %v2921
    %v2924 = vcvt.s32.f32 %v2922
    %v2926 = vsel %vm1238, %v1212, 0
    %v2929 = vsel %vm1238, %v1213, 0
    %2931 = vmatpush.msra.mxu0 0.0
    %2932 = vmatpush.msra.mxu0 0.0
    %2933 = vmatpush.msra.mxu0 0.0
    %2934 = vmatpush.msra.mxu0 0.0
    %2935 = vmatpush.msra.mxu0 0.0
    %2936 = vmatpush.msra.mxu0 0.0
    %2937 = vmatpush.msra.mxu0 0.0
    %2938 = vmatpush.msra.mxu0 0.0
    %2939 = vmatpush.msra.mxu0 0.0
    %2940 = vmatpush.msra.mxu0 0.0
    %2941 = vmatpush.msra.mxu0 0.0
    %2942 = vmatpush.msra.mxu0 0.0
    %2943 = vmatpush.msra.mxu0 0.0
    %2944 = vmatpush.msra.mxu0 0.0
    %2945 = vmatpush.msra.mxu0 %v2916
    %2946 = vmatpush.msra.mxu0 %v2915
    %2947 = vmatmul.f32.gmra.mxu0 %v2926
    %v2948 = vpop.f32.mrf.mxu0
    %v2949 = vadd.f32 0.0, %v2948
    %2950 = vmatmul.f32.gmra.mxu0 %v2929
    %v2951 = vpop.f32.mrf.mxu0
    %v2952 = vadd.f32 0.0, %v2951
    %2953 = vdwg.mxu0
    %v2955 = vsel %vm1238, %v2923, 0
    %v2958 = vsel %vm1238, %v2924, 0
    %2960 = vmatpush.msra.mxu0 0.0
    %2961 = vmatpush.msra.mxu0 0.0
    %2962 = vmatpush.msra.mxu0 0.0
    %2963 = vmatpush.msra.mxu0 0.0
    %2964 = vmatpush.msra.mxu0 0.0
    %2965 = vmatpush.msra.mxu0 0.0
    %2966 = vmatpush.msra.mxu0 0.0
    %2967 = vmatpush.msra.mxu0 0.0
    %2968 = vmatpush.msra.mxu0 0.0
    %2969 = vmatpush.msra.mxu0 0.0
    %2970 = vmatpush.msra.mxu0 0.0
    %2971 = vmatpush.msra.mxu0 0.0
    %2972 = vmatpush.msra.mxu0 0.0
    %2973 = vmatpush.msra.mxu0 0.0
    %2974 = vmatpush.msra.mxu0 %v2916
    %2975 = vmatpush.msra.mxu0 %v2915
    %2976 = vmatmul.f32.gmra.mxu0 %v2955
    %v2977 = vpop.f32.mrf.mxu0
    %v2978 = vadd.f32 0.0, %v2977
    %2979 = vmatmul.f32.gmra.mxu0 %v2958
    %v2980 = vpop.f32.mrf.mxu0
    %v2981 = vadd.f32 0.0, %v2980
    %2982 = vdwg.mxu0
    %v2984 = vsel %vm1217, %v2915, 0
    %v2987 = vsel %vm1217, %v2916, 0
    %2989 = vmatpush.msra.mxu0 0.0
    %2990 = vmatpush.msra.mxu0 0.0
    %2991 = vmatpush.msra.mxu0 0.0
    %2992 = vmatpush.msra.mxu0 0.0
    %2993 = vmatpush.msra.mxu0 0.0
    %2994 = vmatpush.msra.mxu0 0.0
    %2995 = vmatpush.msra.mxu0 0.0
    %2996 = vmatpush.msra.mxu0 0.0
    %2997 = vmatpush.msra.mxu0 0.0
    %2998 = vmatpush.msra.mxu0 0.0
    %2999 = vmatpush.msra.mxu0 0.0
    %3000 = vmatpush.msra.mxu0 0.0
    %3001 = vmatpush.msra.mxu0 %v1121
    %3002 = vmatpush.msra.mxu0 %v1120
    %3003 = vmatpush.msra.mxu0 %v1119
    %3004 = vmatpush.msra.mxu0 %v1118
    %3005 = vmatmul.f32.gmra.mxu0 %v2984
    %v3006 = vpop.f32.mrf.mxu0
    %v3007 = vadd.f32 0.0, %v3006
    %3008 = vmatmul.f32.gmra.mxu0 %v2987
    %v3009 = vpop.f32.mrf.mxu0
    %v3010 = vadd.f32 0.0, %v3009
    %3011 = vdwg.mxu0
    %v3013 = vsel %vm1217, %v2949, 0
    %v3016 = vsel %vm1217, %v2952, 0
    %3018 = vmatpush.msra.mxu0 0.0
    %3019 = vmatpush.msra.mxu0 0.0
    %3020 = vmatpush.msra.mxu0 0.0
    %3021 = vmatpush.msra.mxu0 0.0
    %3022 = vmatpush.msra.mxu0 0.0
    %3023 = vmatpush.msra.mxu0 0.0
    %3024 = vmatpush.msra.mxu0 0.0
    %3025 = vmatpush.msra.mxu0 0.0
    %3026 = vmatpush.msra.mxu0 0.0
    %3027 = vmatpush.msra.mxu0 0.0
    %3028 = vmatpush.msra.mxu0 0.0
    %3029 = vmatpush.msra.mxu0 0.0
    %3030 = vmatpush.msra.mxu0 %v1117
    %3031 = vmatpush.msra.mxu0 %v1116
    %3032 = vmatpush.msra.mxu0 %v1115
    %3033 = vmatpush.msra.mxu0 %v1114
    %3034 = vmatmul.f32.gmra.mxu0 %v3013
    %v3035 = vpop.f32.mrf.mxu0
    %v3036 = vadd.f32 %v3007, %v3035
    %3037 = vmatmul.f32.gmra.mxu0 %v3016
    %v3038 = vpop.f32.mrf.mxu0
    %v3039 = vadd.f32 %v3010, %v3038
    %3040 = vdwg.mxu0
    %v3042 = vsel %vm1217, %v2978, 0
    %v3045 = vsel %vm1217, %v2981, 0
    %3047 = vmatpush.msra.mxu0 0.0
    %3048 = vmatpush.msra.mxu0 0.0
    %3049 = vmatpush.msra.mxu0 0.0
    %3050 = vmatpush.msra.mxu0 0.0
    %3051 = vmatpush.msra.mxu0 0.0
    %3052 = vmatpush.msra.mxu0 0.0
    %3053 = vmatpush.msra.mxu0 0.0
    %3054 = vmatpush.msra.mxu0 0.0
    %3055 = vmatpush.msra.mxu0 0.0
    %3056 = vmatpush.msra.mxu0 0.0
    %3057 = vmatpush.msra.mxu0 0.0
    %3058 = vmatpush.msra.mxu0 0.0
    %3059 = vmatpush.msra.mxu0 %v1125
    %3060 = vmatpush.msra.mxu0 %v1124
    %3061 = vmatpush.msra.mxu0 %v1123
    %3062 = vmatpush.msra.mxu0 %v1122
    %3063 = vmatmul.f32.gmra.mxu0 %v3042
    %v3064 = vpop.f32.mrf.mxu0
    %v3065 = vadd.f32 0.0, %v3064
    %3066 = vmatmul.f32.gmra.mxu0 %v3045
    %v3067 = vpop.f32.mrf.mxu0
    %v3068 = vadd.f32 0.0, %v3067
    %3069 = vdwg.mxu0
    %v3070 = vadd.f32 %v3036, %v3065
    %v3071 = vadd.f32 %v3039, %v3068
    %v3073 = vperm.slane %v1112, 0
    %v3075 = vadd.f32 %v3070, %v3073
    %v3076 = vadd.f32 %v3071, %v3073
    %v3077 = vmax.f32 %v3075, 0.0
    %v3078 = vmax.f32 %v3076, 0.0
    %v3080 = vperm.slane %v1113, 0
    %v3083 = vsel %vm1217, %v3077, 0
    %v3086 = vsel %vm1217, %v3078, 0
    %3088 = vmatpush.msra.mxu0 0.0
    %3089 = vmatpush.msra.mxu0 0.0
    %3090 = vmatpush.msra.mxu0 0.0
    %3091 = vmatpush.msra.mxu0 0.0
    %3092 = vmatpush.msra.mxu0 0.0
    %3093 = vmatpush.msra.mxu0 0.0
    %3094 = vmatpush.msra.mxu0 0.0
    %3095 = vmatpush.msra.mxu0 0.0
    %3096 = vmatpush.msra.mxu0 0.0
    %3097 = vmatpush.msra.mxu0 0.0
    %3098 = vmatpush.msra.mxu0 0.0
    %3099 = vmatpush.msra.mxu0 0.0
    %3100 = vmatpush.msra.mxu0 %v1129
    %3101 = vmatpush.msra.mxu0 %v1128
    %3102 = vmatpush.msra.mxu0 %v1127
    %3103 = vmatpush.msra.mxu0 %v1126
    %3104 = vmatmul.f32.gmra.mxu0 %v3083
    %v3105 = vpop.f32.mrf.mxu0
    %v3106 = vadd.f32 %v3080, %v3105
    %3107 = vmatmul.f32.gmra.mxu0 %v3086
    %v3108 = vpop.f32.mrf.mxu0
    %v3109 = vadd.f32 %v3080, %v3108
    %3110 = vdwg.mxu0
    %v3111 = vadd.f32 %v2915, %v3106
    %v3112 = vadd.f32 %v2916, %v3109
    %v3113 = vsub.s32 %v1190, 2
    %v3114 = vsub.s32 %v1191, 2
    %vm3115 = vcmp.eq.s32.totalorder %v1193, %v3113
    %vm3116 = vcmp.eq.s32.totalorder %v1193, %v3114
    %v3117 = vsel %vm3115, 1, 0
    %v3118 = vsel %vm3116, 1, 0
    %v3119 = vcvt.s32.f32 %v3117
    %v3120 = vcvt.s32.f32 %v3118
    %v3121 = vadd.s32 %v1190, 2
    %v3122 = vadd.s32 %v1191, 2
    %vm3123 = vcmp.eq.s32.totalorder %v1193, %v3121
    %vm3124 = vcmp.eq.s32.totalorder %v1193, %v3122
    %v3125 = vsel %vm3123, 1, 0
    %v3126 = vsel %vm3124, 1, 0
    %v3127 = vcvt.s32.f32 %v3125
    %v3128 = vcvt.s32.f32 %v3126
    %v3130 = vsel %vm1238, %v3119, 0
    %v3133 = vsel %vm1238, %v3120, 0
    %3135 = vmatpush.msra.mxu0 0.0
    %3136 = vmatpush.msra.mxu0 0.0
    %3137 = vmatpush.msra.mxu0 0.0
    %3138 = vmatpush.msra.mxu0 0.0
    %3139 = vmatpush.msra.mxu0 0.0
    %3140 = vmatpush.msra.mxu0 0.0
    %3141 = vmatpush.msra.mxu0 0.0
    %3142 = vmatpush.msra.mxu0 0.0
    %3143 = vmatpush.msra.mxu0 0.0
    %3144 = vmatpush.msra.mxu0 0.0
    %3145 = vmatpush.msra.mxu0 0.0
    %3146 = vmatpush.msra.mxu0 0.0
    %3147 = vmatpush.msra.mxu0 0.0
    %3148 = vmatpush.msra.mxu0 0.0
    %3149 = vmatpush.msra.mxu0 %v3112
    %3150 = vmatpush.msra.mxu0 %v3111
    %3151 = vmatmul.f32.gmra.mxu0 %v3130
    %v3152 = vpop.f32.mrf.mxu0
    %v3153 = vadd.f32 0.0, %v3152
    %3154 = vmatmul.f32.gmra.mxu0 %v3133
    %v3155 = vpop.f32.mrf.mxu0
    %v3156 = vadd.f32 0.0, %v3155
    %3157 = vdwg.mxu0
    %v3159 = vsel %vm1238, %v3127, 0
    %v3162 = vsel %vm1238, %v3128, 0
    %3164 = vmatpush.msra.mxu0 0.0
    %3165 = vmatpush.msra.mxu0 0.0
    %3166 = vmatpush.msra.mxu0 0.0
    %3167 = vmatpush.msra.mxu0 0.0
    %3168 = vmatpush.msra.mxu0 0.0
    %3169 = vmatpush.msra.mxu0 0.0
    %3170 = vmatpush.msra.mxu0 0.0
    %3171 = vmatpush.msra.mxu0 0.0
    %3172 = vmatpush.msra.mxu0 0.0
    %3173 = vmatpush.msra.mxu0 0.0
    %3174 = vmatpush.msra.mxu0 0.0
    %3175 = vmatpush.msra.mxu0 0.0
    %3176 = vmatpush.msra.mxu0 0.0
    %3177 = vmatpush.msra.mxu0 0.0
    %3178 = vmatpush.msra.mxu0 %v3112
    %3179 = vmatpush.msra.mxu0 %v3111
    %3180 = vmatmul.f32.gmra.mxu0 %v3159
    %v3181 = vpop.f32.mrf.mxu0
    %v3182 = vadd.f32 0.0, %v3181
    %3183 = vmatmul.f32.gmra.mxu0 %v3162
    %v3184 = vpop.f32.mrf.mxu0
    %v3185 = vadd.f32 0.0, %v3184
    %3186 = vdwg.mxu0
    %v3188 = vsel %vm1217, %v3111, 0
    %v3191 = vsel %vm1217, %v3112, 0
    %3193 = vmatpush.msra.mxu0 0.0
    %3194 = vmatpush.msra.mxu0 0.0
    %3195 = vmatpush.msra.mxu0 0.0
    %3196 = vmatpush.msra.mxu0 0.0
    %3197 = vmatpush.msra.mxu0 0.0
    %3198 = vmatpush.msra.mxu0 0.0
    %3199 = vmatpush.msra.mxu0 0.0
    %3200 = vmatpush.msra.mxu0 0.0
    %3201 = vmatpush.msra.mxu0 0.0
    %3202 = vmatpush.msra.mxu0 0.0
    %3203 = vmatpush.msra.mxu0 0.0
    %3204 = vmatpush.msra.mxu0 0.0
    %3205 = vmatpush.msra.mxu0 %v1139
    %3206 = vmatpush.msra.mxu0 %v1138
    %3207 = vmatpush.msra.mxu0 %v1137
    %3208 = vmatpush.msra.mxu0 %v1136
    %3209 = vmatmul.f32.gmra.mxu0 %v3188
    %v3210 = vpop.f32.mrf.mxu0
    %v3211 = vadd.f32 0.0, %v3210
    %3212 = vmatmul.f32.gmra.mxu0 %v3191
    %v3213 = vpop.f32.mrf.mxu0
    %v3214 = vadd.f32 0.0, %v3213
    %3215 = vdwg.mxu0
    %v3217 = vsel %vm1217, %v3153, 0
    %v3220 = vsel %vm1217, %v3156, 0
    %3222 = vmatpush.msra.mxu0 0.0
    %3223 = vmatpush.msra.mxu0 0.0
    %3224 = vmatpush.msra.mxu0 0.0
    %3225 = vmatpush.msra.mxu0 0.0
    %3226 = vmatpush.msra.mxu0 0.0
    %3227 = vmatpush.msra.mxu0 0.0
    %3228 = vmatpush.msra.mxu0 0.0
    %3229 = vmatpush.msra.mxu0 0.0
    %3230 = vmatpush.msra.mxu0 0.0
    %3231 = vmatpush.msra.mxu0 0.0
    %3232 = vmatpush.msra.mxu0 0.0
    %3233 = vmatpush.msra.mxu0 0.0
    %3234 = vmatpush.msra.mxu0 %v1135
    %3235 = vmatpush.msra.mxu0 %v1134
    %3236 = vmatpush.msra.mxu0 %v1133
    %3237 = vmatpush.msra.mxu0 %v1132
    %3238 = vmatmul.f32.gmra.mxu0 %v3217
    %v3239 = vpop.f32.mrf.mxu0
    %v3240 = vadd.f32 %v3211, %v3239
    %3241 = vmatmul.f32.gmra.mxu0 %v3220
    %v3242 = vpop.f32.mrf.mxu0
    %v3243 = vadd.f32 %v3214, %v3242
    %3244 = vdwg.mxu0
    %v3246 = vsel %vm1217, %v3182, 0
    %v3249 = vsel %vm1217, %v3185, 0
    %3251 = vmatpush.msra.mxu0 0.0
    %3252 = vmatpush.msra.mxu0 0.0
    %3253 = vmatpush.msra.mxu0 0.0
    %3254 = vmatpush.msra.mxu0 0.0
    %3255 = vmatpush.msra.mxu0 0.0
    %3256 = vmatpush.msra.mxu0 0.0
    %3257 = vmatpush.msra.mxu0 0.0
    %3258 = vmatpush.msra.mxu0 0.0
    %3259 = vmatpush.msra.mxu0 0.0
    %3260 = vmatpush.msra.mxu0 0.0
    %3261 = vmatpush.msra.mxu0 0.0
    %3262 = vmatpush.msra.mxu0 0.0
    %3263 = vmatpush.msra.mxu0 %v1143
    %3264 = vmatpush.msra.mxu0 %v1142
    %3265 = vmatpush.msra.mxu0 %v1141
    %3266 = vmatpush.msra.mxu0 %v1140
    %3267 = vmatmul.f32.gmra.mxu0 %v3246
    %v3268 = vpop.f32.mrf.mxu0
    %v3269 = vadd.f32 0.0, %v3268
    %3270 = vmatmul.f32.gmra.mxu0 %v3249
    %v3271 = vpop.f32.mrf.mxu0
    %v3272 = vadd.f32 0.0, %v3271
    %3273 = vdwg.mxu0
    %v3274 = vadd.f32 %v3240, %v3269
    %v3275 = vadd.f32 %v3243, %v3272
    %v3277 = vperm.slane %v1130, 0
    %v3279 = vadd.f32 %v3274, %v3277
    %v3280 = vadd.f32 %v3275, %v3277
    %v3281 = vmax.f32 %v3279, 0.0
    %v3282 = vmax.f32 %v3280, 0.0
    %v3284 = vperm.slane %v1131, 0
    %v3287 = vsel %vm1217, %v3281, 0
    %v3290 = vsel %vm1217, %v3282, 0
    %3292 = vmatpush.msra.mxu0 0.0
    %3293 = vmatpush.msra.mxu0 0.0
    %3294 = vmatpush.msra.mxu0 0.0
    %3295 = vmatpush.msra.mxu0 0.0
    %3296 = vmatpush.msra.mxu0 0.0
    %3297 = vmatpush.msra.mxu0 0.0
    %3298 = vmatpush.msra.mxu0 0.0
    %3299 = vmatpush.msra.mxu0 0.0
    %3300 = vmatpush.msra.mxu0 0.0
    %3301 = vmatpush.msra.mxu0 0.0
    %3302 = vmatpush.msra.mxu0 0.0
    %3303 = vmatpush.msra.mxu0 0.0
    %3304 = vmatpush.msra.mxu0 %v1147
    %3305 = vmatpush.msra.mxu0 %v1146
    %3306 = vmatpush.msra.mxu0 %v1145
    %3307 = vmatpush.msra.mxu0 %v1144
    %3308 = vmatmul.f32.gmra.mxu0 %v3287
    %v3309 = vpop.f32.mrf.mxu0
    %v3310 = vadd.f32 %v3284, %v3309
    %3311 = vmatmul.f32.gmra.mxu0 %v3290
    %v3312 = vpop.f32.mrf.mxu0
    %v3313 = vadd.f32 %v3284, %v3312
    %3314 = vdwg.mxu0
    %v3315 = vadd.f32 %v3111, %v3310
    %v3316 = vadd.f32 %v3112, %v3313
    %v3318 = vperm.slane %v1148, 0
    %v3321 = vsel %vm1217, %v3315, 0
    %v3324 = vsel %vm1217, %v3316, 0
    %3326 = vmatpush.msra.mxu0 0.0
    %3327 = vmatpush.msra.mxu0 0.0
    %3328 = vmatpush.msra.mxu0 0.0
    %3329 = vmatpush.msra.mxu0 0.0
    %3330 = vmatpush.msra.mxu0 0.0
    %3331 = vmatpush.msra.mxu0 0.0
    %3332 = vmatpush.msra.mxu0 0.0
    %3333 = vmatpush.msra.mxu0 0.0
    %3334 = vmatpush.msra.mxu0 0.0
    %3335 = vmatpush.msra.mxu0 0.0
    %3336 = vmatpush.msra.mxu0 0.0
    %3337 = vmatpush.msra.mxu0 0.0
    %3338 = vmatpush.msra.mxu0 %v1152
    %3339 = vmatpush.msra.mxu0 %v1151
    %3340 = vmatpush.msra.mxu0 %v1150
    %3341 = vmatpush.msra.mxu0 %v1149
    %3342 = vmatmul.f32.gmra.mxu0 %v3321
    %v3343 = vpop.f32.mrf.mxu0
    %v3344 = vadd.f32 %v3318, %v3343
    %3345 = vmatmul.f32.gmra.mxu0 %v3324
    %v3346 = vpop.f32.mrf.mxu0
    %v3347 = vadd.f32 %v3318, %v3346
    %3348 = vdwg.mxu0
    %v3349 = vsel %vm1214, %v3344, -1e+30
    %v3350 = vsel %vm1214, %v3347, -1e+30
    %v3351 = vsel %vm1217, %v3349, -inf
    %3352 = vmax.xlane.f32.xlu0 %v3351
    %v3353 = vpop.xlane.xlu0 %3352
    %v3354 = vsel %vm1217, %v3350, -inf
    %3355 = vmax.xlane.f32.xlu0 %v3354
    %v3356 = vpop.xlane.xlu0 %3355
    %v3357 = vsub.f32 %v3344, %v3353
    %v3358 = vsub.f32 %v3347, %v3356
    %v3359 = vsel %vm1214, %v3357, -1e+30
    %v3360 = vsel %vm1214, %v3358, -1e+30
    %v3361 = vmul.f32 %v3359, 1.442695
    %v3362 = vpow.pop %v3361
    %v3363 = vmul.f32 %v3360, 1.442695
    %v3364 = vpow.pop %v3363
    %v3365 = vsel %vm1217, %v3362, 0.0
    %3366 = vadd.xlane.f32.xlu0 %v3365
    %v3367 = vpop.xlane.xlu0 %3366
    %v3368 = vsel %vm1217, %v3364, 0.0
    %3369 = vadd.xlane.f32.xlu0 %v3368
    %v3370 = vpop.xlane.xlu0 %3369
    %v3371 = vrcp.pop %v3367
    %v3372 = vmul.f32 %v3367, %v3371
    %v3373 = vsub.f32 1.0, %v3372
    %v3374 = vmul.f32 %v3371, %v3373
    %v3375 = vadd.f32 %v3371, %v3374
    %vm3376 = vweird.f32 %v3367
    %vm3377 = vweird.f32 %v3371
    %vm3378 = vmor %vm3376, %vm3377
    %v3379 = vsel %vm3378, %v3371, %v3375
    %v3380 = vand.u32 2147483647, %v3367
    %vm3381 = vcmp.eq.f32.partialorder %v3380, 8.507059e+37
    %v3382 = vand.u32 %v3367, 2147483648
    %v3383 = vor.u32 1.1754944e-38, %v3382
    %v3384 = vsel %vm3381, %v3383, %v3379
    %v3385 = vmul.f32 %v3362, %v3384
    %v3386 = vrcp.pop %v3370
    %v3387 = vmul.f32 %v3370, %v3386
    %v3388 = vsub.f32 1.0, %v3387
    %v3389 = vmul.f32 %v3386, %v3388
    %v3390 = vadd.f32 %v3386, %v3389
    %vm3391 = vweird.f32 %v3370
    %vm3392 = vweird.f32 %v3386
    %vm3393 = vmor %vm3391, %vm3392
    %v3394 = vsel %vm3393, %v3386, %v3390
    %v3395 = vand.u32 2147483647, %v3370
    %vm3396 = vcmp.eq.f32.partialorder %v3395, 8.507059e+37
    %v3397 = vand.u32 %v3370, 2147483648
    %v3398 = vor.u32 1.1754944e-38, %v3397
    %v3399 = vsel %vm3396, %v3398, %v3394
    %v3400 = vmul.f32 %v3364, %v3399
    %v3401 = vsel %vm1214, %v3385, %v3344
    %v3402 = vsel %vm1214, %v3400, %v3347
    %3403 = vst.msk [vmem:[#allocation88] sm:$0xff] %vm1217, %v3401
    %3404 = vst.msk [vmem:[#allocation88 + $0x8] sm:$0xff] %vm1217, %v3402
    %3405 = vst.msk [vmem:[#allocation89] sm:$0xff] %vm1217, %v2600
    // Predicated region
    $region484: #{update_block_tdu_forward.1} parent=1 // pred_check
      _
    $region485: #{update_block_tdu_forward.1} parent=1 // pred_check_branch
      %3407 = sbr.rel (0) target = $region487
    $region486: #{update_block_tdu_forward.1} parent=1 // pred_region
      %3409 = vsyncadd [#allocation9], 0
      %s3410 = sshll.u32 [#allocation88], 4
      %s3411 = int_to_ptr.vmem [resolvable:$true] %s3410
      %s3412 = sshll.u32 %s129, 4
      %s3413 = int_to_ptr.hbm [resolvable:$true] %s3412
      %3418 = dma.vmem_to_hbm [thread:$0]  %s3411, 256, %s3413, [#allocation9], 128, 128, 8
    $region487: #{update_block_tdu_forward.1} parent=1 // pred_fallthru
      _
    // Predicated region
    $region488: #{update_block_tdu_forward.1} parent=1 // pred_check
      _
    $region489: #{update_block_tdu_forward.1} parent=1 // pred_check_branch
      %3420 = sbr.rel (0) target = $region491
    $region490: #{update_block_tdu_forward.1} parent=1 // pred_region
      %3422 = vsyncadd [#allocation90], 0
      %s3424 = sshll.u32 [#allocation89], 4
      %s3425 = int_to_ptr.vmem [resolvable:$true] %s3424
      %s3426 = sshll.u32 %s131, 4
      %s3427 = int_to_ptr.hbm [resolvable:$true] %s3426
      %3429 = dma.vmem_to_hbm [thread:$0]  %s3425, 128, %s3427, [#allocation90]
    $region491: #{update_block_tdu_forward.1} parent=1 // pred_fallthru
      _
    // Predicated region
    $region492: #{update_block_tdu_forward.1} parent=1 // pred_check
      _
    $region493: #{update_block_tdu_forward.1} parent=1 // pred_check_branch
      %3431 = sbr.rel (0) target = $region495
    $region494: #{update_block_tdu_forward.1} parent=1 // pred_region
      %3433 = dma.done [#allocation9], 256
    $region495: #{update_block_tdu_forward.1} parent=1 // pred_fallthru
      _
    // Predicated region
    $region496: #{update_block_tdu_forward.1} parent=1 // pred_check
      _
    $region497: #{update_block_tdu_forward.1} parent=1 // pred_check_branch
      %3435 = sbr.rel (0) target = $region499
    $region498: #{update_block_tdu_forward.1} parent=1 // pred_region
      %3437 = dma.done [#allocation90], 128
    $region499: #{update_block_tdu_forward.1} parent=1 // pred_fallthru
      _
    %3438 = vsyncpa [#allocation8], 1
    %3439 = vsyncpa [#allocation11], 1
    %3440 = vsyncpa [#allocation14], 1
    %3441 = vsyncpa [#allocation17], 1
    %3442 = vsyncpa [#allocation20], 1
    %3443 = vsyncpa [#allocation23], 1
    %3444 = vsyncpa [#allocation26], 1
    %3445 = vsyncpa [#allocation29], 1
    %3446 = vsyncpa [#allocation32], 1
    %3447 = vsyncpa [#allocation35], 1
    %3448 = vsyncpa [#allocation38], 1
    %3449 = vsyncpa [#allocation41], 1
    %3450 = vsyncpa [#allocation44], 1
    %3451 = vsyncpa [#allocation47], 1
    %3452 = vsyncpa [#allocation50], 1
    %3453 = vsyncpa [#allocation53], 1
    %3454 = vsyncpa [#allocation56], 1
    %3455 = vsyncpa [#allocation59], 1
    %3456 = vsyncpa [#allocation62], 1
    %3457 = vsyncpa [#allocation65], 1
    %3458 = vsyncpa [#allocation68], 1
    %3459 = vsyncpa [#allocation71], 1
    %3460 = vsyncpa [#allocation74], 1
    %3461 = vsyncpa [#allocation77], 1
    %3462 = vsyncpa [#allocation80], 1
    %3463 = vsyncpa [#allocation83], 1
    %3464 = vsyncpa [#allocation86], 1
    %3465 = vsyncpa [#allocation9], 1
    %3466 = vsyncpa [#allocation90], 1

</llo_original>
